<compile_context>
chip_gen: v6e
topology: v6e:2x2x1
jax: 0.10.0
libtpu: 0.0.40
codegen_flags: <defaults>
</compile_context>

<pallas_src>
import functools

import jax
import jax.numpy as jnp
from jax.experimental import pallas as pl
from jax.experimental.pallas import tpu as pltpu

# --- small, TPU-friendly config (reference used 384/6/6/256) ---
N_EMBD = 128
N_HEAD = 4
HEAD_SIZE = N_EMBD // N_HEAD
N_LAYER = 2
VOCAB = 64
VOCAB_PAD = 128          # lane-dense lm_head output slab; padding sliced off in JAX
BLOCK_SIZE = 16
TILE_B = 2               # sequences per grid step (parallel axis tiles the batch)
LN_EPS = 1e-5


def _layernorm(x, g, b):
    """One-pass layernorm (f32): mean and E[x^2] from a single reduction pass."""
    inv_c = 1.0 / x.shape[-1]
    s1 = jnp.sum(x, axis=-1, keepdims=True)
    s2 = jnp.sum(x * x, axis=-1, keepdims=True)
    mu = s1 * inv_c
    var = s2 * inv_c - mu * mu
    return (x - mu) * jax.lax.rsqrt(var + LN_EPS) * g + b


def gpt_kernel(x_hbm, ln1g_ref, ln1b_ref, wqkv_ref, wo_ref, bo_ref,
               ln2g_ref, ln2b_ref, w1_ref, b1_ref, w2_ref, b2_ref,
               lnfg_ref, lnfb_ref, wlm_ref, blm_ref,
               out_ref, xs_ref, bias_ref, *, seq_len, tile_b):
    bi = pl.program_id(0)
    l = pl.program_id(1)
    n_layers = pl.num_programs(1)

    M, C = xs_ref.shape          # M = tile_b * seq_len tokens resident per grid step
    T, TB = seq_len, tile_b
    NH, HS = N_HEAD, HEAD_SIZE
    bf16, f32 = jnp.bfloat16, jnp.float32

    @pl.when(l == 0)
    def _init():
        # DMA this batch tile's embeddings straight into the resident residual
        # scratch; the x input never occupies VMEM beyond this copy.
        row0 = pl.multiple_of(bi * M, M)
        pltpu.sync_copy(x_hbm.at[pl.ds(row0, M)], xs_ref)
        # Causal additive bias, built once per batch tile and reused by every layer.
        r = jax.lax.broadcasted_iota(jnp.int32, (T, T), 0)
        c = jax.lax.broadcasted_iota(jnp.int32, (T, T), 1)
        bias_ref[...] = jnp.where(c <= r, 0.0, -1e30).astype(f32)

    x2 = xs_ref[...]                                        # (M, C) f32 residual stream

    # ----- multi-head self-attention on ln1(x) -----
    xn = _layernorm(x2, ln1g_ref[...], ln1b_ref[...])
    # Fused QKV projection (one wide MXU pass); the reference's q@k^T * C**-0.5
    # scale is pre-folded into the Q columns of wqkv at init time.
    qkv = jnp.dot(xn.astype(bf16), wqkv_ref[...],
                  preferred_element_type=f32).astype(bf16)  # (M, 3C), cast once

    def to_heads(col0):
        # (M, C) lane slab -> (NH*TB, T, HS): heads stacked along the leading axis.
        return jnp.concatenate(
            [qkv[:, col0 + h * HS: col0 + (h + 1) * HS].reshape(TB, T, HS)
             for h in range(NH)], axis=0)

    q = to_heads(0)
    k = to_heads(C)
    v = to_heads(2 * C)

    # All heads' scores / softmax / PV in one batched pass (single softmax code path).
    s = jnp.einsum('gtd,gsd->gts', q, k, preferred_element_type=f32)    # (G, T, T)
    s = s + bias_ref[...]
    s = s - jnp.max(s, axis=-1, keepdims=True)
    p = jnp.exp(s)
    p = p * pl.reciprocal(jnp.sum(p, axis=-1, keepdims=True), approx=True)
    # TODO(synk): attention dropout skipped (eval-mode identity).
    o = jnp.einsum('gts,gsd->gtd', p.astype(bf16), v,
                   preferred_element_type=f32)                           # (G, T, HS)

    # Output projection accumulated per head: no VMEM head slab, no masked
    # 32-lane stores, no lane-axis concatenate.
    acc = None
    for h in range(NH):
        o_h = o[h * TB:(h + 1) * TB].reshape(M, HS).astype(bf16)
        d = jnp.dot(o_h, wo_ref[h * HS:(h + 1) * HS, :], preferred_element_type=f32)
        acc = d if acc is None else acc + d
    # TODO(synk): projection dropout skipped (eval-mode identity).
    x2 = x2 + acc + bo_ref[...]                                          # residual

    # ----- feed-forward on ln2(x) -----
    xn2 = _layernorm(x2, ln2g_ref[...], ln2b_ref[...])
    h1 = jnp.dot(xn2.astype(bf16), w1_ref[...], preferred_element_type=f32) + b1_ref[...]
    h1 = jnp.maximum(h1, 0.0)                                            # ReLU
    h2 = jnp.dot(h1.astype(bf16), w2_ref[...], preferred_element_type=f32) + b2_ref[...]
    # TODO(synk): MLP dropout skipped (eval-mode identity).
    x2 = x2 + h2                                                         # residual

    xs_ref[...] = x2

    # ----- final LN + lm_head, fused into the last layer step -----
    @pl.when(l == n_layers - 1)
    def _final():
        xf = _layernorm(x2, lnfg_ref[...], lnfb_ref[...])
        out_ref[...] = jnp.dot(xf.astype(bf16), wlm_ref[...],
                               preferred_element_type=f32) + blm_ref[...]


def run_gpt(x, params, *, tile_b=TILE_B):
    """x: (B, T, C) f32 embeddings; returns (B, T, VOCAB_PAD) f32 logits."""
    B, T, C = x.shape
    assert B % tile_b == 0, "batch must divide into tile_b-sized tiles"
    m_tile = tile_b * T
    assert m_tile % 8 == 0 and C % 128 == 0
    n_btiles = B // tile_b

    x2d = x.reshape(B * T, C)

    def per_layer(shape):
        return pl.BlockSpec((None,) + shape, lambda bi, l: (l,) + (0,) * len(shape))

    def shared(shape):
        return pl.BlockSpec(shape, lambda bi, l: (0,) * len(shape))

    in_specs = [
        pl.BlockSpec(memory_space=pl.ANY),   # embeddings stay in HBM; DMA'd at l==0
        per_layer((1, C)),                   # ln1_g
        per_layer((1, C)),                   # ln1_b
        per_layer((C, 3 * C)),               # wqkv  (Q columns pre-scaled by C**-0.5)
        per_layer((C, C)),                   # wo
        per_layer((1, C)),                   # bo
        per_layer((1, C)),                   # ln2_g
        per_layer((1, C)),                   # ln2_b
        per_layer((C, 4 * C)),               # w1
        per_layer((1, 4 * C)),               # b1
        per_layer((4 * C, C)),               # w2
        per_layer((1, C)),                   # b2
        shared((1, C)),                      # lnf_g
        shared((1, C)),                      # lnf_b
        shared((C, VOCAB_PAD)),              # w_lm
        shared((1, VOCAB_PAD)),              # b_lm
    ]

    kernel = functools.partial(gpt_kernel, seq_len=T, tile_b=tile_b)

    out2d = pl.pallas_call(
        kernel,
        out_shape=jax.ShapeDtypeStruct((B * T, VOCAB_PAD), jnp.float32),
        grid_spec=pltpu.PrefetchScalarGridSpec(
            num_scalar_prefetch=0,
            grid=(n_btiles, N_LAYER),        # (parallel batch tiles, sequential layers)
            in_specs=in_specs,
            out_specs=pl.BlockSpec((m_tile, VOCAB_PAD), lambda bi, l: (bi, 0)),
            scratch_shapes=[
                pltpu.VMEM((m_tile, C), jnp.float32),   # resident residual stream
                pltpu.VMEM((T, T), jnp.float32),        # cached causal additive bias
            ]),
        compiler_params=pltpu.CompilerParams(
            dimension_semantics=("parallel", "arbitrary")),
    )(x2d,
      params['ln1_g'], params['ln1_b'], params['wqkv'], params['wo'], params['bo'],
      params['ln2_g'], params['ln2_b'], params['w1'], params['b1'],
      params['w2'], params['b2'],
      params['lnf_g'], params['lnf_b'], params['w_lm'], params['b_lm'])

    return out2d.reshape(B, T, VOCAB_PAD)


def init_params(key):
    keys = iter(jax.random.split(key, 16))

    def nrm(shape, scale=0.02):
        return scale * jax.random.normal(next(keys), shape, jnp.float32)

    L, C = N_LAYER, N_EMBD
    # wqkv column layout: [Q heads | K heads | V heads]; head h = lanes h*HS:(h+1)*HS.
    wqkv = nrm((L, C, 3 * C))
    # Fold the reference's q @ k^T * C**-0.5 scale into the Q columns (zero kernel cost).
    wqkv = wqkv.at[:, :, :C].multiply(float(C) ** -0.5)

    params = {
        'tok_emb': nrm((VOCAB, C), 1.0),             # nn.Embedding ~ N(0, 1)
        'pos_emb': nrm((BLOCK_SIZE, C), 1.0),
        # per-layer stacked params; matmul weights stored bf16 for the MXU
        'ln1_g': jnp.ones((L, 1, C), jnp.float32),
        'ln1_b': jnp.zeros((L, 1, C), jnp.float32),
        'wqkv': wqkv.astype(jnp.bfloat16),
        'wo': nrm((L, C, C)).astype(jnp.bfloat16),
        'bo': jnp.zeros((L, 1, C), jnp.float32),
        'ln2_g': jnp.ones((L, 1, C), jnp.float32),
        'ln2_b': jnp.zeros((L, 1, C), jnp.float32),
        'w1': nrm((L, C, 4 * C)).astype(jnp.bfloat16),
        'b1': jnp.zeros((L, 1, 4 * C), jnp.float32),
        'w2': nrm((L, 4 * C, C)).astype(jnp.bfloat16),
        'b2': jnp.zeros((L, 1, C), jnp.float32),
        'lnf_g': jnp.ones((1, C), jnp.float32),
        'lnf_b': jnp.zeros((1, C), jnp.float32),
    }
    # lm_head padded to a lane-dense 128-wide output (padding sliced off in JAX)
    w_lm = nrm((C, VOCAB))
    params['w_lm'] = jnp.pad(w_lm, ((0, 0), (0, VOCAB_PAD - VOCAB))).astype(jnp.bfloat16)
    params['b_lm'] = jnp.zeros((1, VOCAB_PAD), jnp.float32)
    return params


def gpt_forward(idx, params):
    """idx: int32 [B, T] token ids; returns logits [B, T, VOCAB] (targets=None path)."""
    B, T = idx.shape
    assert T <= BLOCK_SIZE
    tok = params['tok_emb'][idx]                 # (B, T, C) embedding gather (glue JAX)
    pos = params['pos_emb'][:T]                  # (T, C)
    x = (tok + pos).astype(jnp.float32)
    logits_padded = run_gpt(x, params)           # (B, T, VOCAB_PAD)
    # TODO(synk): cross-entropy loss (targets path) and generate() sampling not kernelized.
    return logits_padded[:, :, :VOCAB]


if __name__ == "__main__":
    key = jax.random.PRNGKey(0)
    k_param, k_idx = jax.random.split(key)
    params = init_params(k_param)

    B, T = 4, BLOCK_SIZE                          # 4 sequences x 16 tokens (2 batch tiles)
    idx = jax.random.randint(k_idx, (B, T), 0, VOCAB, dtype=jnp.int32)

    logits = gpt_forward(idx, params)
    logits = jax.block_until_ready(logits)
    assert logits.shape == (B, T, VOCAB) and logits.dtype == jnp.float32
    assert bool(jnp.all(jnp.isfinite(logits)))
    print("KERNEL_OK")
</pallas_src>

<mosaic_0001>
module attributes {stable_mosaic.version = 11 : i64} {
  func.func @gpt_kernel(%arg0: i32, %arg1: i32, %arg2: memref<64x128xf32, #tpu.memory_space<any>>, %arg3: memref<1x1x128xf32, #tpu.memory_space<vmem>>, %arg4: memref<1x1x128xf32, #tpu.memory_space<vmem>>, %arg5: memref<1x128x384xbf16, #tpu.memory_space<vmem>>, %arg6: memref<1x128x128xbf16, #tpu.memory_space<vmem>>, %arg7: memref<1x1x128xf32, #tpu.memory_space<vmem>>, %arg8: memref<1x1x128xf32, #tpu.memory_space<vmem>>, %arg9: memref<1x1x128xf32, #tpu.memory_space<vmem>>, %arg10: memref<1x128x512xbf16, #tpu.memory_space<vmem>>, %arg11: memref<1x1x512xf32, #tpu.memory_space<vmem>>, %arg12: memref<1x512x128xbf16, #tpu.memory_space<vmem>>, %arg13: memref<1x1x128xf32, #tpu.memory_space<vmem>>, %arg14: memref<1x128xf32, #tpu.memory_space<vmem>>, %arg15: memref<1x128xf32, #tpu.memory_space<vmem>>, %arg16: memref<128x128xbf16, #tpu.memory_space<vmem>>, %arg17: memref<1x128xf32, #tpu.memory_space<vmem>>, %arg18: memref<32x128xf32, #tpu.memory_space<vmem>>, %arg19: memref<32x128xf32, #tpu.memory_space<vmem>>, %arg20: memref<16x16xf32, #tpu.memory_space<vmem>>) attributes {dimension_semantics = [#tpu.dimension_semantics<parallel>, #tpu.dimension_semantics<arbitrary>], iteration_bounds = array<i64: 2, 2>, scalar_prefetch = 0 : i64, scratch_operands = 2 : i64, tpu.core_type = #tpu.core_type<tc>, window_params = [{}, {transform_indices = @transform_1, window_bounds = array<i64: 1, 1, 128>}, {transform_indices = @transform_2, window_bounds = array<i64: 1, 1, 128>}, {transform_indices = @transform_3, window_bounds = array<i64: 1, 128, 384>}, {transform_indices = @transform_4, window_bounds = array<i64: 1, 128, 128>}, {transform_indices = @transform_5, window_bounds = array<i64: 1, 1, 128>}, {transform_indices = @transform_6, window_bounds = array<i64: 1, 1, 128>}, {transform_indices = @transform_7, window_bounds = array<i64: 1, 1, 128>}, {transform_indices = @transform_8, window_bounds = array<i64: 1, 128, 512>}, {transform_indices = @transform_9, window_bounds = array<i64: 1, 1, 512>}, {transform_indices = @transform_10, window_bounds = array<i64: 1, 512, 128>}, {transform_indices = @transform_11, window_bounds = array<i64: 1, 1, 128>}, {pipeline_mode = #tpu.pipeline_mode<synchronous>, transform_indices = @transform_12, window_bounds = array<i64: 1, 128>}, {pipeline_mode = #tpu.pipeline_mode<synchronous>, transform_indices = @transform_13, window_bounds = array<i64: 1, 128>}, {pipeline_mode = #tpu.pipeline_mode<synchronous>, transform_indices = @transform_14, window_bounds = array<i64: 128, 128>}, {pipeline_mode = #tpu.pipeline_mode<synchronous>, transform_indices = @transform_15, window_bounds = array<i64: 1, 128>}, {transform_indices = @transform_16, window_bounds = array<i64: 32, 128>}]} {
    %c0_i32 = arith.constant 0 : i32
    %0 = arith.cmpi eq, %arg1, %c0_i32 : i32
    %1 = arith.extui %0 : i1 to i32
    %c0_i32_0 = arith.constant 0 : i32
    %2 = arith.cmpi ne, %1, %c0_i32_0 : i32
    scf.if %2 {
      %c32_i32 = arith.constant 32 : i32
      %160 = arith.muli %arg0, %c32_i32 : i32
      %161 = tpu.assume_multiple %160, 32 : i32
      "tpu.region"() ({
        %169 = tpu.sem_alloc : memref<!tpu.dma_semaphore, #tpu.memory_space<semaphore_mem>>
        %c0_i32_71 = arith.constant 0 : i32
        %170 = tpu.memref_slice %arg2[%161, %c0_i32_71] : memref<64x128xf32, #tpu.memory_space<any>> -> memref<32x128xf32, #tpu.memory_space<any>>
        tpu.enqueue_dma source(%170 : memref<32x128xf32, #tpu.memory_space<any>>) target(%arg19 : memref<32x128xf32, #tpu.memory_space<vmem>>) target_semaphore(%169 : memref<!tpu.dma_semaphore, #tpu.memory_space<semaphore_mem>>)
        %c0_i32_72 = arith.constant 0 : i32
        %171 = tpu.memref_slice %arg2[%161, %c0_i32_72] : memref<64x128xf32, #tpu.memory_space<any>> -> memref<32x128xf32, #tpu.memory_space<any>>
        tpu.wait_dma2 semaphore(%169 : memref<!tpu.dma_semaphore, #tpu.memory_space<semaphore_mem>>) src(%171 : memref<32x128xf32, #tpu.memory_space<any>>) dst(%arg19 : memref<32x128xf32, #tpu.memory_space<vmem>>)
        tpu.yield
      }) : () -> ()
      %162 = tpu.iota {dimensions = array<i32: 0>} : vector<16x16xi32>
      %163 = tpu.iota {dimensions = array<i32: 1>} : vector<16x16xi32>
      %164 = arith.cmpi sle, %163, %162 : vector<16x16xi32>
      %cst_67 = arith.constant 0.000000e+00 : f32
      %cst_68 = arith.constant -1.000000e+30 : f32
      %165 = vector.broadcast %cst_67 : f32 to vector<16x16xf32>
      %166 = vector.broadcast %cst_68 : f32 to vector<16x16xf32>
      %167 = arith.select %164, %165, %166 : vector<16x16xi1>, vector<16x16xf32>
      %c0_69 = arith.constant 0 : index
      %c0_70 = arith.constant 0 : index
      %168 = vector.load %arg20[%c0_69, %c0_70] : memref<16x16xf32, #tpu.memory_space<vmem>>, vector<16x16xf32>
      tpu.vector_store %arg20[%c0_69, %c0_70], %167 {strides = array<i32>} : memref<16x16xf32, #tpu.memory_space<vmem>>, vector<16x16xf32>,
    } else {
    }
    %c0 = arith.constant 0 : index
    %c0_1 = arith.constant 0 : index
    %3 = vector.load %arg19[%c0, %c0_1] : memref<32x128xf32, #tpu.memory_space<vmem>>, vector<32x128xf32>
    %c0_2 = arith.constant 0 : index
    %c0_3 = arith.constant 0 : index
    %c0_4 = arith.constant 0 : index
    %4 = vector.load %arg3[%c0_2, %c0_3, %c0_4] : memref<1x1x128xf32, #tpu.memory_space<vmem>>, vector<1x1x128xf32>
    %5 = vector.shape_cast %4 : vector<1x1x128xf32> to vector<1x128xf32>
    %c0_5 = arith.constant 0 : index
    %c0_6 = arith.constant 0 : index
    %c0_7 = arith.constant 0 : index
    %6 = vector.load %arg4[%c0_5, %c0_6, %c0_7] : memref<1x1x128xf32, #tpu.memory_space<vmem>>, vector<1x1x128xf32>
    %7 = vector.shape_cast %6 : vector<1x1x128xf32> to vector<1x128xf32>
    %cst = arith.constant dense<0.000000e+00> : vector<32xf32>
    %8 = vector.multi_reduction <add>, %3, %cst [1] : vector<32x128xf32> to vector<32xf32>
    %9 = vector.shape_cast %8 : vector<32xf32> to vector<32x1xf32>
    %10 = arith.mulf %3, %3 : vector<32x128xf32>
    %cst_8 = arith.constant dense<0.000000e+00> : vector<32xf32>
    %11 = vector.multi_reduction <add>, %10, %cst_8 [1] : vector<32x128xf32> to vector<32xf32>
    %12 = vector.shape_cast %11 : vector<32xf32> to vector<32x1xf32>
    %cst_9 = arith.constant 7.812500e-03 : f32
    %13 = vector.broadcast %cst_9 : f32 to vector<32x1xf32>
    %14 = arith.mulf %9, %13 : vector<32x1xf32>
    %cst_10 = arith.constant 7.812500e-03 : f32
    %15 = vector.broadcast %cst_10 : f32 to vector<32x1xf32>
    %16 = arith.mulf %12, %15 : vector<32x1xf32>
    %17 = arith.mulf %14, %14 : vector<32x1xf32>
    %18 = arith.subf %16, %17 : vector<32x1xf32>
    %19 = vector.broadcast %14 : vector<32x1xf32> to vector<32x128xf32>
    %20 = arith.subf %3, %19 : vector<32x128xf32>
    %cst_11 = arith.constant 9.99999974E-6 : f32
    %21 = vector.broadcast %cst_11 : f32 to vector<32x1xf32>
    %22 = arith.addf %18, %21 : vector<32x1xf32>
    %23 = math.rsqrt %22 : vector<32x1xf32>
    %24 = vector.broadcast %23 : vector<32x1xf32> to vector<32x128xf32>
    %25 = arith.mulf %20, %24 : vector<32x128xf32>
    %26 = vector.broadcast %5 : vector<1x128xf32> to vector<32x128xf32>
    %27 = arith.mulf %25, %26 : vector<32x128xf32>
    %28 = vector.broadcast %7 : vector<1x128xf32> to vector<32x128xf32>
    %29 = arith.addf %27, %28 : vector<32x128xf32>
    %30 = arith.truncf %29 : vector<32x128xf32> to vector<32x128xbf16>
    %c0_12 = arith.constant 0 : index
    %c0_13 = arith.constant 0 : index
    %c0_14 = arith.constant 0 : index
    %31 = vector.load %arg5[%c0_12, %c0_13, %c0_14] : memref<1x128x384xbf16, #tpu.memory_space<vmem>>, vector<1x128x384xbf16>
    %32 = vector.shape_cast %31 : vector<1x128x384xbf16> to vector<128x384xbf16>
    %cst_15 = arith.constant dense<0.000000e+00> : vector<32x384xf32>
    %33 = tpu.matmul %30, %32, %cst_15 {dimension_numbers = #tpu.dot_dimension_numbers<[1], [0], [0], [1], [0, 0, 1, 1], [], []>} : vector<32x128xbf16>, vector<128x384xbf16>, vector<32x384xf32> -> vector<32x384xf32>
    %34 = arith.truncf %33 : vector<32x384xf32> to vector<32x384xbf16>
    %35 = vector.extract_strided_slice %34 {offsets = [0, 0], sizes = [32, 32], strides = [1, 1]} : vector<32x384xbf16> to vector<32x32xbf16>
    %36 = vector.shape_cast %35 : vector<32x32xbf16> to vector<2x16x32xbf16>
    %37 = vector.extract_strided_slice %34 {offsets = [0, 32], sizes = [32, 32], strides = [1, 1]} : vector<32x384xbf16> to vector<32x32xbf16>
    %38 = vector.shape_cast %37 : vector<32x32xbf16> to vector<2x16x32xbf16>
    %39 = vector.extract_strided_slice %34 {offsets = [0, 64], sizes = [32, 32], strides = [1, 1]} : vector<32x384xbf16> to vector<32x32xbf16>
    %40 = vector.shape_cast %39 : vector<32x32xbf16> to vector<2x16x32xbf16>
    %41 = vector.extract_strided_slice %34 {offsets = [0, 96], sizes = [32, 32], strides = [1, 1]} : vector<32x384xbf16> to vector<32x32xbf16>
    %42 = vector.shape_cast %41 : vector<32x32xbf16> to vector<2x16x32xbf16>
    %43 = tpu.concatenate %36, %38, %40, %42 in 0 : vector<2x16x32xbf16>, vector<2x16x32xbf16>, vector<2x16x32xbf16>, vector<2x16x32xbf16> -> vector<8x16x32xbf16>
    %44 = vector.extract_strided_slice %34 {offsets = [0, 128], sizes = [32, 32], strides = [1, 1]} : vector<32x384xbf16> to vector<32x32xbf16>
    %45 = vector.shape_cast %44 : vector<32x32xbf16> to vector<2x16x32xbf16>
    %46 = vector.extract_strided_slice %34 {offsets = [0, 160], sizes = [32, 32], strides = [1, 1]} : vector<32x384xbf16> to vector<32x32xbf16>
    %47 = vector.shape_cast %46 : vector<32x32xbf16> to vector<2x16x32xbf16>
    %48 = vector.extract_strided_slice %34 {offsets = [0, 192], sizes = [32, 32], strides = [1, 1]} : vector<32x384xbf16> to vector<32x32xbf16>
    %49 = vector.shape_cast %48 : vector<32x32xbf16> to vector<2x16x32xbf16>
    %50 = vector.extract_strided_slice %34 {offsets = [0, 224], sizes = [32, 32], strides = [1, 1]} : vector<32x384xbf16> to vector<32x32xbf16>
    %51 = vector.shape_cast %50 : vector<32x32xbf16> to vector<2x16x32xbf16>
    %52 = tpu.concatenate %45, %47, %49, %51 in 0 : vector<2x16x32xbf16>, vector<2x16x32xbf16>, vector<2x16x32xbf16>, vector<2x16x32xbf16> -> vector<8x16x32xbf16>
    %53 = vector.extract_strided_slice %34 {offsets = [0, 256], sizes = [32, 32], strides = [1, 1]} : vector<32x384xbf16> to vector<32x32xbf16>
    %54 = vector.shape_cast %53 : vector<32x32xbf16> to vector<2x16x32xbf16>
    %55 = vector.extract_strided_slice %34 {offsets = [0, 288], sizes = [32, 32], strides = [1, 1]} : vector<32x384xbf16> to vector<32x32xbf16>
    %56 = vector.shape_cast %55 : vector<32x32xbf16> to vector<2x16x32xbf16>
    %57 = vector.extract_strided_slice %34 {offsets = [0, 320], sizes = [32, 32], strides = [1, 1]} : vector<32x384xbf16> to vector<32x32xbf16>
    %58 = vector.shape_cast %57 : vector<32x32xbf16> to vector<2x16x32xbf16>
    %59 = vector.extract_strided_slice %34 {offsets = [0, 352], sizes = [32, 32], strides = [1, 1]} : vector<32x384xbf16> to vector<32x32xbf16>
    %60 = vector.shape_cast %59 : vector<32x32xbf16> to vector<2x16x32xbf16>
    %61 = tpu.concatenate %54, %56, %58, %60 in 0 : vector<2x16x32xbf16>, vector<2x16x32xbf16>, vector<2x16x32xbf16>, vector<2x16x32xbf16> -> vector<8x16x32xbf16>
    "tpu.trace_start"() <{level = 10 : i32, message = "gtd,gsd->gts"}> : () -> ()
    %cst_16 = arith.constant dense<0.000000e+00> : vector<8x16x16xf32>
    %62 = tpu.matmul %43, %52, %cst_16 {dimension_numbers = #tpu.dot_dimension_numbers<[2], [2], [1], [1], [0, 0, 0, 1, 1, 1], [0], [0]>} : vector<8x16x32xbf16>, vector<8x16x32xbf16>, vector<8x16x16xf32> -> vector<8x16x16xf32>
    "tpu.trace_stop"() : () -> ()
    %c0_17 = arith.constant 0 : index
    %c0_18 = arith.constant 0 : index
    %63 = vector.load %arg20[%c0_17, %c0_18] : memref<16x16xf32, #tpu.memory_space<vmem>>, vector<16x16xf32>
    %64 = vector.shape_cast %63 : vector<16x16xf32> to vector<1x16x16xf32>
    %65 = vector.broadcast %64 : vector<1x16x16xf32> to vector<8x16x16xf32>
    %66 = arith.addf %62, %65 : vector<8x16x16xf32>
    %cst_19 = arith.constant dense<0xFF800000> : vector<8x16xf32>
    %67 = vector.multi_reduction <maximumf>, %66, %cst_19 [2] : vector<8x16x16xf32> to vector<8x16xf32>
    %68 = vector.shape_cast %67 : vector<8x16xf32> to vector<8x16x1xf32>
    %69 = vector.broadcast %68 : vector<8x16x1xf32> to vector<8x16x16xf32>
    %70 = arith.subf %66, %69 : vector<8x16x16xf32>
    %71 = math.exp %70 : vector<8x16x16xf32>
    %cst_20 = arith.constant dense<0.000000e+00> : vector<8x16xf32>
    %72 = vector.multi_reduction <add>, %71, %cst_20 [2] : vector<8x16x16xf32> to vector<8x16xf32>
    %73 = vector.shape_cast %72 : vector<8x16xf32> to vector<8x16x1xf32>
    %74 = tpu.reciprocal %73 {approx = true} : vector<8x16x1xf32> -> vector<8x16x1xf32>
    %75 = vector.broadcast %74 : vector<8x16x1xf32> to vector<8x16x16xf32>
    %76 = arith.mulf %71, %75 : vector<8x16x16xf32>
    %77 = arith.truncf %76 : vector<8x16x16xf32> to vector<8x16x16xbf16>
    "tpu.trace_start"() <{level = 10 : i32, message = "gts,gsd->gtd"}> : () -> ()
    %cst_21 = arith.constant dense<0.000000e+00> : vector<8x16x32xf32>
    %78 = tpu.matmul %77, %61, %cst_21 {dimension_numbers = #tpu.dot_dimension_numbers<[2], [1], [1], [2], [0, 0, 0, 1, 1, 2], [0], [0]>} : vector<8x16x16xbf16>, vector<8x16x32xbf16>, vector<8x16x32xf32> -> vector<8x16x32xf32>
    "tpu.trace_stop"() : () -> ()
    %79 = vector.extract_strided_slice %78 {offsets = [0, 0, 0], sizes = [2, 16, 32], strides = [1, 1, 1]} : vector<8x16x32xf32> to vector<2x16x32xf32>
    %80 = vector.shape_cast %79 : vector<2x16x32xf32> to vector<32x32xf32>
    %81 = arith.truncf %80 : vector<32x32xf32> to vector<32x32xbf16>
    %c0_22 = arith.constant 0 : index
    %c0_23 = arith.constant 0 : index
    %c0_24 = arith.constant 0 : index
    %82 = vector.load %arg6[%c0_22, %c0_23, %c0_24] : memref<1x128x128xbf16, #tpu.memory_space<vmem>>, vector<1x32x128xbf16>
    %83 = vector.shape_cast %82 : vector<1x32x128xbf16> to vector<32x128xbf16>
    %cst_25 = arith.constant dense<0.000000e+00> : vector<32x128xf32>
    %84 = tpu.matmul %81, %83, %cst_25 {dimension_numbers = #tpu.dot_dimension_numbers<[1], [0], [0], [1], [0, 0, 1, 1], [], []>} : vector<32x32xbf16>, vector<32x128xbf16>, vector<32x128xf32> -> vector<32x128xf32>
    %85 = vector.extract_strided_slice %78 {offsets = [2, 0, 0], sizes = [2, 16, 32], strides = [1, 1, 1]} : vector<8x16x32xf32> to vector<2x16x32xf32>
    %86 = vector.shape_cast %85 : vector<2x16x32xf32> to vector<32x32xf32>
    %87 = arith.truncf %86 : vector<32x32xf32> to vector<32x32xbf16>
    %c0_26 = arith.constant 0 : index
    %c32 = arith.constant 32 : index
    %c0_27 = arith.constant 0 : index
    %88 = vector.load %arg6[%c0_26, %c32, %c0_27] : memref<1x128x128xbf16, #tpu.memory_space<vmem>>, vector<1x32x128xbf16>
    %89 = vector.shape_cast %88 : vector<1x32x128xbf16> to vector<32x128xbf16>
    %cst_28 = arith.constant dense<0.000000e+00> : vector<32x128xf32>
    %90 = tpu.matmul %87, %89, %cst_28 {dimension_numbers = #tpu.dot_dimension_numbers<[1], [0], [0], [1], [0, 0, 1, 1], [], []>} : vector<32x32xbf16>, vector<32x128xbf16>, vector<32x128xf32> -> vector<32x128xf32>
    %91 = arith.addf %84, %90 : vector<32x128xf32>
    %92 = vector.extract_strided_slice %78 {offsets = [4, 0, 0], sizes = [2, 16, 32], strides = [1, 1, 1]} : vector<8x16x32xf32> to vector<2x16x32xf32>
    %93 = vector.shape_cast %92 : vector<2x16x32xf32> to vector<32x32xf32>
    %94 = arith.truncf %93 : vector<32x32xf32> to vector<32x32xbf16>
    %c0_29 = arith.constant 0 : index
    %c64 = arith.constant 64 : index
    %c0_30 = arith.constant 0 : index
    %95 = vector.load %arg6[%c0_29, %c64, %c0_30] : memref<1x128x128xbf16, #tpu.memory_space<vmem>>, vector<1x32x128xbf16>
    %96 = vector.shape_cast %95 : vector<1x32x128xbf16> to vector<32x128xbf16>
    %cst_31 = arith.constant dense<0.000000e+00> : vector<32x128xf32>
    %97 = tpu.matmul %94, %96, %cst_31 {dimension_numbers = #tpu.dot_dimension_numbers<[1], [0], [0], [1], [0, 0, 1, 1], [], []>} : vector<32x32xbf16>, vector<32x128xbf16>, vector<32x128xf32> -> vector<32x128xf32>
    %98 = arith.addf %91, %97 : vector<32x128xf32>
    %99 = vector.extract_strided_slice %78 {offsets = [6, 0, 0], sizes = [2, 16, 32], strides = [1, 1, 1]} : vector<8x16x32xf32> to vector<2x16x32xf32>
    %100 = vector.shape_cast %99 : vector<2x16x32xf32> to vector<32x32xf32>
    %101 = arith.truncf %100 : vector<32x32xf32> to vector<32x32xbf16>
    %c0_32 = arith.constant 0 : index
    %c96 = arith.constant 96 : index
    %c0_33 = arith.constant 0 : index
    %102 = vector.load %arg6[%c0_32, %c96, %c0_33] : memref<1x128x128xbf16, #tpu.memory_space<vmem>>, vector<1x32x128xbf16>
    %103 = vector.shape_cast %102 : vector<1x32x128xbf16> to vector<32x128xbf16>
    %cst_34 = arith.constant dense<0.000000e+00> : vector<32x128xf32>
    %104 = tpu.matmul %101, %103, %cst_34 {dimension_numbers = #tpu.dot_dimension_numbers<[1], [0], [0], [1], [0, 0, 1, 1], [], []>} : vector<32x32xbf16>, vector<32x128xbf16>, vector<32x128xf32> -> vector<32x128xf32>
    %105 = arith.addf %98, %104 : vector<32x128xf32>
    %106 = arith.addf %3, %105 : vector<32x128xf32>
    %c0_35 = arith.constant 0 : index
    %c0_36 = arith.constant 0 : index
    %c0_37 = arith.constant 0 : index
    %107 = vector.load %arg7[%c0_35, %c0_36, %c0_37] : memref<1x1x128xf32, #tpu.memory_space<vmem>>, vector<1x1x128xf32>
    %108 = vector.shape_cast %107 : vector<1x1x128xf32> to vector<1x128xf32>
    %109 = vector.broadcast %108 : vector<1x128xf32> to vector<32x128xf32>
    %110 = arith.addf %106, %109 : vector<32x128xf32>
    %c0_38 = arith.constant 0 : index
    %c0_39 = arith.constant 0 : index
    %c0_40 = arith.constant 0 : index
    %111 = vector.load %arg8[%c0_38, %c0_39, %c0_40] : memref<1x1x128xf32, #tpu.memory_space<vmem>>, vector<1x1x128xf32>
    %112 = vector.shape_cast %111 : vector<1x1x128xf32> to vector<1x128xf32>
    %c0_41 = arith.constant 0 : index
    %c0_42 = arith.constant 0 : index
    %c0_43 = arith.constant 0 : index
    %113 = vector.load %arg9[%c0_41, %c0_42, %c0_43] : memref<1x1x128xf32, #tpu.memory_space<vmem>>, vector<1x1x128xf32>
    %114 = vector.shape_cast %113 : vector<1x1x128xf32> to vector<1x128xf32>
    %cst_44 = arith.constant dense<0.000000e+00> : vector<32xf32>
    %115 = vector.multi_reduction <add>, %110, %cst_44 [1] : vector<32x128xf32> to vector<32xf32>
    %116 = vector.shape_cast %115 : vector<32xf32> to vector<32x1xf32>
    %117 = arith.mulf %110, %110 : vector<32x128xf32>
    %cst_45 = arith.constant dense<0.000000e+00> : vector<32xf32>
    %118 = vector.multi_reduction <add>, %117, %cst_45 [1] : vector<32x128xf32> to vector<32xf32>
    %119 = vector.shape_cast %118 : vector<32xf32> to vector<32x1xf32>
    %cst_46 = arith.constant 7.812500e-03 : f32
    %120 = vector.broadcast %cst_46 : f32 to vector<32x1xf32>
    %121 = arith.mulf %116, %120 : vector<32x1xf32>
    %cst_47 = arith.constant 7.812500e-03 : f32
    %122 = vector.broadcast %cst_47 : f32 to vector<32x1xf32>
    %123 = arith.mulf %119, %122 : vector<32x1xf32>
    %124 = arith.mulf %121, %121 : vector<32x1xf32>
    %125 = arith.subf %123, %124 : vector<32x1xf32>
    %126 = vector.broadcast %121 : vector<32x1xf32> to vector<32x128xf32>
    %127 = arith.subf %110, %126 : vector<32x128xf32>
    %cst_48 = arith.constant 9.99999974E-6 : f32
    %128 = vector.broadcast %cst_48 : f32 to vector<32x1xf32>
    %129 = arith.addf %125, %128 : vector<32x1xf32>
    %130 = math.rsqrt %129 : vector<32x1xf32>
    %131 = vector.broadcast %130 : vector<32x1xf32> to vector<32x128xf32>
    %132 = arith.mulf %127, %131 : vector<32x128xf32>
    %133 = vector.broadcast %112 : vector<1x128xf32> to vector<32x128xf32>
    %134 = arith.mulf %132, %133 : vector<32x128xf32>
    %135 = vector.broadcast %114 : vector<1x128xf32> to vector<32x128xf32>
    %136 = arith.addf %134, %135 : vector<32x128xf32>
    %137 = arith.truncf %136 : vector<32x128xf32> to vector<32x128xbf16>
    %c0_49 = arith.constant 0 : index
    %c0_50 = arith.constant 0 : index
    %c0_51 = arith.constant 0 : index
    %138 = vector.load %arg10[%c0_49, %c0_50, %c0_51] : memref<1x128x512xbf16, #tpu.memory_space<vmem>>, vector<1x128x512xbf16>
    %139 = vector.shape_cast %138 : vector<1x128x512xbf16> to vector<128x512xbf16>
    %cst_52 = arith.constant dense<0.000000e+00> : vector<32x512xf32>
    %140 = tpu.matmul %137, %139, %cst_52 {dimension_numbers = #tpu.dot_dimension_numbers<[1], [0], [0], [1], [0, 0, 1, 1], [], []>} : vector<32x128xbf16>, vector<128x512xbf16>, vector<32x512xf32> -> vector<32x512xf32>
    %c0_53 = arith.constant 0 : index
    %c0_54 = arith.constant 0 : index
    %c0_55 = arith.constant 0 : index
    %141 = vector.load %arg11[%c0_53, %c0_54, %c0_55] : memref<1x1x512xf32, #tpu.memory_space<vmem>>, vector<1x1x512xf32>
    %142 = vector.shape_cast %141 : vector<1x1x512xf32> to vector<1x512xf32>
    %143 = vector.broadcast %142 : vector<1x512xf32> to vector<32x512xf32>
    %144 = arith.addf %140, %143 : vector<32x512xf32>
    %cst_56 = arith.constant 0.000000e+00 : f32
    %145 = vector.broadcast %cst_56 : f32 to vector<32x512xf32>
    %146 = arith.maximumf %144, %145 : vector<32x512xf32>
    %147 = arith.truncf %146 : vector<32x512xf32> to vector<32x512xbf16>
    %c0_57 = arith.constant 0 : index
    %c0_58 = arith.constant 0 : index
    %c0_59 = arith.constant 0 : index
    %148 = vector.load %arg12[%c0_57, %c0_58, %c0_59] : memref<1x512x128xbf16, #tpu.memory_space<vmem>>, vector<1x512x128xbf16>
    %149 = vector.shape_cast %148 : vector<1x512x128xbf16> to vector<512x128xbf16>
    %cst_60 = arith.constant dense<0.000000e+00> : vector<32x128xf32>
    %150 = tpu.matmul %147, %149, %cst_60 {dimension_numbers = #tpu.dot_dimension_numbers<[1], [0], [0], [1], [0, 0, 1, 1], [], []>} : vector<32x512xbf16>, vector<512x128xbf16>, vector<32x128xf32> -> vector<32x128xf32>
    %c0_61 = arith.constant 0 : index
    %c0_62 = arith.constant 0 : index
    %c0_63 = arith.constant 0 : index
    %151 = vector.load %arg13[%c0_61, %c0_62, %c0_63] : memref<1x1x128xf32, #tpu.memory_space<vmem>>, vector<1x1x128xf32>
    %152 = vector.shape_cast %151 : vector<1x1x128xf32> to vector<1x128xf32>
    %153 = vector.broadcast %152 : vector<1x128xf32> to vector<32x128xf32>
    %154 = arith.addf %150, %153 : vector<32x128xf32>
    %155 = arith.addf %110, %154 : vector<32x128xf32>
    %c0_64 = arith.constant 0 : index
    %c0_65 = arith.constant 0 : index
    %156 = vector.load %arg19[%c0_64, %c0_65] : memref<32x128xf32, #tpu.memory_space<vmem>>, vector<32x128xf32>
    tpu.vector_store %arg19[%c0_64, %c0_65], %155 {strides = array<i32>} : memref<32x128xf32, #tpu.memory_space<vmem>>, vector<32x128xf32>,
    %c1_i32 = arith.constant 1 : i32
    %157 = arith.cmpi eq, %arg1, %c1_i32 : i32
    %158 = arith.extui %157 : i1 to i32
    %c0_i32_66 = arith.constant 0 : i32
    %159 = arith.cmpi ne, %158, %c0_i32_66 : i32
    scf.if %159 {
      %c0_67 = arith.constant 0 : index
      %c0_68 = arith.constant 0 : index
      %160 = vector.load %arg14[%c0_67, %c0_68] : memref<1x128xf32, #tpu.memory_space<vmem>>, vector<1x128xf32>
      %c0_69 = arith.constant 0 : index
      %c0_70 = arith.constant 0 : index
      %161 = vector.load %arg15[%c0_69, %c0_70] : memref<1x128xf32, #tpu.memory_space<vmem>>, vector<1x128xf32>
      %cst_71 = arith.constant dense<0.000000e+00> : vector<32xf32>
      %162 = vector.multi_reduction <add>, %155, %cst_71 [1] : vector<32x128xf32> to vector<32xf32>
      %163 = vector.shape_cast %162 : vector<32xf32> to vector<32x1xf32>
      %164 = arith.mulf %155, %155 : vector<32x128xf32>
      %cst_72 = arith.constant dense<0.000000e+00> : vector<32xf32>
      %165 = vector.multi_reduction <add>, %164, %cst_72 [1] : vector<32x128xf32> to vector<32xf32>
      %166 = vector.shape_cast %165 : vector<32xf32> to vector<32x1xf32>
      %cst_73 = arith.constant 7.812500e-03 : f32
      %167 = vector.broadcast %cst_73 : f32 to vector<32x1xf32>
      %168 = arith.mulf %163, %167 : vector<32x1xf32>
      %cst_74 = arith.constant 7.812500e-03 : f32
      %169 = vector.broadcast %cst_74 : f32 to vector<32x1xf32>
      %170 = arith.mulf %166, %169 : vector<32x1xf32>
      %171 = arith.mulf %168, %168 : vector<32x1xf32>
      %172 = arith.subf %170, %171 : vector<32x1xf32>
      %173 = vector.broadcast %168 : vector<32x1xf32> to vector<32x128xf32>
      %174 = arith.subf %155, %173 : vector<32x128xf32>
      %cst_75 = arith.constant 9.99999974E-6 : f32
      %175 = vector.broadcast %cst_75 : f32 to vector<32x1xf32>
      %176 = arith.addf %172, %175 : vector<32x1xf32>
      %177 = math.rsqrt %176 : vector<32x1xf32>
      %178 = vector.broadcast %177 : vector<32x1xf32> to vector<32x128xf32>
      %179 = arith.mulf %174, %178 : vector<32x128xf32>
      %180 = vector.broadcast %160 : vector<1x128xf32> to vector<32x128xf32>
      %181 = arith.mulf %179, %180 : vector<32x128xf32>
      %182 = vector.broadcast %161 : vector<1x128xf32> to vector<32x128xf32>
      %183 = arith.addf %181, %182 : vector<32x128xf32>
      %184 = arith.truncf %183 : vector<32x128xf32> to vector<32x128xbf16>
      %c0_76 = arith.constant 0 : index
      %c0_77 = arith.constant 0 : index
      %185 = vector.load %arg16[%c0_76, %c0_77] : memref<128x128xbf16, #tpu.memory_space<vmem>>, vector<128x128xbf16>
      %cst_78 = arith.constant dense<0.000000e+00> : vector<32x128xf32>
      %186 = tpu.matmul %184, %185, %cst_78 {dimension_numbers = #tpu.dot_dimension_numbers<[1], [0], [0], [1], [0, 0, 1, 1], [], []>} : vector<32x128xbf16>, vector<128x128xbf16>, vector<32x128xf32> -> vector<32x128xf32>
      %c0_79 = arith.constant 0 : index
      %c0_80 = arith.constant 0 : index
      %187 = vector.load %arg17[%c0_79, %c0_80] : memref<1x128xf32, #tpu.memory_space<vmem>>, vector<1x128xf32>
      %188 = vector.broadcast %187 : vector<1x128xf32> to vector<32x128xf32>
      %189 = arith.addf %186, %188 : vector<32x128xf32>
      %c0_81 = arith.constant 0 : index
      %c0_82 = arith.constant 0 : index
      %190 = vector.load %arg18[%c0_81, %c0_82] : memref<32x128xf32, #tpu.memory_space<vmem>>, vector<32x128xf32>
      tpu.vector_store %arg18[%c0_81, %c0_82], %189 {strides = array<i32>} : memref<32x128xf32, #tpu.memory_space<vmem>>, vector<32x128xf32>,
    } else {
    }
    return
  }
  func.func @transform_1(%arg0: i32, %arg1: i32) -> (i32, i32, i32) {
    %c0_i32 = arith.constant 0 : i32
    %c0_i32_0 = arith.constant 0 : i32
    %c0_i32_1 = arith.constant 0 : i32
    return %arg1, %c0_i32, %c0_i32_0 : i32, i32, i32
  }
  func.func @transform_2(%arg0: i32, %arg1: i32) -> (i32, i32, i32) {
    %c0_i32 = arith.constant 0 : i32
    %c0_i32_0 = arith.constant 0 : i32
    %c0_i32_1 = arith.constant 0 : i32
    return %arg1, %c0_i32, %c0_i32_0 : i32, i32, i32
  }
  func.func @transform_3(%arg0: i32, %arg1: i32) -> (i32, i32, i32) {
    %c0_i32 = arith.constant 0 : i32
    %c0_i32_0 = arith.constant 0 : i32
    %c0_i32_1 = arith.constant 0 : i32
    return %arg1, %c0_i32, %c0_i32_0 : i32, i32, i32
  }
  func.func @transform_4(%arg0: i32, %arg1: i32) -> (i32, i32, i32) {
    %c0_i32 = arith.constant 0 : i32
    %c0_i32_0 = arith.constant 0 : i32
    %c0_i32_1 = arith.constant 0 : i32
    return %arg1, %c0_i32, %c0_i32_0 : i32, i32, i32
  }
  func.func @transform_5(%arg0: i32, %arg1: i32) -> (i32, i32, i32) {
    %c0_i32 = arith.constant 0 : i32
    %c0_i32_0 = arith.constant 0 : i32
    %c0_i32_1 = arith.constant 0 : i32
    return %arg1, %c0_i32, %c0_i32_0 : i32, i32, i32
  }
  func.func @transform_6(%arg0: i32, %arg1: i32) -> (i32, i32, i32) {
    %c0_i32 = arith.constant 0 : i32
    %c0_i32_0 = arith.constant 0 : i32
    %c0_i32_1 = arith.constant 0 : i32
    return %arg1, %c0_i32, %c0_i32_0 : i32, i32, i32
  }
  func.func @transform_7(%arg0: i32, %arg1: i32) -> (i32, i32, i32) {
    %c0_i32 = arith.constant 0 : i32
    %c0_i32_0 = arith.constant 0 : i32
    %c0_i32_1 = arith.constant 0 : i32
    return %arg1, %c0_i32, %c0_i32_0 : i32, i32, i32
  }
  func.func @transform_8(%arg0: i32, %arg1: i32) -> (i32, i32, i32) {
    %c0_i32 = arith.constant 0 : i32
    %c0_i32_0 = arith.constant 0 : i32
    %c0_i32_1 = arith.constant 0 : i32
    return %arg1, %c0_i32, %c0_i32_0 : i32, i32, i32
  }
  func.func @transform_9(%arg0: i32, %arg1: i32) -> (i32, i32, i32) {
    %c0_i32 = arith.constant 0 : i32
    %c0_i32_0 = arith.constant 0 : i32
    %c0_i32_1 = arith.constant 0 : i32
    return %arg1, %c0_i32, %c0_i32_0 : i32, i32, i32
  }
  func.func @transform_10(%arg0: i32, %arg1: i32) -> (i32, i32, i32) {
    %c0_i32 = arith.constant 0 : i32
    %c0_i32_0 = arith.constant 0 : i32
    %c0_i32_1 = arith.constant 0 : i32
    return %arg1, %c0_i32, %c0_i32_0 : i32, i32, i32
  }
  func.func @transform_11(%arg0: i32, %arg1: i32) -> (i32, i32, i32) {
    %c0_i32 = arith.constant 0 : i32
    %c0_i32_0 = arith.constant 0 : i32
    %c0_i32_1 = arith.constant 0 : i32
    return %arg1, %c0_i32, %c0_i32_0 : i32, i32, i32
  }
  func.func @transform_12(%arg0: i32, %arg1: i32) -> (i32, i32) {
    %c0_i32 = arith.constant 0 : i32
    %c0_i32_0 = arith.constant 0 : i32
    %c0_i32_1 = arith.constant 0 : i32
    return %c0_i32, %c0_i32_0 : i32, i32
  }
  func.func @transform_13(%arg0: i32, %arg1: i32) -> (i32, i32) {
    %c0_i32 = arith.constant 0 : i32
    %c0_i32_0 = arith.constant 0 : i32
    %c0_i32_1 = arith.constant 0 : i32
    return %c0_i32, %c0_i32_0 : i32, i32
  }
  func.func @transform_14(%arg0: i32, %arg1: i32) -> (i32, i32) {
    %c0_i32 = arith.constant 0 : i32
    %c0_i32_0 = arith.constant 0 : i32
    %c0_i32_1 = arith.constant 0 : i32
    return %c0_i32, %c0_i32_0 : i32, i32
  }
  func.func @transform_15(%arg0: i32, %arg1: i32) -> (i32, i32) {
    %c0_i32 = arith.constant 0 : i32
    %c0_i32_0 = arith.constant 0 : i32
    %c0_i32_1 = arith.constant 0 : i32
    return %c0_i32, %c0_i32_0 : i32, i32
  }
  func.func @transform_16(%arg0: i32, %arg1: i32) -> (i32, i32) {
    %c0_i32 = arith.constant 0 : i32
    %c0_i32_0 = arith.constant 0 : i32
    return %arg0, %c0_i32 : i32, i32
  }
}

</mosaic_0001>

<llo_original>
// kernel: tpu_custom_call.1
$region0: #{tpu_custom_call.1}
  #allocation0 [shape = 'u32[]', space=smem, size = 0x4, offset = 0x4, fixed_abs, tag = 'smem constant byte address 0x4 - core index']
  #allocation1 [shape = 'u32[144,128]{1,0:T(1,128)}', space=vmem, size = 0x12000, scoped, tag = 'internal scratch']
  #allocation2 [shape = 'f32[32,128]{1,0:T(8,128)}', space=vmem, size = 0x4000, scoped, tag = 'scratch operand']
  #allocation3 [shape = 'f32[16,16]{1,0:T(8,128)}', space=vmem, size = 0x2000, scoped, tag = 'scratch operand']
  #allocation17 [shape = 's32[]', space=sflag, size = 0x4, offset = 0, fixed_abs, tag = 'sflag constant byte address 0x0 - dummy sync flag']
  #allocation18 [shape = 's32[]', space=sflag, size = 0x4, offset = 0, fixed_abs, tag = 'sflag constant byte address 0x0 - dummy sync flag']
  #allocation19 [shape = 'u32[]', space=smem, size = 0x4, offset = 0x44, fixed_abs, tag = 'smem constant byte address 0x44 - assertion arg 0']
  #allocation20 [shape = 'u32[]', space=smem, size = 0x4, offset = 0x48, fixed_abs, tag = 'smem constant byte address 0x48 - assertion arg 1']
  %s0 = inlined_call_operand.hbm [shape: f32[64,128], index: 0, kind: input, shape index: {}]
  %s1 = inlined_call_operand.hbm [shape: f32[2,1,128], index: 1, kind: input, shape index: {}]
  %s2 = inlined_call_operand.vmem [shape: f32[2,1,128], index: 2, kind: input, shape index: {}]
  %s3 = inlined_call_operand.hbm [shape: bf16[2,128,384], index: 3, kind: input, shape index: {}]
  %s4 = inlined_call_operand.hbm [shape: bf16[2,128,128], index: 4, kind: input, shape index: {}]
  %s5 = inlined_call_operand.vmem [shape: f32[2,1,128], index: 5, kind: input, shape index: {}]
  %s6 = inlined_call_operand.vmem [shape: f32[2,1,128], index: 6, kind: input, shape index: {}]
  %s7 = inlined_call_operand.vmem [shape: f32[2,1,128], index: 7, kind: input, shape index: {}]
  %s8 = inlined_call_operand.hbm [shape: bf16[2,128,512], index: 8, kind: input, shape index: {}]
  %s9 = inlined_call_operand.vmem [shape: f32[2,1,512], index: 9, kind: input, shape index: {}]
  %s10 = inlined_call_operand.hbm [shape: bf16[2,512,128], index: 10, kind: input, shape index: {}]
  %s11 = inlined_call_operand.vmem [shape: f32[2,1,128], index: 11, kind: input, shape index: {}]
  %s12 = inlined_call_operand.vmem [shape: f32[1,128], index: 12, kind: input, shape index: {}]
  %s13 = inlined_call_operand.vmem [shape: f32[1,128], index: 13, kind: input, shape index: {}]
  %s14 = inlined_call_operand.hbm [shape: bf16[128,128], index: 14, kind: input, shape index: {}]
  %s15 = inlined_call_operand.vmem [shape: f32[1,128], index: 15, kind: input, shape index: {}]
  %s16 = inlined_call_operand.hbm [shape: f32[64,128], index: 16, kind: output, shape index: {}]
  %s17 = sld [smem:[#allocation0]]
  $region130: #{tpu_custom_call.1} parent=0
    _
  %s19 = ssub.s32 1, %s17
  %s20 = scalar_select 0, %s19, %s17
  $region1: #{tpu_custom_call.1} parent=0
    #allocation4 [shape = 'u8[1024]{0}', space=vmem, size = 0x400, scoped, tag = 'input window, operand 1']
    #allocation5 [shape = 's32[2]{0}', space=sflag, size = 0x8, scoped, tag = 'scoped memory for tpu_custom_call.1']
    #allocation6 [shape = 's32[2]{0}', space=sflag, size = 0x8, scoped, tag = 'scoped memory for tpu_custom_call.1']
    #allocation7 [shape = 'u8[196608]{0}', space=vmem, size = 0x30000, scoped, tag = 'input window, operand 3']
    #allocation8 [shape = 's32[2]{0}', space=sflag, size = 0x8, scoped, tag = 'scoped memory for tpu_custom_call.1']
    #allocation9 [shape = 'u8[65536]{0}', space=vmem, size = 0x10000, scoped, tag = 'input window, operand 4']
    #allocation10 [shape = 'u8[262144]{0}', space=vmem, size = 0x40000, scoped, tag = 'input window, operand 8']
    #allocation11 [shape = 's32[2]{0}', space=sflag, size = 0x8, scoped, tag = 'scoped memory for tpu_custom_call.1']
    #allocation12 [shape = 'u8[262144]{0}', space=vmem, size = 0x40000, scoped, tag = 'input window, operand 10']
    #allocation13 [shape = 'u8[32768]{0}', space=vmem, size = 0x8000, scoped, tag = 'input window, operand 14, single buffered']
    #allocation14 [shape = 's32[1]{0}', space=sflag, size = 0x4, scoped, tag = 'scoped memory for tpu_custom_call.1']
    #allocation15 [shape = 'u8[32768]{0}', space=vmem, size = 0x8000, scoped, tag = 'output window, operand 0']
    %21 = vsyncpa [#allocation5], 0
    %s22 = scalar_lea.sflag [#allocation5], 1
    %23 = vsyncpa %s22, 0
    %24 = vsyncpa [#allocation8], 0
    %s25 = scalar_lea.sflag [#allocation8], 1
    %26 = vsyncpa %s25, 0
    %27 = vsyncpa [#allocation11], 0
    %s28 = scalar_lea.sflag [#allocation11], 1
    %29 = vsyncpa %s28, 0
    %30 = vsyncpa [#allocation14], 0
    %31 = vsyncpa [#allocation6], 0
    %s32 = scalar_lea.sflag [#allocation6], 1
    %33 = vsyncpa %s32, 0
    loop: start=0, step=1, limit=6
    $region2: #{tpu_custom_call.1} parent=1 // loop_pre_header
      _
    $region3: #{tpu_custom_call.1} parent=1 // loop_header
      %s35 = sphi 0, %s39
      %p36 = scmp.ge.s32.totalorder %s35, 6
      %s42 = sphi 0, %s54
      %s43 = sphi 0, %s50
      %s44 = sphi 0, %s42
      %s45 = sphi 0, %s43
      %s46 = sphi 0, %s44
      %s47 = sphi 0, %s45
      %s57 = sphi 0, %s59
      %s60 = sphi 0, %s57
      %s61 = sphi 0, %s60
      %s77 = sphi 0, %s61
      %s83 = sphi 0, %s85
      %s86 = sphi 0, %s83
      %s87 = sphi 0, %s86
      %s103 = sphi 0, %s87
      %s109 = sphi 0, %s111
      %s112 = sphi 0, %s109
      %s113 = sphi 0, %s112
      %s129 = sphi 0, %s113
      %s135 = sphi 0, %s137
      %s138 = sphi 0, %s135
      %s139 = sphi 0, %s138
      %s155 = sphi 0, %s139
      %s161 = sphi 0, %s163
      %s164 = sphi 0, %s161
      %s165 = sphi 0, %s164
      %s181 = sphi 0, %s165
      %s187 = sphi 0, %s189
      %s190 = sphi 0, %s187
      %s191 = sphi 0, %s190
      %s207 = sphi 0, %s191
      %s213 = sphi 0, %s215
      %s216 = sphi 0, %s213
      %s217 = sphi 0, %s216
      %s233 = sphi 0, %s217
      %s239 = sphi 0, %s241
      %s242 = sphi 0, %s239
      %s243 = sphi 0, %s242
      %s259 = sphi 0, %s243
      %s265 = sphi 0, %s267
      %s268 = sphi 0, %s265
      %s269 = sphi 0, %s268
      %s285 = sphi 0, %s269
      %s291 = sphi 0, %s293
      %s294 = sphi 0, %s291
      %s295 = sphi 0, %s294
      %s311 = sphi 0, %s295
      %s317 = sphi 0, %s319
      %s320 = sphi 0, %s317
      %s321 = sphi 0, %s320
      %s337 = sphi 0, %s321
      %s341 = sphi 0, %s341
      %s343 = sphi 0, %s341
      %s344 = sphi 0, %s343
      %s358 = sphi 0, %s344
      %s362 = sphi 0, %s362
      %s364 = sphi 0, %s362
      %s365 = sphi 0, %s364
      %s379 = sphi 0, %s365
      %s383 = sphi 0, %s383
      %s385 = sphi 0, %s383
      %s386 = sphi 0, %s385
      %s400 = sphi 0, %s386
      %s404 = sphi 0, %s404
      %s406 = sphi 0, %s404
      %s407 = sphi 0, %s406
      %s421 = sphi 0, %s407
      %s427 = sphi 0, %s429
      %s430 = sphi 0, %s427
      %s431 = sphi 0, %s430
      %s447 = sphi 0, %s431
    $region4: #{tpu_custom_call.1} parent=1 // loop_header_branch
      %38 = sbr.rel (%p36) target = $region8
    $region5: #{tpu_custom_call.1} parent=1 // loop_body
      %s40 = ssub.s32 %s35, 1
      %s41 = ssub.s32 %s35, 2
      %s48 = sadd.s32 1, %s43
      %p49 = scmp.ge.s32.totalorder %s48, 2
      %s50 = scalar_select %p49, 0, %s48
      %s51 = sadd.s32 1, %s42
      %s52 = scalar_select %p49, %s51, %s42
      %p53 = scmp.ge.s32.totalorder %s52, 2
      %s54 = scalar_select %p53, 0, %s52
      %s55 = ssub.s32 %s43, %s50
      %p56 = scmp.eq.s32.totalorder %s55, 0
      %s58 = sadd.s32 %s57, 1
      %s59 = scalar_select %p56, %s57, %s58
      %p62 = pneg %p56
      %p63 = scmp.eq.s32.totalorder %s35, 3
      %p64 = por %p62, %p63
      %p65 = scmp.ne.s32.totalorder %s57, %s60
      %p66 = scmp.eq.s32.totalorder %s35, 0
      %p67 = por %p65, %p66
      %p68 = scmp.ne.s32.totalorder %s57, %s60
      %p69 = scmp.eq.s32.totalorder %s40, 3
      %p70 = por %p68, %p69
      %p71 = scmp.ne.s32.totalorder %s60, %s61
      %p72 = scmp.eq.s32.totalorder %s40, 0
      %p73 = por %p71, %p72
      %p74 = scmp.ne.s32.totalorder %s60, %s61
      %p75 = scmp.eq.s32.totalorder %s41, 3
      %p76 = por %p74, %p75
      %p78 = scmp.ne.s32.totalorder %s61, %s77
      %p79 = scmp.eq.s32.totalorder %s41, 0
      %p80 = por %p78, %p79
      %s81 = ssub.s32 %s43, %s50
      %p82 = scmp.eq.s32.totalorder %s81, 0
      %s84 = sadd.s32 %s83, 1
      %s85 = scalar_select %p82, %s83, %s84
      %p88 = pneg %p82
      %p89 = scmp.eq.s32.totalorder %s35, 3
      %p90 = por %p88, %p89
      %p91 = scmp.ne.s32.totalorder %s83, %s86
      %p92 = scmp.eq.s32.totalorder %s35, 0
      %p93 = por %p91, %p92
      %p94 = scmp.ne.s32.totalorder %s83, %s86
      %p95 = scmp.eq.s32.totalorder %s40, 3
      %p96 = por %p94, %p95
      %p97 = scmp.ne.s32.totalorder %s86, %s87
      %p98 = scmp.eq.s32.totalorder %s40, 0
      %p99 = por %p97, %p98
      %p100 = scmp.ne.s32.totalorder %s86, %s87
      %p101 = scmp.eq.s32.totalorder %s41, 3
      %p102 = por %p100, %p101
      %p104 = scmp.ne.s32.totalorder %s87, %s103
      %p105 = scmp.eq.s32.totalorder %s41, 0
      %p106 = por %p104, %p105
      %s107 = ssub.s32 %s43, %s50
      %p108 = scmp.eq.s32.totalorder %s107, 0
      %s110 = sadd.s32 %s109, 1
      %s111 = scalar_select %p108, %s109, %s110
      %p114 = pneg %p108
      %p115 = scmp.eq.s32.totalorder %s35, 3
      %p116 = por %p114, %p115
      %p117 = scmp.ne.s32.totalorder %s109, %s112
      %p118 = scmp.eq.s32.totalorder %s35, 0
      %p119 = por %p117, %p118
      %p120 = scmp.ne.s32.totalorder %s109, %s112
      %p121 = scmp.eq.s32.totalorder %s40, 3
      %p122 = por %p120, %p121
      %p123 = scmp.ne.s32.totalorder %s112, %s113
      %p124 = scmp.eq.s32.totalorder %s40, 0
      %p125 = por %p123, %p124
      %p126 = scmp.ne.s32.totalorder %s112, %s113
      %p127 = scmp.eq.s32.totalorder %s41, 3
      %p128 = por %p126, %p127
      %p130 = scmp.ne.s32.totalorder %s113, %s129
      %p131 = scmp.eq.s32.totalorder %s41, 0
      %p132 = por %p130, %p131
      %s133 = ssub.s32 %s43, %s50
      %p134 = scmp.eq.s32.totalorder %s133, 0
      %s136 = sadd.s32 %s135, 1
      %s137 = scalar_select %p134, %s135, %s136
      %p140 = pneg %p134
      %p141 = scmp.eq.s32.totalorder %s35, 3
      %p142 = por %p140, %p141
      %p143 = scmp.ne.s32.totalorder %s135, %s138
      %p144 = scmp.eq.s32.totalorder %s35, 0
      %p145 = por %p143, %p144
      %p146 = scmp.ne.s32.totalorder %s135, %s138
      %p147 = scmp.eq.s32.totalorder %s40, 3
      %p148 = por %p146, %p147
      %p149 = scmp.ne.s32.totalorder %s138, %s139
      %p150 = scmp.eq.s32.totalorder %s40, 0
      %p151 = por %p149, %p150
      %p152 = scmp.ne.s32.totalorder %s138, %s139
      %p153 = scmp.eq.s32.totalorder %s41, 3
      %p154 = por %p152, %p153
      %p156 = scmp.ne.s32.totalorder %s139, %s155
      %p157 = scmp.eq.s32.totalorder %s41, 0
      %p158 = por %p156, %p157
      %s159 = ssub.s32 %s43, %s50
      %p160 = scmp.eq.s32.totalorder %s159, 0
      %s162 = sadd.s32 %s161, 1
      %s163 = scalar_select %p160, %s161, %s162
      %p166 = pneg %p160
      %p167 = scmp.eq.s32.totalorder %s35, 3
      %p168 = por %p166, %p167
      %p169 = scmp.ne.s32.totalorder %s161, %s164
      %p170 = scmp.eq.s32.totalorder %s35, 0
      %p171 = por %p169, %p170
      %p172 = scmp.ne.s32.totalorder %s161, %s164
      %p173 = scmp.eq.s32.totalorder %s40, 3
      %p174 = por %p172, %p173
      %p175 = scmp.ne.s32.totalorder %s164, %s165
      %p176 = scmp.eq.s32.totalorder %s40, 0
      %p177 = por %p175, %p176
      %p178 = scmp.ne.s32.totalorder %s164, %s165
      %p179 = scmp.eq.s32.totalorder %s41, 3
      %p180 = por %p178, %p179
      %p182 = scmp.ne.s32.totalorder %s165, %s181
      %p183 = scmp.eq.s32.totalorder %s41, 0
      %p184 = por %p182, %p183
      %s185 = ssub.s32 %s43, %s50
      %p186 = scmp.eq.s32.totalorder %s185, 0
      %s188 = sadd.s32 %s187, 1
      %s189 = scalar_select %p186, %s187, %s188
      %p192 = pneg %p186
      %p193 = scmp.eq.s32.totalorder %s35, 3
      %p194 = por %p192, %p193
      %p195 = scmp.ne.s32.totalorder %s187, %s190
      %p196 = scmp.eq.s32.totalorder %s35, 0
      %p197 = por %p195, %p196
      %p198 = scmp.ne.s32.totalorder %s187, %s190
      %p199 = scmp.eq.s32.totalorder %s40, 3
      %p200 = por %p198, %p199
      %p201 = scmp.ne.s32.totalorder %s190, %s191
      %p202 = scmp.eq.s32.totalorder %s40, 0
      %p203 = por %p201, %p202
      %p204 = scmp.ne.s32.totalorder %s190, %s191
      %p205 = scmp.eq.s32.totalorder %s41, 3
      %p206 = por %p204, %p205
      %p208 = scmp.ne.s32.totalorder %s191, %s207
      %p209 = scmp.eq.s32.totalorder %s41, 0
      %p210 = por %p208, %p209
      %s211 = ssub.s32 %s43, %s50
      %p212 = scmp.eq.s32.totalorder %s211, 0
      %s214 = sadd.s32 %s213, 1
      %s215 = scalar_select %p212, %s213, %s214
      %p218 = pneg %p212
      %p219 = scmp.eq.s32.totalorder %s35, 3
      %p220 = por %p218, %p219
      %p221 = scmp.ne.s32.totalorder %s213, %s216
      %p222 = scmp.eq.s32.totalorder %s35, 0
      %p223 = por %p221, %p222
      %p224 = scmp.ne.s32.totalorder %s213, %s216
      %p225 = scmp.eq.s32.totalorder %s40, 3
      %p226 = por %p224, %p225
      %p227 = scmp.ne.s32.totalorder %s216, %s217
      %p228 = scmp.eq.s32.totalorder %s40, 0
      %p229 = por %p227, %p228
      %p230 = scmp.ne.s32.totalorder %s216, %s217
      %p231 = scmp.eq.s32.totalorder %s41, 3
      %p232 = por %p230, %p231
      %p234 = scmp.ne.s32.totalorder %s217, %s233
      %p235 = scmp.eq.s32.totalorder %s41, 0
      %p236 = por %p234, %p235
      %s237 = ssub.s32 %s43, %s50
      %p238 = scmp.eq.s32.totalorder %s237, 0
      %s240 = sadd.s32 %s239, 1
      %s241 = scalar_select %p238, %s239, %s240
      %p244 = pneg %p238
      %p245 = scmp.eq.s32.totalorder %s35, 3
      %p246 = por %p244, %p245
      %p247 = scmp.ne.s32.totalorder %s239, %s242
      %p248 = scmp.eq.s32.totalorder %s35, 0
      %p249 = por %p247, %p248
      %p250 = scmp.ne.s32.totalorder %s239, %s242
      %p251 = scmp.eq.s32.totalorder %s40, 3
      %p252 = por %p250, %p251
      %p253 = scmp.ne.s32.totalorder %s242, %s243
      %p254 = scmp.eq.s32.totalorder %s40, 0
      %p255 = por %p253, %p254
      %p256 = scmp.ne.s32.totalorder %s242, %s243
      %p257 = scmp.eq.s32.totalorder %s41, 3
      %p258 = por %p256, %p257
      %p260 = scmp.ne.s32.totalorder %s243, %s259
      %p261 = scmp.eq.s32.totalorder %s41, 0
      %p262 = por %p260, %p261
      %s263 = ssub.s32 %s43, %s50
      %p264 = scmp.eq.s32.totalorder %s263, 0
      %s266 = sadd.s32 %s265, 1
      %s267 = scalar_select %p264, %s265, %s266
      %p270 = pneg %p264
      %p271 = scmp.eq.s32.totalorder %s35, 3
      %p272 = por %p270, %p271
      %p273 = scmp.ne.s32.totalorder %s265, %s268
      %p274 = scmp.eq.s32.totalorder %s35, 0
      %p275 = por %p273, %p274
      %p276 = scmp.ne.s32.totalorder %s265, %s268
      %p277 = scmp.eq.s32.totalorder %s40, 3
      %p278 = por %p276, %p277
      %p279 = scmp.ne.s32.totalorder %s268, %s269
      %p280 = scmp.eq.s32.totalorder %s40, 0
      %p281 = por %p279, %p280
      %p282 = scmp.ne.s32.totalorder %s268, %s269
      %p283 = scmp.eq.s32.totalorder %s41, 3
      %p284 = por %p282, %p283
      %p286 = scmp.ne.s32.totalorder %s269, %s285
      %p287 = scmp.eq.s32.totalorder %s41, 0
      %p288 = por %p286, %p287
      %s289 = ssub.s32 %s43, %s50
      %p290 = scmp.eq.s32.totalorder %s289, 0
      %s292 = sadd.s32 %s291, 1
      %s293 = scalar_select %p290, %s291, %s292
      %p296 = pneg %p290
      %p297 = scmp.eq.s32.totalorder %s35, 3
      %p298 = por %p296, %p297
      %p299 = scmp.ne.s32.totalorder %s291, %s294
      %p300 = scmp.eq.s32.totalorder %s35, 0
      %p301 = por %p299, %p300
      %p302 = scmp.ne.s32.totalorder %s291, %s294
      %p303 = scmp.eq.s32.totalorder %s40, 3
      %p304 = por %p302, %p303
      %p305 = scmp.ne.s32.totalorder %s294, %s295
      %p306 = scmp.eq.s32.totalorder %s40, 0
      %p307 = por %p305, %p306
      %p308 = scmp.ne.s32.totalorder %s294, %s295
      %p309 = scmp.eq.s32.totalorder %s41, 3
      %p310 = por %p308, %p309
      %p312 = scmp.ne.s32.totalorder %s295, %s311
      %p313 = scmp.eq.s32.totalorder %s41, 0
      %p314 = por %p312, %p313
      %s315 = ssub.s32 %s43, %s50
      %p316 = scmp.eq.s32.totalorder %s315, 0
      %s318 = sadd.s32 %s317, 1
      %s319 = scalar_select %p316, %s317, %s318
      %p322 = pneg %p316
      %p323 = scmp.eq.s32.totalorder %s35, 3
      %p324 = por %p322, %p323
      %p325 = scmp.ne.s32.totalorder %s317, %s320
      %p326 = scmp.eq.s32.totalorder %s35, 0
      %p327 = por %p325, %p326
      %p328 = scmp.ne.s32.totalorder %s317, %s320
      %p329 = scmp.eq.s32.totalorder %s40, 3
      %p330 = por %p328, %p329
      %p331 = scmp.ne.s32.totalorder %s320, %s321
      %p332 = scmp.eq.s32.totalorder %s40, 0
      %p333 = por %p331, %p332
      %p334 = scmp.ne.s32.totalorder %s320, %s321
      %p335 = scmp.eq.s32.totalorder %s41, 3
      %p336 = por %p334, %p335
      %p338 = scmp.ne.s32.totalorder %s321, %s337
      %p339 = scmp.eq.s32.totalorder %s41, 0
      %p340 = por %p338, %p339
      %s342 = sadd.s32 %s341, 1
      %p345 = scmp.eq.s32.totalorder %s35, 3
      %p346 = scmp.ne.s32.totalorder %s341, %s343
      %p347 = scmp.eq.s32.totalorder %s35, 0
      %p348 = por %p346, %p347
      %p349 = scmp.ne.s32.totalorder %s341, %s343
      %p350 = scmp.eq.s32.totalorder %s40, 3
      %p351 = por %p349, %p350
      %p352 = scmp.ne.s32.totalorder %s343, %s344
      %p353 = scmp.eq.s32.totalorder %s40, 0
      %p354 = por %p352, %p353
      %p355 = scmp.ne.s32.totalorder %s343, %s344
      %p356 = scmp.eq.s32.totalorder %s41, 3
      %p357 = por %p355, %p356
      %p359 = scmp.ne.s32.totalorder %s344, %s358
      %p360 = scmp.eq.s32.totalorder %s41, 0
      %p361 = por %p359, %p360
      %s363 = sadd.s32 %s362, 1
      %p366 = scmp.eq.s32.totalorder %s35, 3
      %p367 = scmp.ne.s32.totalorder %s362, %s364
      %p368 = scmp.eq.s32.totalorder %s35, 0
      %p369 = por %p367, %p368
      %p370 = scmp.ne.s32.totalorder %s362, %s364
      %p371 = scmp.eq.s32.totalorder %s40, 3
      %p372 = por %p370, %p371
      %p373 = scmp.ne.s32.totalorder %s364, %s365
      %p374 = scmp.eq.s32.totalorder %s40, 0
      %p375 = por %p373, %p374
      %p376 = scmp.ne.s32.totalorder %s364, %s365
      %p377 = scmp.eq.s32.totalorder %s41, 3
      %p378 = por %p376, %p377
      %p380 = scmp.ne.s32.totalorder %s365, %s379
      %p381 = scmp.eq.s32.totalorder %s41, 0
      %p382 = por %p380, %p381
      %s384 = sadd.s32 %s383, 1
      %p387 = scmp.eq.s32.totalorder %s35, 3
      %p388 = scmp.ne.s32.totalorder %s383, %s385
      %p389 = scmp.eq.s32.totalorder %s35, 0
      %p390 = por %p388, %p389
      %p391 = scmp.ne.s32.totalorder %s383, %s385
      %p392 = scmp.eq.s32.totalorder %s40, 3
      %p393 = por %p391, %p392
      %p394 = scmp.ne.s32.totalorder %s385, %s386
      %p395 = scmp.eq.s32.totalorder %s40, 0
      %p396 = por %p394, %p395
      %p397 = scmp.ne.s32.totalorder %s385, %s386
      %p398 = scmp.eq.s32.totalorder %s41, 3
      %p399 = por %p397, %p398
      %p401 = scmp.ne.s32.totalorder %s386, %s400
      %p402 = scmp.eq.s32.totalorder %s41, 0
      %p403 = por %p401, %p402
      %s405 = sadd.s32 %s404, 1
      %p408 = scmp.eq.s32.totalorder %s35, 3
      %p409 = scmp.ne.s32.totalorder %s404, %s406
      %p410 = scmp.eq.s32.totalorder %s35, 0
      %p411 = por %p409, %p410
      %p412 = scmp.ne.s32.totalorder %s404, %s406
      %p413 = scmp.eq.s32.totalorder %s40, 3
      %p414 = por %p412, %p413
      %p415 = scmp.ne.s32.totalorder %s406, %s407
      %p416 = scmp.eq.s32.totalorder %s40, 0
      %p417 = por %p415, %p416
      %p418 = scmp.ne.s32.totalorder %s406, %s407
      %p419 = scmp.eq.s32.totalorder %s41, 3
      %p420 = por %p418, %p419
      %p422 = scmp.ne.s32.totalorder %s407, %s421
      %p423 = scmp.eq.s32.totalorder %s41, 0
      %p424 = por %p422, %p423
      %s425 = ssub.s32 %s42, %s54
      %p426 = scmp.eq.s32.totalorder %s425, 0
      %s428 = sadd.s32 %s427, 1
      %s429 = scalar_select %p426, %s427, %s428
      %p432 = pneg %p426
      %p433 = scmp.eq.s32.totalorder %s35, 3
      %p434 = por %p432, %p433
      %p435 = scmp.ne.s32.totalorder %s427, %s430
      %p436 = scmp.eq.s32.totalorder %s35, 0
      %p437 = por %p435, %p436
      %p438 = scmp.ne.s32.totalorder %s427, %s430
      %p439 = scmp.eq.s32.totalorder %s40, 3
      %p440 = por %p438, %p439
      %p441 = scmp.ne.s32.totalorder %s430, %s431
      %p442 = scmp.eq.s32.totalorder %s40, 0
      %p443 = por %p441, %p442
      %p444 = scmp.ne.s32.totalorder %s430, %s431
      %p445 = scmp.eq.s32.totalorder %s41, 3
      %p446 = por %p444, %p445
      %p448 = scmp.ne.s32.totalorder %s431, %s447
      %p449 = scmp.eq.s32.totalorder %s41, 0
      %p450 = por %p448, %p449
      %p451 = scmp.le.s32.totalorder 1, %s35
      %p452 = scmp.lt.s32.totalorder %s35, 5
      %p453 = pnand %p451, %p452
      %p454 = pneg %p453
      // Predicated region
      $region9: #{tpu_custom_call.1} parent=5 // pred_check
        _
      $region10: #{tpu_custom_call.1} parent=5 // pred_check_branch
        %456 = sbr.rel (%p453) target = $region12
      $region11: #{tpu_custom_call.1} parent=5 // pred_region
        %s457 = ssub.s32 %s35, 1
        // Predicated region
        $region13: #{tpu_custom_call.1} parent=11 // pred_check
          %p458 = pneg %p354
        $region14: #{tpu_custom_call.1} parent=11 // pred_check_branch
          %460 = sbr.rel (%p458) target = $region16
        $region15: #{tpu_custom_call.1} parent=11 // pred_region
          _
        $region16: #{tpu_custom_call.1} parent=11 // pred_fallthru
          _
        // Predicated region
        $region17: #{tpu_custom_call.1} parent=11 // pred_check
          %p461 = pneg %p375
        $region18: #{tpu_custom_call.1} parent=11 // pred_check_branch
          %463 = sbr.rel (%p461) target = $region20
        $region19: #{tpu_custom_call.1} parent=11 // pred_region
          _
        $region20: #{tpu_custom_call.1} parent=11 // pred_fallthru
          _
        // Predicated region
        $region21: #{tpu_custom_call.1} parent=11 // pred_check
          %p464 = pneg %p396
        $region22: #{tpu_custom_call.1} parent=11 // pred_check_branch
          %466 = sbr.rel (%p464) target = $region24
        $region23: #{tpu_custom_call.1} parent=11 // pred_region
          %s468 = ssub.s32 1024, 1024
          %469 = vsyncadd [#allocation14], %s468
          %s470 = sshll.u32 [#allocation13], 4
          %s471 = int_to_ptr.vmem [resolvable:$true] %s470
          %476 = dma.hbm_to_vmem [thread:$0]  %s14, 1024, %s471, [#allocation14], 64, 64, 4
        $region24: #{tpu_custom_call.1} parent=11 // pred_fallthru
          _
        // Predicated region
        $region25: #{tpu_custom_call.1} parent=11 // pred_check
          %p477 = pneg %p417
        $region26: #{tpu_custom_call.1} parent=11 // pred_check_branch
          %479 = sbr.rel (%p477) target = $region28
        $region27: #{tpu_custom_call.1} parent=11 // pred_region
          _
        $region28: #{tpu_custom_call.1} parent=11 // pred_fallthru
          _
      $region12: #{tpu_custom_call.1} parent=5 // pred_fallthru
        _
      %p480 = scmp.lt.s32.totalorder %s35, 4
      // Predicated region
      $region29: #{tpu_custom_call.1} parent=5 // pred_check
        %p481 = pneg %p480
      $region30: #{tpu_custom_call.1} parent=5 // pred_check_branch
        %483 = sbr.rel (%p481) target = $region32
      $region31: #{tpu_custom_call.1} parent=5 // pred_region
        // Predicated region
        $region33: #{tpu_custom_call.1} parent=31 // pred_check
          %p484 = pneg %p67
        $region34: #{tpu_custom_call.1} parent=31 // pred_check_branch
          %486 = sbr.rel (%p484) target = $region36
        $region35: #{tpu_custom_call.1} parent=31 // pred_region
          %s487 = sand.u32 %s57, 1
          %s488 = scalar_lea.sflag [#allocation5], %s487
          %s489 = sand.u32 %s57, 1
          %s490 = scalar_lea.vmem [#allocation4], %s489
          %s492 = ssub.s32 16, 16
          %493 = vsyncadd %s488, %s492
          %s494 = smul.addr %s43, 16
          %s495 = scalar_lea.hbm %s1, %s494
          %s497 = sshll.u32 %s490, 4
          %s498 = int_to_ptr.vmem [resolvable:$true] %s497
          %500 = dma.hbm_to_vmem [thread:$0]  %s495, 16, %s498, %s488
        $region36: #{tpu_custom_call.1} parent=31 // pred_fallthru
          _
        // Predicated region
        $region37: #{tpu_custom_call.1} parent=31 // pred_check
          %p501 = pneg %p93
        $region38: #{tpu_custom_call.1} parent=31 // pred_check_branch
          %503 = sbr.rel (%p501) target = $region40
        $region39: #{tpu_custom_call.1} parent=31 // pred_region
          %p504 = scmp.lt.s32.totalorder %s43, 1
          %s505 = scalar_select %p504, %s43, 1
          %s506 = scalar_lea.vmem %s2, %s505
        $region40: #{tpu_custom_call.1} parent=31 // pred_fallthru
          _
        // Predicated region
        $region41: #{tpu_custom_call.1} parent=31 // pred_check
          %p507 = pneg %p119
        $region42: #{tpu_custom_call.1} parent=31 // pred_check_branch
          %509 = sbr.rel (%p507) target = $region44
        $region43: #{tpu_custom_call.1} parent=31 // pred_region
          %s510 = sand.u32 %s35, 1
          %s511 = scalar_lea.sflag [#allocation8], %s510
          %s512 = sand.u32 %s109, 1
          %s513 = smul.addr %s512, 192
          %s514 = scalar_lea.vmem [#allocation7], %s513
          %s516 = ssub.s32 3072, 3072
          %517 = vsyncadd %s511, %s516
          %s518 = smul.addr %s43, 48
          %s519 = smul.addr %s518, 64
          %s520 = scalar_lea.hbm %s3, %s519
          %s521 = sshll.u32 %s514, 4
          %s522 = int_to_ptr.vmem [resolvable:$true] %s521
          %527 = dma.hbm_to_vmem [thread:$0]  %s520, 3072, %s522, %s511, 192, 192, 12
        $region44: #{tpu_custom_call.1} parent=31 // pred_fallthru
          _
        // Predicated region
        $region45: #{tpu_custom_call.1} parent=31 // pred_check
          %p528 = pneg %p145
        $region46: #{tpu_custom_call.1} parent=31 // pred_check_branch
          %530 = sbr.rel (%p528) target = $region48
        $region47: #{tpu_custom_call.1} parent=31 // pred_region
          %s531 = sand.u32 %s35, 1
          %s532 = scalar_lea.sflag [#allocation8], %s531
          %s533 = sand.u32 %s135, 1
          %s534 = smul.addr %s533, 64
          %s535 = scalar_lea.vmem [#allocation9], %s534
          %s537 = ssub.s32 1024, 1024
          %538 = vsyncadd %s532, %s537
          %s539 = smul.addr %s43, 16
          %s540 = smul.addr %s539, 64
          %s541 = scalar_lea.hbm %s4, %s540
          %s542 = sshll.u32 %s535, 4
          %s543 = int_to_ptr.vmem [resolvable:$true] %s542
          %548 = dma.hbm_to_vmem [thread:$0]  %s541, 1024, %s543, %s532, 64, 64, 4
        $region48: #{tpu_custom_call.1} parent=31 // pred_fallthru
          _
        // Predicated region
        $region49: #{tpu_custom_call.1} parent=31 // pred_check
          %p549 = pneg %p171
        $region50: #{tpu_custom_call.1} parent=31 // pred_check_branch
          %551 = sbr.rel (%p549) target = $region52
        $region51: #{tpu_custom_call.1} parent=31 // pred_region
          %p552 = scmp.lt.s32.totalorder %s43, 1
          %s553 = scalar_select %p552, %s43, 1
          %s554 = scalar_lea.vmem %s5, %s553
        $region52: #{tpu_custom_call.1} parent=31 // pred_fallthru
          _
        // Predicated region
        $region53: #{tpu_custom_call.1} parent=31 // pred_check
          %p555 = pneg %p197
        $region54: #{tpu_custom_call.1} parent=31 // pred_check_branch
          %557 = sbr.rel (%p555) target = $region56
        $region55: #{tpu_custom_call.1} parent=31 // pred_region
          %p558 = scmp.lt.s32.totalorder %s43, 1
          %s559 = scalar_select %p558, %s43, 1
          %s560 = scalar_lea.vmem %s6, %s559
        $region56: #{tpu_custom_call.1} parent=31 // pred_fallthru
          _
        // Predicated region
        $region57: #{tpu_custom_call.1} parent=31 // pred_check
          %p561 = pneg %p223
        $region58: #{tpu_custom_call.1} parent=31 // pred_check_branch
          %563 = sbr.rel (%p561) target = $region60
        $region59: #{tpu_custom_call.1} parent=31 // pred_region
          %p564 = scmp.lt.s32.totalorder %s43, 1
          %s565 = scalar_select %p564, %s43, 1
          %s566 = scalar_lea.vmem %s7, %s565
        $region60: #{tpu_custom_call.1} parent=31 // pred_fallthru
          _
        // Predicated region
        $region61: #{tpu_custom_call.1} parent=31 // pred_check
          %p567 = pneg %p249
        $region62: #{tpu_custom_call.1} parent=31 // pred_check_branch
          %569 = sbr.rel (%p567) target = $region64
        $region63: #{tpu_custom_call.1} parent=31 // pred_region
          %s570 = sand.u32 %s35, 1
          %s571 = scalar_lea.sflag [#allocation11], %s570
          %s572 = sand.u32 %s239, 1
          %s573 = smul.addr %s572, 256
          %s574 = scalar_lea.vmem [#allocation10], %s573
          %s576 = ssub.s32 4096, 4096
          %577 = vsyncadd %s571, %s576
          %s578 = smul.addr %s43, 64
          %s579 = smul.addr %s578, 64
          %s580 = scalar_lea.hbm %s8, %s579
          %s581 = sshll.u32 %s574, 4
          %s582 = int_to_ptr.vmem [resolvable:$true] %s581
          %587 = dma.hbm_to_vmem [thread:$0]  %s580, 4096, %s582, %s571, 256, 256, 16
        $region64: #{tpu_custom_call.1} parent=31 // pred_fallthru
          _
        // Predicated region
        $region65: #{tpu_custom_call.1} parent=31 // pred_check
          %p588 = pneg %p275
        $region66: #{tpu_custom_call.1} parent=31 // pred_check_branch
          %590 = sbr.rel (%p588) target = $region68
        $region67: #{tpu_custom_call.1} parent=31 // pred_region
          %p591 = scmp.lt.s32.totalorder %s43, 1
          %s592 = scalar_select %p591, %s43, 1
          %s593 = smul.addr %s592, 4
          %s594 = scalar_lea.vmem %s9, %s593
        $region68: #{tpu_custom_call.1} parent=31 // pred_fallthru
          _
        // Predicated region
        $region69: #{tpu_custom_call.1} parent=31 // pred_check
          %p595 = pneg %p301
        $region70: #{tpu_custom_call.1} parent=31 // pred_check_branch
          %597 = sbr.rel (%p595) target = $region72
        $region71: #{tpu_custom_call.1} parent=31 // pred_region
          %s598 = sand.u32 %s35, 1
          %s599 = scalar_lea.sflag [#allocation11], %s598
          %s600 = sand.u32 %s291, 1
          %s601 = smul.addr %s600, 256
          %s602 = scalar_lea.vmem [#allocation12], %s601
          %s604 = ssub.s32 4096, 4096
          %605 = vsyncadd %s599, %s604
          %s606 = smul.addr %s43, 64
          %s607 = smul.addr %s606, 64
          %s608 = scalar_lea.hbm %s10, %s607
          %s609 = sshll.u32 %s602, 4
          %s610 = int_to_ptr.vmem [resolvable:$true] %s609
          %615 = dma.hbm_to_vmem [thread:$0]  %s608, 4096, %s610, %s599, 64, 64, 4
        $region72: #{tpu_custom_call.1} parent=31 // pred_fallthru
          _
        // Predicated region
        $region73: #{tpu_custom_call.1} parent=31 // pred_check
          %p616 = pneg %p327
        $region74: #{tpu_custom_call.1} parent=31 // pred_check_branch
          %618 = sbr.rel (%p616) target = $region76
        $region75: #{tpu_custom_call.1} parent=31 // pred_region
          %p619 = scmp.lt.s32.totalorder %s43, 1
          %s620 = scalar_select %p619, %s43, 1
          %s621 = scalar_lea.vmem %s11, %s620
        $region76: #{tpu_custom_call.1} parent=31 // pred_fallthru
          _
      $region32: #{tpu_custom_call.1} parent=5 // pred_fallthru
        _
      %p622 = scmp.le.s32.totalorder 1, %s35
      %p623 = scmp.lt.s32.totalorder %s35, 5
      %p624 = pnand %p622, %p623
      %p625 = pneg %p624
      // Predicated region
      $region77: #{tpu_custom_call.1} parent=5 // pred_check
        _
      $region78: #{tpu_custom_call.1} parent=5 // pred_check_branch
        %627 = sbr.rel (%p624) target = $region80
      $region79: #{tpu_custom_call.1} parent=5 // pred_region
        %s628 = ssub.s32 %s35, 1
        %s629 = sand.u32 %s60, 1
        %s630 = scalar_lea.sflag [#allocation5], %s629
        %s631 = sand.u32 %s60, 1
        %s632 = scalar_lea.vmem [#allocation4], %s631
        // Predicated region
        $region81: #{tpu_custom_call.1} parent=79 // pred_check
          %p633 = pneg %p73
        $region82: #{tpu_custom_call.1} parent=79 // pred_check_branch
          %635 = sbr.rel (%p633) target = $region84
        $region83: #{tpu_custom_call.1} parent=79 // pred_region
          %636 = dma.done %s630, 16
        $region84: #{tpu_custom_call.1} parent=79 // pred_fallthru
          _
        %s637 = sand.u32 %s40, 1
        %s638 = scalar_lea.sflag [#allocation8], %s637
        %s639 = sand.u32 %s112, 1
        %s640 = smul.addr %s639, 192
        %s641 = scalar_lea.vmem [#allocation7], %s640
        // Predicated region
        $region85: #{tpu_custom_call.1} parent=79 // pred_check
          %p642 = pneg %p125
        $region86: #{tpu_custom_call.1} parent=79 // pred_check_branch
          %644 = sbr.rel (%p642) target = $region88
        $region87: #{tpu_custom_call.1} parent=79 // pred_region
          %645 = dma.done %s638, 3072
        $region88: #{tpu_custom_call.1} parent=79 // pred_fallthru
          _
        %s646 = sand.u32 %s40, 1
        %s647 = scalar_lea.sflag [#allocation8], %s646
        %s648 = sand.u32 %s138, 1
        %s649 = smul.addr %s648, 64
        %s650 = scalar_lea.vmem [#allocation9], %s649
        // Predicated region
        $region89: #{tpu_custom_call.1} parent=79 // pred_check
          %p651 = pneg %p151
        $region90: #{tpu_custom_call.1} parent=79 // pred_check_branch
          %653 = sbr.rel (%p651) target = $region92
        $region91: #{tpu_custom_call.1} parent=79 // pred_region
          %654 = dma.done %s647, 1024
        $region92: #{tpu_custom_call.1} parent=79 // pred_fallthru
          _
        %s655 = sand.u32 %s40, 1
        %s656 = scalar_lea.sflag [#allocation11], %s655
        %s657 = sand.u32 %s242, 1
        %s658 = smul.addr %s657, 256
        %s659 = scalar_lea.vmem [#allocation10], %s658
        // Predicated region
        $region93: #{tpu_custom_call.1} parent=79 // pred_check
          %p660 = pneg %p255
        $region94: #{tpu_custom_call.1} parent=79 // pred_check_branch
          %662 = sbr.rel (%p660) target = $region96
        $region95: #{tpu_custom_call.1} parent=79 // pred_region
          %663 = dma.done %s656, 4096
        $region96: #{tpu_custom_call.1} parent=79 // pred_fallthru
          _
        %s664 = sand.u32 %s40, 1
        %s665 = scalar_lea.sflag [#allocation11], %s664
        %s666 = sand.u32 %s294, 1
        %s667 = smul.addr %s666, 256
        %s668 = scalar_lea.vmem [#allocation12], %s667
        // Predicated region
        $region97: #{tpu_custom_call.1} parent=79 // pred_check
          %p669 = pneg %p307
        $region98: #{tpu_custom_call.1} parent=79 // pred_check_branch
          %671 = sbr.rel (%p669) target = $region100
        $region99: #{tpu_custom_call.1} parent=79 // pred_region
          %672 = dma.done %s665, 4096
        $region100: #{tpu_custom_call.1} parent=79 // pred_fallthru
          _
        // Predicated region
        $region101: #{tpu_custom_call.1} parent=79 // pred_check
          %p673 = pneg %p396
        $region102: #{tpu_custom_call.1} parent=79 // pred_check_branch
          %675 = sbr.rel (%p673) target = $region104
        $region103: #{tpu_custom_call.1} parent=79 // pred_region
          %676 = dma.done [#allocation14], 1024
        $region104: #{tpu_custom_call.1} parent=79 // pred_fallthru
          _
        %s677 = sand.u32 %s60, 1
        %s678 = scalar_lea.sflag [#allocation5], %s677
        %s679 = sand.u32 %s60, 1
        %s680 = scalar_lea.vmem [#allocation4], %s679
        %p681 = pneg %p73
        %p682 = pneg %p70
        %p683 = scmp.lt.s32.totalorder %s45, 1
        %s684 = scalar_select %p683, %s45, 1
        %s685 = scalar_lea.vmem %s2, %s684
        %p686 = pneg %p99
        %p687 = pneg %p96
        %s688 = sand.u32 %s40, 1
        %s689 = scalar_lea.sflag [#allocation8], %s688
        %s690 = sand.u32 %s112, 1
        %s691 = smul.addr %s690, 192
        %s692 = scalar_lea.vmem [#allocation7], %s691
        %p693 = pneg %p125
        %p694 = pneg %p122
        %s695 = sand.u32 %s40, 1
        %s696 = scalar_lea.sflag [#allocation8], %s695
        %s697 = sand.u32 %s138, 1
        %s698 = smul.addr %s697, 64
        %s699 = scalar_lea.vmem [#allocation9], %s698
        %p700 = pneg %p151
        %p701 = pneg %p148
        %p702 = scmp.lt.s32.totalorder %s45, 1
        %s703 = scalar_select %p702, %s45, 1
        %s704 = scalar_lea.vmem %s5, %s703
        %p705 = pneg %p177
        %p706 = pneg %p174
        %p707 = scmp.lt.s32.totalorder %s45, 1
        %s708 = scalar_select %p707, %s45, 1
        %s709 = scalar_lea.vmem %s6, %s708
        %p710 = pneg %p203
        %p711 = pneg %p200
        %p712 = scmp.lt.s32.totalorder %s45, 1
        %s713 = scalar_select %p712, %s45, 1
        %s714 = scalar_lea.vmem %s7, %s713
        %p715 = pneg %p229
        %p716 = pneg %p226
        %s717 = sand.u32 %s40, 1
        %s718 = scalar_lea.sflag [#allocation11], %s717
        %s719 = sand.u32 %s242, 1
        %s720 = smul.addr %s719, 256
        %s721 = scalar_lea.vmem [#allocation10], %s720
        %p722 = pneg %p255
        %p723 = pneg %p252
        %p724 = scmp.lt.s32.totalorder %s45, 1
        %s725 = scalar_select %p724, %s45, 1
        %s726 = smul.addr %s725, 4
        %s727 = scalar_lea.vmem %s9, %s726
        %p728 = pneg %p281
        %p729 = pneg %p278
        %s730 = sand.u32 %s40, 1
        %s731 = scalar_lea.sflag [#allocation11], %s730
        %s732 = sand.u32 %s294, 1
        %s733 = smul.addr %s732, 256
        %s734 = scalar_lea.vmem [#allocation12], %s733
        %p735 = pneg %p307
        %p736 = pneg %p304
        %p737 = scmp.lt.s32.totalorder %s45, 1
        %s738 = scalar_select %p737, %s45, 1
        %s739 = scalar_lea.vmem %s11, %s738
        %p740 = pneg %p333
        %p741 = pneg %p330
        %p742 = pneg %p354
        %p743 = pneg %p351
        %p744 = pneg %p375
        %p745 = pneg %p372
        %p746 = pneg %p396
        %p747 = pneg %p393
        %p748 = pneg %p417
        %p749 = pneg %p414
        %p750 = pneg %p443
        %p751 = pneg %p440
        %s752 = sand.u32 %s430, 1
        %s753 = scalar_lea.sflag [#allocation6], %s752
        %s754 = sand.u32 %s430, 1
        %s755 = smul.addr %s754, 32
        %s756 = scalar_lea.vmem [#allocation15], %s755
        %p757 = scmp.lt.s32.totalorder %s45, 1
        %s758 = scalar_select %p757, %s45, 1
        %s759 = scalar_lea.vmem %s2, %s758
        %p760 = scmp.lt.s32.totalorder %s45, 1
        %s761 = scalar_select %p760, %s45, 1
        %s762 = scalar_lea.vmem %s5, %s761
        %p763 = scmp.lt.s32.totalorder %s45, 1
        %s764 = scalar_select %p763, %s45, 1
        %s765 = scalar_lea.vmem %s6, %s764
        %p766 = scmp.lt.s32.totalorder %s45, 1
        %s767 = scalar_select %p766, %s45, 1
        %s768 = scalar_lea.vmem %s7, %s767
        %p769 = scmp.lt.s32.totalorder %s45, 1
        %s770 = scalar_select %p769, %s45, 1
        %s771 = smul.addr %s770, 4
        %s772 = scalar_lea.vmem %s9, %s771
        %p773 = scmp.lt.s32.totalorder %s45, 1
        %s774 = scalar_select %p773, %s45, 1
        %s775 = scalar_lea.vmem %s11, %s774
        %s776 = smul.u32 4, %s44
        %p778 = scmp.eq.s32.totalorder %s45, 0
        // Predicated region
        $region105: #{tpu_custom_call.1} parent=79 // pred_check
          %p779 = pneg %p778
        $region106: #{tpu_custom_call.1} parent=79 // pred_check_branch
          %781 = sbr.rel (%p779) target = $region108
        $region107: #{tpu_custom_call.1} parent=79 // pred_region
          %s782 = smul.u32 %s44, 32
          $region109: #{tpu_custom_call.1} parent=107
            #allocation16 [shape = 's32[1]{0}', space=sflag, size = 0x4, scoped, tag = 'scoped memory for tpu_custom_call.1']
            %s783 = smul.addr %s782, 16
            %s784 = scalar_lea.hbm %s0, %s783
            // Predicated region
            $region110: #{tpu_custom_call.1} parent=109 // pred_check
              _
            $region111: #{tpu_custom_call.1} parent=109 // pred_check_branch
              %786 = sbr.rel target = $region113
            $region112: #{tpu_custom_call.1} parent=109 // pred_region
              %787 = sst [smem:[#allocation19]] [#allocation18]
              %788 = sst [smem:[#allocation20]] [#allocation17]
            $region113: #{tpu_custom_call.1} parent=109 // pred_fallthru
              _
            %790 = shalt.err (0)
            %s792 = sshll.u32 [#allocation2], 4
            %s793 = int_to_ptr.vmem [resolvable:$true] %s792
            %795 = dma.hbm_to_vmem [thread:$0]  %s784, 512, %s793, [#allocation16]
            %s796 = smul.u32 32, 1
            %s797 = sshll.u32 %s796, 4
            %798 = dma.done [#allocation16], %s797
          %v799 = vlaneseq
          %v800 = vshrl.u32 %v799, 7
          %v801 = vadd.s32 %v800, 8
          %v802 = vlaneseq
          %v803 = vand.u32 %v802, 127
          %vm804 = vcmp.le.s32.totalorder %v803, %v800
          %vm805 = vcmp.le.s32.totalorder %v803, %v801
          %v806 = vsel %vm804, 0.0, -1e+30
          %v807 = vsel %vm805, 0.0, -1e+30
          %vm808 = vcmask 130048
          %809 = vst.msk [vmem:[#allocation3] sm:$0xff] %vm808, %v806
          %810 = vst.msk [vmem:[#allocation3 + $0x8] sm:$0xff] %vm808, %v807
        $region108: #{tpu_custom_call.1} parent=79 // pred_fallthru
          _
        %v811 = vld [vmem:[#allocation2] sm:$0xff]
        %v812 = vld [vmem:[#allocation2 + $0x8] sm:$0xff]
        %v813 = vld [vmem:[#allocation2 + $0x10] sm:$0xff]
        %v814 = vld [vmem:[#allocation2 + $0x18] sm:$0xff]
        %v815 = vld [vmem:[%s632] sm:$0x1]
        %v816 = vld [vmem:[%s759] sm:$0x1]
        %817 = vadd.xlane.f32.xlu0 %v811
        %v818 = vpop.xlane.xlu0 %817
        %819 = vadd.xlane.f32.xlu0 %v812
        %v820 = vpop.xlane.xlu0 %819
        %821 = vadd.xlane.f32.xlu0 %v813
        %v822 = vpop.xlane.xlu0 %821
        %823 = vadd.xlane.f32.xlu0 %v814
        %v824 = vpop.xlane.xlu0 %823
        %v825 = vmul.f32 %v811, %v811
        %v826 = vmul.f32 %v812, %v812
        %v827 = vmul.f32 %v813, %v813
        %v828 = vmul.f32 %v814, %v814
        %829 = vadd.xlane.f32.xlu0 %v825
        %v830 = vpop.xlane.xlu0 %829
        %831 = vadd.xlane.f32.xlu0 %v826
        %v832 = vpop.xlane.xlu0 %831
        %833 = vadd.xlane.f32.xlu0 %v827
        %v834 = vpop.xlane.xlu0 %833
        %835 = vadd.xlane.f32.xlu0 %v828
        %v836 = vpop.xlane.xlu0 %835
        %v837 = vmul.f32 %v818, 0.0078125
        %v838 = vmul.f32 %v820, 0.0078125
        %v839 = vmul.f32 %v822, 0.0078125
        %v840 = vmul.f32 %v824, 0.0078125
        %v841 = vmul.f32 %v830, 0.0078125
        %v842 = vmul.f32 %v832, 0.0078125
        %v843 = vmul.f32 %v834, 0.0078125
        %v844 = vmul.f32 %v836, 0.0078125
        %v845 = vmul.f32 %v837, %v837
        %v846 = vmul.f32 %v838, %v838
        %v847 = vmul.f32 %v839, %v839
        %v848 = vmul.f32 %v840, %v840
        %v849 = vsub.f32 %v841, %v845
        %v850 = vsub.f32 %v842, %v846
        %v851 = vsub.f32 %v843, %v847
        %v852 = vsub.f32 %v844, %v848
        %v853 = vsub.f32 %v811, %v837
        %v854 = vsub.f32 %v812, %v838
        %v855 = vsub.f32 %v813, %v839
        %v856 = vsub.f32 %v814, %v840
        %v857 = vadd.f32 %v849, 1e-05
        %v858 = vadd.f32 %v850, 1e-05
        %v859 = vadd.f32 %v851, 1e-05
        %v860 = vadd.f32 %v852, 1e-05
        %v861 = vrsqrt.pop %v857
        %v862 = vrsqrt.pop %v858
        %v863 = vrsqrt.pop %v859
        %v864 = vrsqrt.pop %v860
        %v865 = vmul.f32 %v853, %v861
        %v866 = vmul.f32 %v854, %v862
        %v867 = vmul.f32 %v855, %v863
        %v868 = vmul.f32 %v856, %v864
        %v870 = vlaneseq
        %v871 = vshrl.u32 %v870, 7
        %v872 = vsub.s32 0, %v871
        %v873 = vrot.slane %v815, %v872
        %v875 = vmul.f32 %v865, %v873
        %v876 = vmul.f32 %v866, %v873
        %v877 = vmul.f32 %v867, %v873
        %v878 = vmul.f32 %v868, %v873
        %v880 = vlaneseq
        %v881 = vshrl.u32 %v880, 7
        %v882 = vsub.s32 0, %v881
        %v883 = vrot.slane %v816, %v882
        %v885 = vadd.f32 %v875, %v883
        %v886 = vadd.f32 %v876, %v883
        %v887 = vadd.f32 %v877, %v883
        %v888 = vadd.f32 %v878, %v883
        %v889 = vpack.c.bf16 %v886, %v885
        %v890 = vpack.c.bf16 %v888, %v887
        %v891 = vld [vmem:[%s641] sm:$0xff]
        %v892 = vld [vmem:[%s641 + $0x8] sm:$0xf]
        %v893 = vld [vmem:[%s641 + $0xc] sm:$0xff]
        %v894 = vld [vmem:[%s641 + $0x14] sm:$0xf]
        %v895 = vld [vmem:[%s641 + $0x18] sm:$0xff]
        %v896 = vld [vmem:[%s641 + $0x20] sm:$0xf]
        %v897 = vld [vmem:[%s641 + $0x24] sm:$0xff]
        %v898 = vld [vmem:[%s641 + $0x2c] sm:$0xf]
        %v899 = vld [vmem:[%s641 + $0x30] sm:$0xff]
        %v900 = vld [vmem:[%s641 + $0x38] sm:$0xf]
        %v901 = vld [vmem:[%s641 + $0x3c] sm:$0xff]
        %v902 = vld [vmem:[%s641 + $0x44] sm:$0xf]
        %v903 = vld [vmem:[%s641 + $0x48] sm:$0xff]
        %v904 = vld [vmem:[%s641 + $0x50] sm:$0xf]
        %v905 = vld [vmem:[%s641 + $0x54] sm:$0xff]
        %v906 = vld [vmem:[%s641 + $0x5c] sm:$0xf]
        %v907 = vld [vmem:[%s641 + $0x60] sm:$0xff]
        %v908 = vld [vmem:[%s641 + $0x68] sm:$0xf]
        %v909 = vld [vmem:[%s641 + $0x6c] sm:$0xff]
        %v910 = vld [vmem:[%s641 + $0x74] sm:$0xf]
        %v911 = vld [vmem:[%s641 + $0x78] sm:$0xff]
        %v912 = vld [vmem:[%s641 + $0x80] sm:$0xf]
        %v913 = vld [vmem:[%s641 + $0x84] sm:$0xff]
        %v914 = vld [vmem:[%s641 + $0x8c] sm:$0xf]
        %v915 = vld [vmem:[%s641 + $0x90] sm:$0xff]
        %v916 = vld [vmem:[%s641 + $0x98] sm:$0xf]
        %v917 = vld [vmem:[%s641 + $0x9c] sm:$0xff]
        %v918 = vld [vmem:[%s641 + $0xa4] sm:$0xf]
        %v919 = vld [vmem:[%s641 + $0xa8] sm:$0xff]
        %v920 = vld [vmem:[%s641 + $0xb0] sm:$0xf]
        %v921 = vld [vmem:[%s641 + $0xb4] sm:$0xff]
        %v922 = vld [vmem:[%s641 + $0xbc] sm:$0xf]
        %v955 = vunpack.c.l.b16 %v891
        %v956 = vunpack.c.h.b16 %v891
        %v957 = vunpack.c.l.b16 %v892
        %v958 = vunpack.c.l.b16 %v893
        %v959 = vunpack.c.h.b16 %v893
        %v960 = vunpack.c.l.b16 %v894
        %v961 = vunpack.c.l.b16 %v895
        %v962 = vunpack.c.h.b16 %v895
        %v963 = vunpack.c.l.b16 %v896
        %v964 = vunpack.c.l.b16 %v897
        %v965 = vunpack.c.h.b16 %v897
        %v966 = vunpack.c.l.b16 %v898
        %v967 = vunpack.c.l.b16 %v899
        %v968 = vunpack.c.h.b16 %v899
        %v969 = vunpack.c.l.b16 %v900
        %v970 = vunpack.c.l.b16 %v901
        %v971 = vunpack.c.h.b16 %v901
        %v972 = vunpack.c.l.b16 %v902
        %v973 = vunpack.c.l.b16 %v903
        %v974 = vunpack.c.h.b16 %v903
        %v975 = vunpack.c.l.b16 %v904
        %v976 = vunpack.c.l.b16 %v905
        %v977 = vunpack.c.h.b16 %v905
        %v978 = vunpack.c.l.b16 %v906
        %v979 = vunpack.c.l.b16 %v907
        %v980 = vunpack.c.h.b16 %v907
        %v981 = vunpack.c.l.b16 %v908
        %v982 = vunpack.c.l.b16 %v909
        %v983 = vunpack.c.h.b16 %v909
        %v984 = vunpack.c.l.b16 %v910
        %v985 = vunpack.c.l.b16 %v911
        %v986 = vunpack.c.h.b16 %v911
        %v987 = vunpack.c.l.b16 %v912
        %v988 = vunpack.c.l.b16 %v913
        %v989 = vunpack.c.h.b16 %v913
        %v990 = vunpack.c.l.b16 %v914
        %v991 = vunpack.c.l.b16 %v915
        %v992 = vunpack.c.h.b16 %v915
        %v993 = vunpack.c.l.b16 %v916
        %v994 = vunpack.c.l.b16 %v917
        %v995 = vunpack.c.h.b16 %v917
        %v996 = vunpack.c.l.b16 %v918
        %v997 = vunpack.c.l.b16 %v919
        %v998 = vunpack.c.h.b16 %v919
        %v999 = vunpack.c.l.b16 %v920
        %v1000 = vunpack.c.l.b16 %v921
        %v1001 = vunpack.c.h.b16 %v921
        %v1002 = vunpack.c.l.b16 %v922
        %v1003 = vpack.c.b16 %v958, %v955
        %v1004 = vpack.c.b16 %v959, %v956
        %v1005 = vpack.c.b16 %v960, %v957
        %v1006 = vpack.c.b16 %v964, %v961
        %v1007 = vpack.c.b16 %v965, %v962
        %v1008 = vpack.c.b16 %v966, %v963
        %v1009 = vpack.c.b16 %v970, %v967
        %v1010 = vpack.c.b16 %v971, %v968
        %v1011 = vpack.c.b16 %v972, %v969
        %v1012 = vpack.c.b16 %v976, %v973
        %v1013 = vpack.c.b16 %v977, %v974
        %v1014 = vpack.c.b16 %v978, %v975
        %v1015 = vpack.c.b16 %v982, %v979
        %v1016 = vpack.c.b16 %v983, %v980
        %v1017 = vpack.c.b16 %v984, %v981
        %v1018 = vpack.c.b16 %v988, %v985
        %v1019 = vpack.c.b16 %v989, %v986
        %v1020 = vpack.c.b16 %v990, %v987
        %v1021 = vpack.c.b16 %v994, %v991
        %v1022 = vpack.c.b16 %v995, %v992
        %v1023 = vpack.c.b16 %v996, %v993
        %v1024 = vpack.c.b16 %v1000, %v997
        %v1025 = vpack.c.b16 %v1001, %v998
        %v1026 = vpack.c.b16 %v1002, %v999
        %1051 = vmatprep.subr.bf16.mxu0 %v1025
        %1052 = vmatpush1.bf16.msra.mxu0 %v1024
        %1053 = vmatprep.subr.bf16.mxu0 %v1022
        %1054 = vmatpush1.bf16.msra.mxu0 %v1021
        %1055 = vmatprep.subr.bf16.mxu0 %v1019
        %1056 = vmatpush1.bf16.msra.mxu0 %v1018
        %1057 = vmatprep.subr.bf16.mxu0 %v1016
        %1058 = vmatpush1.bf16.msra.mxu0 %v1015
        %1059 = vmatprep.subr.bf16.mxu0 %v1013
        %1060 = vmatpush1.bf16.msra.mxu0 %v1012
        %1061 = vmatprep.subr.bf16.mxu0 %v1010
        %1062 = vmatpush1.bf16.msra.mxu0 %v1009
        %1063 = vmatprep.subr.bf16.mxu0 %v1007
        %1064 = vmatpush1.bf16.msra.mxu0 %v1006
        %1065 = vmatprep.subr.bf16.mxu0 %v1004
        %1066 = vmatpush1.bf16.msra.mxu0 %v1003
        %1067 = vmatprep.subr.bf16.mxu0 0
        %1068 = vmatpush2.bf16.msra.mxu0 0
        %1069 = vmatprep.subr.bf16.mxu0 0
        %1070 = vmatpush2.bf16.msra.mxu0 0
        %1071 = vmatprep.subr.bf16.mxu0 0
        %1072 = vmatpush2.bf16.msra.mxu0 0
        %1073 = vmatprep.subr.bf16.mxu0 0
        %1074 = vmatpush2.bf16.msra.mxu0 0
        %1075 = vmatprep.subr.bf16.mxu0 0
        %1076 = vmatpush2.bf16.msra.mxu0 0
        %1077 = vmatprep.subr.bf16.mxu0 0
        %1078 = vmatpush2.bf16.msra.mxu0 0
        %1079 = vmatprep.subr.bf16.mxu0 0
        %1080 = vmatpush2.bf16.msra.mxu0 0
        %1081 = vmatprep.subr.bf16.mxu0 0
        %1082 = vmatpush2.bf16.msra.mxu0 0
        %1083 = vmatprep.mubr.bf16.mxu0 0
        %1084 = vmatmul.mubr.bf16.gmra.mxu0 %v889
        %v1085 = vpop.f32.mrf.mxu0
        %v1086 = vadd.f32 0.0, %v1085
        %v1087 = vpop.f32.mrf.mxu0
        %v1088 = vadd.f32 0.0, %v1087
        %v1089 = vpop.f32.mrf.mxu0
        %v1090 = vadd.f32 0.0, %v1089
        %v1091 = vpop.f32.mrf.mxu0
        %v1092 = vadd.f32 0.0, %v1091
        %1093 = vmatprep.mubr.bf16.mxu0 0
        %1094 = vmatmul.mubr.bf16.gmra.mxu0 %v890
        %v1095 = vpop.f32.mrf.mxu0
        %v1096 = vadd.f32 0.0, %v1095
        %v1097 = vpop.f32.mrf.mxu0
        %v1098 = vadd.f32 0.0, %v1097
        %v1099 = vpop.f32.mrf.mxu0
        %v1100 = vadd.f32 0.0, %v1099
        %v1101 = vpop.f32.mrf.mxu0
        %v1102 = vadd.f32 0.0, %v1101
        %1103 = vdwg.mxu0
        %1104 = vmatprep.subr.bf16.mxu0 0
        %1105 = vmatpush1.bf16.msra.mxu0 %v1026
        %1106 = vmatprep.subr.bf16.mxu0 0
        %1107 = vmatpush1.bf16.msra.mxu0 %v1023
        %1108 = vmatprep.subr.bf16.mxu0 0
        %1109 = vmatpush1.bf16.msra.mxu0 %v1020
        %1110 = vmatprep.subr.bf16.mxu0 0
        %1111 = vmatpush1.bf16.msra.mxu0 %v1017
        %1112 = vmatprep.subr.bf16.mxu0 0
        %1113 = vmatpush1.bf16.msra.mxu0 %v1014
        %1114 = vmatprep.subr.bf16.mxu0 0
        %1115 = vmatpush1.bf16.msra.mxu0 %v1011
        %1116 = vmatprep.subr.bf16.mxu0 0
        %1117 = vmatpush1.bf16.msra.mxu0 %v1008
        %1118 = vmatprep.subr.bf16.mxu0 0
        %1119 = vmatpush1.bf16.msra.mxu0 %v1005
        %1120 = vmatprep.subr.bf16.mxu0 0
        %1121 = vmatpush2.bf16.msra.mxu0 0
        %1122 = vmatprep.subr.bf16.mxu0 0
        %1123 = vmatpush2.bf16.msra.mxu0 0
        %1124 = vmatprep.subr.bf16.mxu0 0
        %1125 = vmatpush2.bf16.msra.mxu0 0
        %1126 = vmatprep.subr.bf16.mxu0 0
        %1127 = vmatpush2.bf16.msra.mxu0 0
        %1128 = vmatprep.subr.bf16.mxu0 0
        %1129 = vmatpush2.bf16.msra.mxu0 0
        %1130 = vmatprep.subr.bf16.mxu0 0
        %1131 = vmatpush2.bf16.msra.mxu0 0
        %1132 = vmatprep.subr.bf16.mxu0 0
        %1133 = vmatpush2.bf16.msra.mxu0 0
        %1134 = vmatprep.subr.bf16.mxu0 0
        %1135 = vmatpush2.bf16.msra.mxu0 0
        %1136 = vmatprep.mubr.bf16.mxu0 0
        %1137 = vmatmul.mubr.bf16.gmra.mxu0 %v889
        %v1138 = vpop.f32.mrf.mxu0
        %v1139 = vadd.f32 0.0, %v1138
        %v1140 = vpop.f32.mrf.mxu0
        %v1141 = vpop.f32.mrf.mxu0
        %v1142 = vadd.f32 0.0, %v1141
        %v1143 = vpop.f32.mrf.mxu0
        %1144 = vmatprep.mubr.bf16.mxu0 0
        %1145 = vmatmul.mubr.bf16.gmra.mxu0 %v890
        %v1146 = vpop.f32.mrf.mxu0
        %v1147 = vadd.f32 0.0, %v1146
        %v1148 = vpop.f32.mrf.mxu0
        %v1149 = vpop.f32.mrf.mxu0
        %v1150 = vadd.f32 0.0, %v1149
        %v1151 = vpop.f32.mrf.mxu0
        %1152 = vdwg.mxu0
        %v1153 = vpack.c.bf16 %v1090, %v1086
        %v1154 = vpack.c.bf16 %v1092, %v1088
        %v1155 = vpack.c.bf16 %v1142, %v1139
        %v1156 = vpack.c.bf16 %v1100, %v1096
        %v1157 = vpack.c.bf16 %v1102, %v1098
        %v1158 = vpack.c.bf16 %v1150, %v1147
        %1161 = vrot.lane.b32.xlu0 %v1153, 96
        %v1162 = vpop.permute.xlu0 %1161
        %1163 = vrot.lane.b32.xlu0 %v1156, 96
        %v1164 = vpop.permute.xlu0 %1163
        %1165 = vrot.lane.b32.xlu0 %v1153, 64
        %v1166 = vpop.permute.xlu0 %1165
        %1167 = vrot.lane.b32.xlu0 %v1156, 64
        %v1168 = vpop.permute.xlu0 %1167
        %1169 = vrot.lane.b32.xlu0 %v1153, 32
        %v1170 = vpop.permute.xlu0 %1169
        %1171 = vrot.lane.b32.xlu0 %v1156, 32
        %v1172 = vpop.permute.xlu0 %1171
        %1175 = vrot.lane.b32.xlu0 %v1154, 96
        %v1176 = vpop.permute.xlu0 %1175
        %1177 = vrot.lane.b32.xlu0 %v1157, 96
        %v1178 = vpop.permute.xlu0 %1177
        %1179 = vrot.lane.b32.xlu0 %v1154, 64
        %v1180 = vpop.permute.xlu0 %1179
        %1181 = vrot.lane.b32.xlu0 %v1157, 64
        %v1182 = vpop.permute.xlu0 %1181
        %1183 = vrot.lane.b32.xlu0 %v1154, 32
        %v1184 = vpop.permute.xlu0 %1183
        %1185 = vrot.lane.b32.xlu0 %v1157, 32
        %v1186 = vpop.permute.xlu0 %1185
        %1189 = vrot.lane.b32.xlu0 %v1155, 96
        %v1190 = vpop.permute.xlu0 %1189
        %1191 = vrot.lane.b32.xlu0 %v1158, 96
        %v1192 = vpop.permute.xlu0 %1191
        %1195 = vrot.lane.b32.xlu0 %v1155, 64
        %v1196 = vpop.permute.xlu0 %1195
        %1197 = vrot.lane.b32.xlu0 %v1158, 64
        %v1198 = vpop.permute.xlu0 %1197
        %1201 = vrot.lane.b32.xlu0 %v1155, 32
        %v1202 = vpop.permute.xlu0 %1201
        %1203 = vrot.lane.b32.xlu0 %v1158, 32
        %v1204 = vpop.permute.xlu0 %1203
        %v1207 = vld [vmem:[#allocation3] sm:$0xff]
        %v1208 = vld [vmem:[#allocation3 + $0x8] sm:$0xff]
        %vm1209 = vcmask 261120
        %v1211 = vsel %vm1209, %v1153, 0
        %v1214 = vsel %vm1209, %v1154, 0
        %1216 = vmatprep.subr.bf16.mxu0 0
        %1217 = vmatpush1.bf16.xpose.msra.mxu0 0
        %1218 = vmatprep.subr.bf16.mxu0 0
        %1219 = vmatpush1.bf16.xpose.msra.mxu0 0
        %1220 = vmatprep.subr.bf16.mxu0 0
        %1221 = vmatpush1.bf16.xpose.msra.mxu0 0
        %1222 = vmatprep.subr.bf16.mxu0 0
        %1223 = vmatpush1.bf16.xpose.msra.mxu0 0
        %1224 = vmatprep.subr.bf16.mxu0 0
        %1225 = vmatpush1.bf16.xpose.msra.mxu0 0
        %1226 = vmatprep.subr.bf16.mxu0 0
        %1227 = vmatpush1.bf16.xpose.msra.mxu0 0
        %1228 = vmatprep.subr.bf16.mxu0 0
        %1229 = vmatpush1.bf16.xpose.msra.mxu0 0
        %1230 = vmatprep.subr.bf16.mxu0 0
        %1231 = vmatpush1.bf16.xpose.msra.mxu0 %v1214
        %1232 = vmatprep.subr.bf16.mxu0 0
        %1233 = vmatpush2.bf16.xpose.msra.mxu0 0
        %1234 = vmatprep.subr.bf16.mxu0 0
        %1235 = vmatpush2.bf16.xpose.msra.mxu0 0
        %1236 = vmatprep.subr.bf16.mxu0 0
        %1237 = vmatpush2.bf16.xpose.msra.mxu0 0
        %1238 = vmatprep.subr.bf16.mxu0 0
        %1239 = vmatpush2.bf16.xpose.msra.mxu0 0
        %1240 = vmatprep.subr.bf16.mxu0 0
        %1241 = vmatpush2.bf16.xpose.msra.mxu0 0
        %1242 = vmatprep.subr.bf16.mxu0 0
        %1243 = vmatpush2.bf16.xpose.msra.mxu0 0
        %1244 = vmatprep.subr.bf16.mxu0 0
        %1245 = vmatpush2.bf16.xpose.msra.mxu0 0
        %1246 = vmatprep.subr.bf16.mxu0 0
        %1247 = vmatpush2.bf16.xpose.msra.mxu0 0
        %1248 = vmatprep.mubr.bf16.mxu0 0
        %1249 = vmatmul.mubr.bf16.gmra.mxu0 %v1211
        %v1250 = vpop.f32.mrf.mxu0
        %v1251 = vadd.f32 %v1207, %v1250
        %v1252 = vpop.f32.mrf.mxu0
        %v1253 = vpop.f32.mrf.mxu0
        %v1254 = vadd.f32 %v1208, %v1253
        %v1255 = vpop.f32.mrf.mxu0
        %1256 = vdwg.mxu0
        %v1258 = vsel %vm1209, %v1156, 0
        %v1261 = vsel %vm1209, %v1157, 0
        %1263 = vmatprep.subr.bf16.mxu0 0
        %1264 = vmatpush1.bf16.xpose.msra.mxu0 0
        %1265 = vmatprep.subr.bf16.mxu0 0
        %1266 = vmatpush1.bf16.xpose.msra.mxu0 0
        %1267 = vmatprep.subr.bf16.mxu0 0
        %1268 = vmatpush1.bf16.xpose.msra.mxu0 0
        %1269 = vmatprep.subr.bf16.mxu0 0
        %1270 = vmatpush1.bf16.xpose.msra.mxu0 0
        %1271 = vmatprep.subr.bf16.mxu0 0
        %1272 = vmatpush1.bf16.xpose.msra.mxu0 0
        %1273 = vmatprep.subr.bf16.mxu0 0
        %1274 = vmatpush1.bf16.xpose.msra.mxu0 0
        %1275 = vmatprep.subr.bf16.mxu0 0
        %1276 = vmatpush1.bf16.xpose.msra.mxu0 0
        %1277 = vmatprep.subr.bf16.mxu0 0
        %1278 = vmatpush1.bf16.xpose.msra.mxu0 %v1261
        %1279 = vmatprep.subr.bf16.mxu0 0
        %1280 = vmatpush2.bf16.xpose.msra.mxu0 0
        %1281 = vmatprep.subr.bf16.mxu0 0
        %1282 = vmatpush2.bf16.xpose.msra.mxu0 0
        %1283 = vmatprep.subr.bf16.mxu0 0
        %1284 = vmatpush2.bf16.xpose.msra.mxu0 0
        %1285 = vmatprep.subr.bf16.mxu0 0
        %1286 = vmatpush2.bf16.xpose.msra.mxu0 0
        %1287 = vmatprep.subr.bf16.mxu0 0
        %1288 = vmatpush2.bf16.xpose.msra.mxu0 0
        %1289 = vmatprep.subr.bf16.mxu0 0
        %1290 = vmatpush2.bf16.xpose.msra.mxu0 0
        %1291 = vmatprep.subr.bf16.mxu0 0
        %1292 = vmatpush2.bf16.xpose.msra.mxu0 0
        %1293 = vmatprep.subr.bf16.mxu0 0
        %1294 = vmatpush2.bf16.xpose.msra.mxu0 0
        %1295 = vmatprep.mubr.bf16.mxu0 0
        %1296 = vmatmul.mubr.bf16.gmra.mxu0 %v1258
        %v1297 = vpop.f32.mrf.mxu0
        %v1298 = vadd.f32 %v1207, %v1297
        %v1299 = vpop.f32.mrf.mxu0
        %v1300 = vpop.f32.mrf.mxu0
        %v1301 = vadd.f32 %v1208, %v1300
        %v1302 = vpop.f32.mrf.mxu0
        %1303 = vdwg.mxu0
        %v1305 = vsel %vm1209, %v1162, 0
        %v1308 = vsel %vm1209, %v1176, 0
        %1310 = vmatprep.subr.bf16.mxu0 0
        %1311 = vmatpush1.bf16.xpose.msra.mxu0 0
        %1312 = vmatprep.subr.bf16.mxu0 0
        %1313 = vmatpush1.bf16.xpose.msra.mxu0 0
        %1314 = vmatprep.subr.bf16.mxu0 0
        %1315 = vmatpush1.bf16.xpose.msra.mxu0 0
        %1316 = vmatprep.subr.bf16.mxu0 0
        %1317 = vmatpush1.bf16.xpose.msra.mxu0 0
        %1318 = vmatprep.subr.bf16.mxu0 0
        %1319 = vmatpush1.bf16.xpose.msra.mxu0 0
        %1320 = vmatprep.subr.bf16.mxu0 0
        %1321 = vmatpush1.bf16.xpose.msra.mxu0 0
        %1322 = vmatprep.subr.bf16.mxu0 0
        %1323 = vmatpush1.bf16.xpose.msra.mxu0 0
        %1324 = vmatprep.subr.bf16.mxu0 0
        %1325 = vmatpush1.bf16.xpose.msra.mxu0 %v1308
        %1326 = vmatprep.subr.bf16.mxu0 0
        %1327 = vmatpush2.bf16.xpose.msra.mxu0 0
        %1328 = vmatprep.subr.bf16.mxu0 0
        %1329 = vmatpush2.bf16.xpose.msra.mxu0 0
        %1330 = vmatprep.subr.bf16.mxu0 0
        %1331 = vmatpush2.bf16.xpose.msra.mxu0 0
        %1332 = vmatprep.subr.bf16.mxu0 0
        %1333 = vmatpush2.bf16.xpose.msra.mxu0 0
        %1334 = vmatprep.subr.bf16.mxu0 0
        %1335 = vmatpush2.bf16.xpose.msra.mxu0 0
        %1336 = vmatprep.subr.bf16.mxu0 0
        %1337 = vmatpush2.bf16.xpose.msra.mxu0 0
        %1338 = vmatprep.subr.bf16.mxu0 0
        %1339 = vmatpush2.bf16.xpose.msra.mxu0 0
        %1340 = vmatprep.subr.bf16.mxu0 0
        %1341 = vmatpush2.bf16.xpose.msra.mxu0 0
        %1342 = vmatprep.mubr.bf16.mxu0 0
        %1343 = vmatmul.mubr.bf16.gmra.mxu0 %v1305
        %v1344 = vpop.f32.mrf.mxu0
        %v1345 = vadd.f32 %v1207, %v1344
        %v1346 = vpop.f32.mrf.mxu0
        %v1347 = vpop.f32.mrf.mxu0
        %v1348 = vadd.f32 %v1208, %v1347
        %v1349 = vpop.f32.mrf.mxu0
        %1350 = vdwg.mxu0
        %v1352 = vsel %vm1209, %v1164, 0
        %v1355 = vsel %vm1209, %v1178, 0
        %1357 = vmatprep.subr.bf16.mxu0 0
        %1358 = vmatpush1.bf16.xpose.msra.mxu0 0
        %1359 = vmatprep.subr.bf16.mxu0 0
        %1360 = vmatpush1.bf16.xpose.msra.mxu0 0
        %1361 = vmatprep.subr.bf16.mxu0 0
        %1362 = vmatpush1.bf16.xpose.msra.mxu0 0
        %1363 = vmatprep.subr.bf16.mxu0 0
        %1364 = vmatpush1.bf16.xpose.msra.mxu0 0
        %1365 = vmatprep.subr.bf16.mxu0 0
        %1366 = vmatpush1.bf16.xpose.msra.mxu0 0
        %1367 = vmatprep.subr.bf16.mxu0 0
        %1368 = vmatpush1.bf16.xpose.msra.mxu0 0
        %1369 = vmatprep.subr.bf16.mxu0 0
        %1370 = vmatpush1.bf16.xpose.msra.mxu0 0
        %1371 = vmatprep.subr.bf16.mxu0 0
        %1372 = vmatpush1.bf16.xpose.msra.mxu0 %v1355
        %1373 = vmatprep.subr.bf16.mxu0 0
        %1374 = vmatpush2.bf16.xpose.msra.mxu0 0
        %1375 = vmatprep.subr.bf16.mxu0 0
        %1376 = vmatpush2.bf16.xpose.msra.mxu0 0
        %1377 = vmatprep.subr.bf16.mxu0 0
        %1378 = vmatpush2.bf16.xpose.msra.mxu0 0
        %1379 = vmatprep.subr.bf16.mxu0 0
        %1380 = vmatpush2.bf16.xpose.msra.mxu0 0
        %1381 = vmatprep.subr.bf16.mxu0 0
        %1382 = vmatpush2.bf16.xpose.msra.mxu0 0
        %1383 = vmatprep.subr.bf16.mxu0 0
        %1384 = vmatpush2.bf16.xpose.msra.mxu0 0
        %1385 = vmatprep.subr.bf16.mxu0 0
        %1386 = vmatpush2.bf16.xpose.msra.mxu0 0
        %1387 = vmatprep.subr.bf16.mxu0 0
        %1388 = vmatpush2.bf16.xpose.msra.mxu0 0
        %1389 = vmatprep.mubr.bf16.mxu0 0
        %1390 = vmatmul.mubr.bf16.gmra.mxu0 %v1352
        %v1391 = vpop.f32.mrf.mxu0
        %v1392 = vadd.f32 %v1207, %v1391
        %v1393 = vpop.f32.mrf.mxu0
        %v1394 = vpop.f32.mrf.mxu0
        %v1395 = vadd.f32 %v1208, %v1394
        %v1396 = vpop.f32.mrf.mxu0
        %1397 = vdwg.mxu0
        %v1399 = vsel %vm1209, %v1166, 0
        %v1402 = vsel %vm1209, %v1180, 0
        %1404 = vmatprep.subr.bf16.mxu0 0
        %1405 = vmatpush1.bf16.xpose.msra.mxu0 0
        %1406 = vmatprep.subr.bf16.mxu0 0
        %1407 = vmatpush1.bf16.xpose.msra.mxu0 0
        %1408 = vmatprep.subr.bf16.mxu0 0
        %1409 = vmatpush1.bf16.xpose.msra.mxu0 0
        %1410 = vmatprep.subr.bf16.mxu0 0
        %1411 = vmatpush1.bf16.xpose.msra.mxu0 0
        %1412 = vmatprep.subr.bf16.mxu0 0
        %1413 = vmatpush1.bf16.xpose.msra.mxu0 0
        %1414 = vmatprep.subr.bf16.mxu0 0
        %1415 = vmatpush1.bf16.xpose.msra.mxu0 0
        %1416 = vmatprep.subr.bf16.mxu0 0
        %1417 = vmatpush1.bf16.xpose.msra.mxu0 0
        %1418 = vmatprep.subr.bf16.mxu0 0
        %1419 = vmatpush1.bf16.xpose.msra.mxu0 %v1402
        %1420 = vmatprep.subr.bf16.mxu0 0
        %1421 = vmatpush2.bf16.xpose.msra.mxu0 0
        %1422 = vmatprep.subr.bf16.mxu0 0
        %1423 = vmatpush2.bf16.xpose.msra.mxu0 0
        %1424 = vmatprep.subr.bf16.mxu0 0
        %1425 = vmatpush2.bf16.xpose.msra.mxu0 0
        %1426 = vmatprep.subr.bf16.mxu0 0
        %1427 = vmatpush2.bf16.xpose.msra.mxu0 0
        %1428 = vmatprep.subr.bf16.mxu0 0
        %1429 = vmatpush2.bf16.xpose.msra.mxu0 0
        %1430 = vmatprep.subr.bf16.mxu0 0
        %1431 = vmatpush2.bf16.xpose.msra.mxu0 0
        %1432 = vmatprep.subr.bf16.mxu0 0
        %1433 = vmatpush2.bf16.xpose.msra.mxu0 0
        %1434 = vmatprep.subr.bf16.mxu0 0
        %1435 = vmatpush2.bf16.xpose.msra.mxu0 0
        %1436 = vmatprep.mubr.bf16.mxu0 0
        %1437 = vmatmul.mubr.bf16.gmra.mxu0 %v1399
        %v1438 = vpop.f32.mrf.mxu0
        %v1439 = vadd.f32 %v1207, %v1438
        %v1440 = vpop.f32.mrf.mxu0
        %v1441 = vpop.f32.mrf.mxu0
        %v1442 = vadd.f32 %v1208, %v1441
        %v1443 = vpop.f32.mrf.mxu0
        %1444 = vdwg.mxu0
        %v1446 = vsel %vm1209, %v1168, 0
        %v1449 = vsel %vm1209, %v1182, 0
        %1451 = vmatprep.subr.bf16.mxu0 0
        %1452 = vmatpush1.bf16.xpose.msra.mxu0 0
        %1453 = vmatprep.subr.bf16.mxu0 0
        %1454 = vmatpush1.bf16.xpose.msra.mxu0 0
        %1455 = vmatprep.subr.bf16.mxu0 0
        %1456 = vmatpush1.bf16.xpose.msra.mxu0 0
        %1457 = vmatprep.subr.bf16.mxu0 0
        %1458 = vmatpush1.bf16.xpose.msra.mxu0 0
        %1459 = vmatprep.subr.bf16.mxu0 0
        %1460 = vmatpush1.bf16.xpose.msra.mxu0 0
        %1461 = vmatprep.subr.bf16.mxu0 0
        %1462 = vmatpush1.bf16.xpose.msra.mxu0 0
        %1463 = vmatprep.subr.bf16.mxu0 0
        %1464 = vmatpush1.bf16.xpose.msra.mxu0 0
        %1465 = vmatprep.subr.bf16.mxu0 0
        %1466 = vmatpush1.bf16.xpose.msra.mxu0 %v1449
        %1467 = vmatprep.subr.bf16.mxu0 0
        %1468 = vmatpush2.bf16.xpose.msra.mxu0 0
        %1469 = vmatprep.subr.bf16.mxu0 0
        %1470 = vmatpush2.bf16.xpose.msra.mxu0 0
        %1471 = vmatprep.subr.bf16.mxu0 0
        %1472 = vmatpush2.bf16.xpose.msra.mxu0 0
        %1473 = vmatprep.subr.bf16.mxu0 0
        %1474 = vmatpush2.bf16.xpose.msra.mxu0 0
        %1475 = vmatprep.subr.bf16.mxu0 0
        %1476 = vmatpush2.bf16.xpose.msra.mxu0 0
        %1477 = vmatprep.subr.bf16.mxu0 0
        %1478 = vmatpush2.bf16.xpose.msra.mxu0 0
        %1479 = vmatprep.subr.bf16.mxu0 0
        %1480 = vmatpush2.bf16.xpose.msra.mxu0 0
        %1481 = vmatprep.subr.bf16.mxu0 0
        %1482 = vmatpush2.bf16.xpose.msra.mxu0 0
        %1483 = vmatprep.mubr.bf16.mxu0 0
        %1484 = vmatmul.mubr.bf16.gmra.mxu0 %v1446
        %v1485 = vpop.f32.mrf.mxu0
        %v1486 = vadd.f32 %v1207, %v1485
        %v1487 = vpop.f32.mrf.mxu0
        %v1488 = vpop.f32.mrf.mxu0
        %v1489 = vadd.f32 %v1208, %v1488
        %v1490 = vpop.f32.mrf.mxu0
        %1491 = vdwg.mxu0
        %v1493 = vsel %vm1209, %v1170, 0
        %v1496 = vsel %vm1209, %v1184, 0
        %1498 = vmatprep.subr.bf16.mxu0 0
        %1499 = vmatpush1.bf16.xpose.msra.mxu0 0
        %1500 = vmatprep.subr.bf16.mxu0 0
        %1501 = vmatpush1.bf16.xpose.msra.mxu0 0
        %1502 = vmatprep.subr.bf16.mxu0 0
        %1503 = vmatpush1.bf16.xpose.msra.mxu0 0
        %1504 = vmatprep.subr.bf16.mxu0 0
        %1505 = vmatpush1.bf16.xpose.msra.mxu0 0
        %1506 = vmatprep.subr.bf16.mxu0 0
        %1507 = vmatpush1.bf16.xpose.msra.mxu0 0
        %1508 = vmatprep.subr.bf16.mxu0 0
        %1509 = vmatpush1.bf16.xpose.msra.mxu0 0
        %1510 = vmatprep.subr.bf16.mxu0 0
        %1511 = vmatpush1.bf16.xpose.msra.mxu0 0
        %1512 = vmatprep.subr.bf16.mxu0 0
        %1513 = vmatpush1.bf16.xpose.msra.mxu0 %v1496
        %1514 = vmatprep.subr.bf16.mxu0 0
        %1515 = vmatpush2.bf16.xpose.msra.mxu0 0
        %1516 = vmatprep.subr.bf16.mxu0 0
        %1517 = vmatpush2.bf16.xpose.msra.mxu0 0
        %1518 = vmatprep.subr.bf16.mxu0 0
        %1519 = vmatpush2.bf16.xpose.msra.mxu0 0
        %1520 = vmatprep.subr.bf16.mxu0 0
        %1521 = vmatpush2.bf16.xpose.msra.mxu0 0
        %1522 = vmatprep.subr.bf16.mxu0 0
        %1523 = vmatpush2.bf16.xpose.msra.mxu0 0
        %1524 = vmatprep.subr.bf16.mxu0 0
        %1525 = vmatpush2.bf16.xpose.msra.mxu0 0
        %1526 = vmatprep.subr.bf16.mxu0 0
        %1527 = vmatpush2.bf16.xpose.msra.mxu0 0
        %1528 = vmatprep.subr.bf16.mxu0 0
        %1529 = vmatpush2.bf16.xpose.msra.mxu0 0
        %1530 = vmatprep.mubr.bf16.mxu0 0
        %1531 = vmatmul.mubr.bf16.gmra.mxu0 %v1493
        %v1532 = vpop.f32.mrf.mxu0
        %v1533 = vadd.f32 %v1207, %v1532
        %v1534 = vpop.f32.mrf.mxu0
        %v1535 = vpop.f32.mrf.mxu0
        %v1536 = vadd.f32 %v1208, %v1535
        %v1537 = vpop.f32.mrf.mxu0
        %1538 = vdwg.mxu0
        %v1540 = vsel %vm1209, %v1172, 0
        %v1543 = vsel %vm1209, %v1186, 0
        %1545 = vmatprep.subr.bf16.mxu0 0
        %1546 = vmatpush1.bf16.xpose.msra.mxu0 0
        %1547 = vmatprep.subr.bf16.mxu0 0
        %1548 = vmatpush1.bf16.xpose.msra.mxu0 0
        %1549 = vmatprep.subr.bf16.mxu0 0
        %1550 = vmatpush1.bf16.xpose.msra.mxu0 0
        %1551 = vmatprep.subr.bf16.mxu0 0
        %1552 = vmatpush1.bf16.xpose.msra.mxu0 0
        %1553 = vmatprep.subr.bf16.mxu0 0
        %1554 = vmatpush1.bf16.xpose.msra.mxu0 0
        %1555 = vmatprep.subr.bf16.mxu0 0
        %1556 = vmatpush1.bf16.xpose.msra.mxu0 0
        %1557 = vmatprep.subr.bf16.mxu0 0
        %1558 = vmatpush1.bf16.xpose.msra.mxu0 0
        %1559 = vmatprep.subr.bf16.mxu0 0
        %1560 = vmatpush1.bf16.xpose.msra.mxu0 %v1543
        %1561 = vmatprep.subr.bf16.mxu0 0
        %1562 = vmatpush2.bf16.xpose.msra.mxu0 0
        %1563 = vmatprep.subr.bf16.mxu0 0
        %1564 = vmatpush2.bf16.xpose.msra.mxu0 0
        %1565 = vmatprep.subr.bf16.mxu0 0
        %1566 = vmatpush2.bf16.xpose.msra.mxu0 0
        %1567 = vmatprep.subr.bf16.mxu0 0
        %1568 = vmatpush2.bf16.xpose.msra.mxu0 0
        %1569 = vmatprep.subr.bf16.mxu0 0
        %1570 = vmatpush2.bf16.xpose.msra.mxu0 0
        %1571 = vmatprep.subr.bf16.mxu0 0
        %1572 = vmatpush2.bf16.xpose.msra.mxu0 0
        %1573 = vmatprep.subr.bf16.mxu0 0
        %1574 = vmatpush2.bf16.xpose.msra.mxu0 0
        %1575 = vmatprep.subr.bf16.mxu0 0
        %1576 = vmatpush2.bf16.xpose.msra.mxu0 0
        %1577 = vmatprep.mubr.bf16.mxu0 0
        %1578 = vmatmul.mubr.bf16.gmra.mxu0 %v1540
        %v1579 = vpop.f32.mrf.mxu0
        %v1580 = vadd.f32 %v1207, %v1579
        %v1581 = vpop.f32.mrf.mxu0
        %v1582 = vpop.f32.mrf.mxu0
        %v1583 = vadd.f32 %v1208, %v1582
        %v1584 = vpop.f32.mrf.mxu0
        %1585 = vdwg.mxu0
        %vm1586 = vcmask 130048
        %v1587 = vsel %vm1586, %v1251, -inf
        %1588 = vmax.xlane.f32.xlu0 %v1587
        %v1589 = vpop.xlane.xlu0 %1588
        %v1590 = vsel %vm1586, %v1254, -inf
        %1591 = vmax.xlane.f32.xlu0 %v1590
        %v1592 = vpop.xlane.xlu0 %1591
        %v1593 = vsel %vm1586, %v1298, -inf
        %1594 = vmax.xlane.f32.xlu0 %v1593
        %v1595 = vpop.xlane.xlu0 %1594
        %v1596 = vsel %vm1586, %v1301, -inf
        %1597 = vmax.xlane.f32.xlu0 %v1596
        %v1598 = vpop.xlane.xlu0 %1597
        %v1599 = vsel %vm1586, %v1345, -inf
        %1600 = vmax.xlane.f32.xlu0 %v1599
        %v1601 = vpop.xlane.xlu0 %1600
        %v1602 = vsel %vm1586, %v1348, -inf
        %1603 = vmax.xlane.f32.xlu0 %v1602
        %v1604 = vpop.xlane.xlu0 %1603
        %v1605 = vsel %vm1586, %v1392, -inf
        %1606 = vmax.xlane.f32.xlu0 %v1605
        %v1607 = vpop.xlane.xlu0 %1606
        %v1608 = vsel %vm1586, %v1395, -inf
        %1609 = vmax.xlane.f32.xlu0 %v1608
        %v1610 = vpop.xlane.xlu0 %1609
        %v1611 = vsel %vm1586, %v1439, -inf
        %1612 = vmax.xlane.f32.xlu0 %v1611
        %v1613 = vpop.xlane.xlu0 %1612
        %v1614 = vsel %vm1586, %v1442, -inf
        %1615 = vmax.xlane.f32.xlu0 %v1614
        %v1616 = vpop.xlane.xlu0 %1615
        %v1617 = vsel %vm1586, %v1486, -inf
        %1618 = vmax.xlane.f32.xlu0 %v1617
        %v1619 = vpop.xlane.xlu0 %1618
        %v1620 = vsel %vm1586, %v1489, -inf
        %1621 = vmax.xlane.f32.xlu0 %v1620
        %v1622 = vpop.xlane.xlu0 %1621
        %v1623 = vsel %vm1586, %v1533, -inf
        %1624 = vmax.xlane.f32.xlu0 %v1623
        %v1625 = vpop.xlane.xlu0 %1624
        %v1626 = vsel %vm1586, %v1536, -inf
        %1627 = vmax.xlane.f32.xlu0 %v1626
        %v1628 = vpop.xlane.xlu0 %1627
        %v1629 = vsel %vm1586, %v1580, -inf
        %1630 = vmax.xlane.f32.xlu0 %v1629
        %v1631 = vpop.xlane.xlu0 %1630
        %v1632 = vsel %vm1586, %v1583, -inf
        %1633 = vmax.xlane.f32.xlu0 %v1632
        %v1634 = vpop.xlane.xlu0 %1633
        %v1635 = vsub.f32 %v1251, %v1589
        %v1636 = vsub.f32 %v1254, %v1592
        %v1637 = vsub.f32 %v1298, %v1595
        %v1638 = vsub.f32 %v1301, %v1598
        %v1639 = vsub.f32 %v1345, %v1601
        %v1640 = vsub.f32 %v1348, %v1604
        %v1641 = vsub.f32 %v1392, %v1607
        %v1642 = vsub.f32 %v1395, %v1610
        %v1643 = vsub.f32 %v1439, %v1613
        %v1644 = vsub.f32 %v1442, %v1616
        %v1645 = vsub.f32 %v1486, %v1619
        %v1646 = vsub.f32 %v1489, %v1622
        %v1647 = vsub.f32 %v1533, %v1625
        %v1648 = vsub.f32 %v1536, %v1628
        %v1649 = vsub.f32 %v1580, %v1631
        %v1650 = vsub.f32 %v1583, %v1634
        %v1651 = vmul.f32 %v1635, 1.442695
        %v1652 = vpow.pop %v1651
        %v1653 = vmul.f32 %v1636, 1.442695
        %v1654 = vpow.pop %v1653
        %v1655 = vmul.f32 %v1637, 1.442695
        %v1656 = vpow.pop %v1655
        %v1657 = vmul.f32 %v1638, 1.442695
        %v1658 = vpow.pop %v1657
        %v1659 = vmul.f32 %v1639, 1.442695
        %v1660 = vpow.pop %v1659
        %v1661 = vmul.f32 %v1640, 1.442695
        %v1662 = vpow.pop %v1661
        %v1663 = vmul.f32 %v1641, 1.442695
        %v1664 = vpow.pop %v1663
        %v1665 = vmul.f32 %v1642, 1.442695
        %v1666 = vpow.pop %v1665
        %v1667 = vmul.f32 %v1643, 1.442695
        %v1668 = vpow.pop %v1667
        %v1669 = vmul.f32 %v1644, 1.442695
        %v1670 = vpow.pop %v1669
        %v1671 = vmul.f32 %v1645, 1.442695
        %v1672 = vpow.pop %v1671
        %v1673 = vmul.f32 %v1646, 1.442695
        %v1674 = vpow.pop %v1673
        %v1675 = vmul.f32 %v1647, 1.442695
        %v1676 = vpow.pop %v1675
        %v1677 = vmul.f32 %v1648, 1.442695
        %v1678 = vpow.pop %v1677
        %v1679 = vmul.f32 %v1649, 1.442695
        %v1680 = vpow.pop %v1679
        %v1681 = vmul.f32 %v1650, 1.442695
        %v1682 = vpow.pop %v1681
        %v1683 = vsel %vm1586, %v1652, 0.0
        %1684 = vadd.xlane.f32.xlu0 %v1683
        %v1685 = vpop.xlane.xlu0 %1684
        %v1686 = vsel %vm1586, %v1654, 0.0
        %1687 = vadd.xlane.f32.xlu0 %v1686
        %v1688 = vpop.xlane.xlu0 %1687
        %v1689 = vsel %vm1586, %v1656, 0.0
        %1690 = vadd.xlane.f32.xlu0 %v1689
        %v1691 = vpop.xlane.xlu0 %1690
        %v1692 = vsel %vm1586, %v1658, 0.0
        %1693 = vadd.xlane.f32.xlu0 %v1692
        %v1694 = vpop.xlane.xlu0 %1693
        %v1695 = vsel %vm1586, %v1660, 0.0
        %1696 = vadd.xlane.f32.xlu0 %v1695
        %v1697 = vpop.xlane.xlu0 %1696
        %v1698 = vsel %vm1586, %v1662, 0.0
        %1699 = vadd.xlane.f32.xlu0 %v1698
        %v1700 = vpop.xlane.xlu0 %1699
        %v1701 = vsel %vm1586, %v1664, 0.0
        %1702 = vadd.xlane.f32.xlu0 %v1701
        %v1703 = vpop.xlane.xlu0 %1702
        %v1704 = vsel %vm1586, %v1666, 0.0
        %1705 = vadd.xlane.f32.xlu0 %v1704
        %v1706 = vpop.xlane.xlu0 %1705
        %v1707 = vsel %vm1586, %v1668, 0.0
        %1708 = vadd.xlane.f32.xlu0 %v1707
        %v1709 = vpop.xlane.xlu0 %1708
        %v1710 = vsel %vm1586, %v1670, 0.0
        %1711 = vadd.xlane.f32.xlu0 %v1710
        %v1712 = vpop.xlane.xlu0 %1711
        %v1713 = vsel %vm1586, %v1672, 0.0
        %1714 = vadd.xlane.f32.xlu0 %v1713
        %v1715 = vpop.xlane.xlu0 %1714
        %v1716 = vsel %vm1586, %v1674, 0.0
        %1717 = vadd.xlane.f32.xlu0 %v1716
        %v1718 = vpop.xlane.xlu0 %1717
        %v1719 = vsel %vm1586, %v1676, 0.0
        %1720 = vadd.xlane.f32.xlu0 %v1719
        %v1721 = vpop.xlane.xlu0 %1720
        %v1722 = vsel %vm1586, %v1678, 0.0
        %1723 = vadd.xlane.f32.xlu0 %v1722
        %v1724 = vpop.xlane.xlu0 %1723
        %v1725 = vsel %vm1586, %v1680, 0.0
        %1726 = vadd.xlane.f32.xlu0 %v1725
        %v1727 = vpop.xlane.xlu0 %1726
        %v1728 = vsel %vm1586, %v1682, 0.0
        %1729 = vadd.xlane.f32.xlu0 %v1728
        %v1730 = vpop.xlane.xlu0 %1729
        %v1731 = vrcp.pop %v1685
        %v1732 = vrcp.pop %v1688
        %v1733 = vrcp.pop %v1691
        %v1734 = vrcp.pop %v1694
        %v1735 = vrcp.pop %v1697
        %v1736 = vrcp.pop %v1700
        %v1737 = vrcp.pop %v1703
        %v1738 = vrcp.pop %v1706
        %v1739 = vrcp.pop %v1709
        %v1740 = vrcp.pop %v1712
        %v1741 = vrcp.pop %v1715
        %v1742 = vrcp.pop %v1718
        %v1743 = vrcp.pop %v1721
        %v1744 = vrcp.pop %v1724
        %v1745 = vrcp.pop %v1727
        %v1746 = vrcp.pop %v1730
        %v1747 = vmul.f32 %v1652, %v1731
        %v1748 = vmul.f32 %v1654, %v1732
        %v1749 = vmul.f32 %v1656, %v1733
        %v1750 = vmul.f32 %v1658, %v1734
        %v1751 = vmul.f32 %v1660, %v1735
        %v1752 = vmul.f32 %v1662, %v1736
        %v1753 = vmul.f32 %v1664, %v1737
        %v1754 = vmul.f32 %v1666, %v1738
        %v1755 = vmul.f32 %v1668, %v1739
        %v1756 = vmul.f32 %v1670, %v1740
        %v1757 = vmul.f32 %v1672, %v1741
        %v1758 = vmul.f32 %v1674, %v1742
        %v1759 = vmul.f32 %v1676, %v1743
        %v1760 = vmul.f32 %v1678, %v1744
        %v1761 = vmul.f32 %v1680, %v1745
        %v1762 = vmul.f32 %v1682, %v1746
        %v1763 = vpack.c.bf16 %v1748, %v1747
        %v1764 = vpack.c.bf16 %v1750, %v1749
        %v1765 = vpack.c.bf16 %v1752, %v1751
        %v1766 = vpack.c.bf16 %v1754, %v1753
        %v1767 = vpack.c.bf16 %v1756, %v1755
        %v1768 = vpack.c.bf16 %v1758, %v1757
        %v1769 = vpack.c.bf16 %v1760, %v1759
        %v1770 = vpack.c.bf16 %v1762, %v1761
        %v1772 = vsel %vm1586, %v1763, 0
        %1774 = vmatprep.subr.bf16.mxu0 0
        %1775 = vmatpush1.bf16.msra.mxu0 0
        %1776 = vmatprep.subr.bf16.mxu0 0
        %1777 = vmatpush1.bf16.msra.mxu0 0
        %1778 = vmatprep.subr.bf16.mxu0 0
        %1779 = vmatpush1.bf16.msra.mxu0 0
        %1780 = vmatprep.subr.bf16.mxu0 0
        %1781 = vmatpush1.bf16.msra.mxu0 0
        %1782 = vmatprep.subr.bf16.mxu0 0
        %1783 = vmatpush1.bf16.msra.mxu0 0
        %1784 = vmatprep.subr.bf16.mxu0 0
        %1785 = vmatpush1.bf16.msra.mxu0 0
        %1786 = vmatprep.subr.bf16.mxu0 0
        %1787 = vmatpush1.bf16.msra.mxu0 0
        %1788 = vmatprep.subr.bf16.mxu0 0
        %1789 = vmatpush1.bf16.msra.mxu0 %v1155
        %1790 = vmatprep.subr.bf16.mxu0 0
        %1791 = vmatpush2.bf16.msra.mxu0 0
        %1792 = vmatprep.subr.bf16.mxu0 0
        %1793 = vmatpush2.bf16.msra.mxu0 0
        %1794 = vmatprep.subr.bf16.mxu0 0
        %1795 = vmatpush2.bf16.msra.mxu0 0
        %1796 = vmatprep.subr.bf16.mxu0 0
        %1797 = vmatpush2.bf16.msra.mxu0 0
        %1798 = vmatprep.subr.bf16.mxu0 0
        %1799 = vmatpush2.bf16.msra.mxu0 0
        %1800 = vmatprep.subr.bf16.mxu0 0
        %1801 = vmatpush2.bf16.msra.mxu0 0
        %1802 = vmatprep.subr.bf16.mxu0 0
        %1803 = vmatpush2.bf16.msra.mxu0 0
        %1804 = vmatprep.subr.bf16.mxu0 0
        %1805 = vmatpush2.bf16.msra.mxu0 0
        %1806 = vmatprep.mubr.bf16.mxu0 0
        %1807 = vmatmul.mubr.bf16.gmra.mxu0 %v1772
        %v1808 = vpop.f32.mrf.mxu0
        %v1809 = vadd.f32 0.0, %v1808
        %v1810 = vpop.f32.mrf.mxu0
        %v1811 = vpop.f32.mrf.mxu0
        %v1812 = vadd.f32 0.0, %v1811
        %v1813 = vpop.f32.mrf.mxu0
        %1814 = vdwg.mxu0
        %v1816 = vsel %vm1586, %v1764, 0
        %1818 = vmatprep.subr.bf16.mxu0 0
        %1819 = vmatpush1.bf16.msra.mxu0 0
        %1820 = vmatprep.subr.bf16.mxu0 0
        %1821 = vmatpush1.bf16.msra.mxu0 0
        %1822 = vmatprep.subr.bf16.mxu0 0
        %1823 = vmatpush1.bf16.msra.mxu0 0
        %1824 = vmatprep.subr.bf16.mxu0 0
        %1825 = vmatpush1.bf16.msra.mxu0 0
        %1826 = vmatprep.subr.bf16.mxu0 0
        %1827 = vmatpush1.bf16.msra.mxu0 0
        %1828 = vmatprep.subr.bf16.mxu0 0
        %1829 = vmatpush1.bf16.msra.mxu0 0
        %1830 = vmatprep.subr.bf16.mxu0 0
        %1831 = vmatpush1.bf16.msra.mxu0 0
        %1832 = vmatprep.subr.bf16.mxu0 0
        %1833 = vmatpush1.bf16.msra.mxu0 %v1158
        %1834 = vmatprep.subr.bf16.mxu0 0
        %1835 = vmatpush2.bf16.msra.mxu0 0
        %1836 = vmatprep.subr.bf16.mxu0 0
        %1837 = vmatpush2.bf16.msra.mxu0 0
        %1838 = vmatprep.subr.bf16.mxu0 0
        %1839 = vmatpush2.bf16.msra.mxu0 0
        %1840 = vmatprep.subr.bf16.mxu0 0
        %1841 = vmatpush2.bf16.msra.mxu0 0
        %1842 = vmatprep.subr.bf16.mxu0 0
        %1843 = vmatpush2.bf16.msra.mxu0 0
        %1844 = vmatprep.subr.bf16.mxu0 0
        %1845 = vmatpush2.bf16.msra.mxu0 0
        %1846 = vmatprep.subr.bf16.mxu0 0
        %1847 = vmatpush2.bf16.msra.mxu0 0
        %1848 = vmatprep.subr.bf16.mxu0 0
        %1849 = vmatpush2.bf16.msra.mxu0 0
        %1850 = vmatprep.mubr.bf16.mxu0 0
        %1851 = vmatmul.mubr.bf16.gmra.mxu0 %v1816
        %v1852 = vpop.f32.mrf.mxu0
        %v1853 = vadd.f32 0.0, %v1852
        %v1854 = vpop.f32.mrf.mxu0
        %v1855 = vpop.f32.mrf.mxu0
        %v1856 = vadd.f32 0.0, %v1855
        %v1857 = vpop.f32.mrf.mxu0
        %1858 = vdwg.mxu0
        %v1860 = vsel %vm1586, %v1765, 0
        %1862 = vmatprep.subr.bf16.mxu0 0
        %1863 = vmatpush1.bf16.msra.mxu0 0
        %1864 = vmatprep.subr.bf16.mxu0 0
        %1865 = vmatpush1.bf16.msra.mxu0 0
        %1866 = vmatprep.subr.bf16.mxu0 0
        %1867 = vmatpush1.bf16.msra.mxu0 0
        %1868 = vmatprep.subr.bf16.mxu0 0
        %1869 = vmatpush1.bf16.msra.mxu0 0
        %1870 = vmatprep.subr.bf16.mxu0 0
        %1871 = vmatpush1.bf16.msra.mxu0 0
        %1872 = vmatprep.subr.bf16.mxu0 0
        %1873 = vmatpush1.bf16.msra.mxu0 0
        %1874 = vmatprep.subr.bf16.mxu0 0
        %1875 = vmatpush1.bf16.msra.mxu0 0
        %1876 = vmatprep.subr.bf16.mxu0 0
        %1877 = vmatpush1.bf16.msra.mxu0 %v1190
        %1878 = vmatprep.subr.bf16.mxu0 0
        %1879 = vmatpush2.bf16.msra.mxu0 0
        %1880 = vmatprep.subr.bf16.mxu0 0
        %1881 = vmatpush2.bf16.msra.mxu0 0
        %1882 = vmatprep.subr.bf16.mxu0 0
        %1883 = vmatpush2.bf16.msra.mxu0 0
        %1884 = vmatprep.subr.bf16.mxu0 0
        %1885 = vmatpush2.bf16.msra.mxu0 0
        %1886 = vmatprep.subr.bf16.mxu0 0
        %1887 = vmatpush2.bf16.msra.mxu0 0
        %1888 = vmatprep.subr.bf16.mxu0 0
        %1889 = vmatpush2.bf16.msra.mxu0 0
        %1890 = vmatprep.subr.bf16.mxu0 0
        %1891 = vmatpush2.bf16.msra.mxu0 0
        %1892 = vmatprep.subr.bf16.mxu0 0
        %1893 = vmatpush2.bf16.msra.mxu0 0
        %1894 = vmatprep.mubr.bf16.mxu0 0
        %1895 = vmatmul.mubr.bf16.gmra.mxu0 %v1860
        %v1896 = vpop.f32.mrf.mxu0
        %v1897 = vadd.f32 0.0, %v1896
        %v1898 = vpop.f32.mrf.mxu0
        %v1899 = vpop.f32.mrf.mxu0
        %v1900 = vadd.f32 0.0, %v1899
        %v1901 = vpop.f32.mrf.mxu0
        %1902 = vdwg.mxu0
        %v1904 = vsel %vm1586, %v1766, 0
        %1906 = vmatprep.subr.bf16.mxu0 0
        %1907 = vmatpush1.bf16.msra.mxu0 0
        %1908 = vmatprep.subr.bf16.mxu0 0
        %1909 = vmatpush1.bf16.msra.mxu0 0
        %1910 = vmatprep.subr.bf16.mxu0 0
        %1911 = vmatpush1.bf16.msra.mxu0 0
        %1912 = vmatprep.subr.bf16.mxu0 0
        %1913 = vmatpush1.bf16.msra.mxu0 0
        %1914 = vmatprep.subr.bf16.mxu0 0
        %1915 = vmatpush1.bf16.msra.mxu0 0
        %1916 = vmatprep.subr.bf16.mxu0 0
        %1917 = vmatpush1.bf16.msra.mxu0 0
        %1918 = vmatprep.subr.bf16.mxu0 0
        %1919 = vmatpush1.bf16.msra.mxu0 0
        %1920 = vmatprep.subr.bf16.mxu0 0
        %1921 = vmatpush1.bf16.msra.mxu0 %v1192
        %1922 = vmatprep.subr.bf16.mxu0 0
        %1923 = vmatpush2.bf16.msra.mxu0 0
        %1924 = vmatprep.subr.bf16.mxu0 0
        %1925 = vmatpush2.bf16.msra.mxu0 0
        %1926 = vmatprep.subr.bf16.mxu0 0
        %1927 = vmatpush2.bf16.msra.mxu0 0
        %1928 = vmatprep.subr.bf16.mxu0 0
        %1929 = vmatpush2.bf16.msra.mxu0 0
        %1930 = vmatprep.subr.bf16.mxu0 0
        %1931 = vmatpush2.bf16.msra.mxu0 0
        %1932 = vmatprep.subr.bf16.mxu0 0
        %1933 = vmatpush2.bf16.msra.mxu0 0
        %1934 = vmatprep.subr.bf16.mxu0 0
        %1935 = vmatpush2.bf16.msra.mxu0 0
        %1936 = vmatprep.subr.bf16.mxu0 0
        %1937 = vmatpush2.bf16.msra.mxu0 0
        %1938 = vmatprep.mubr.bf16.mxu0 0
        %1939 = vmatmul.mubr.bf16.gmra.mxu0 %v1904
        %v1940 = vpop.f32.mrf.mxu0
        %v1941 = vadd.f32 0.0, %v1940
        %v1942 = vpop.f32.mrf.mxu0
        %v1943 = vpop.f32.mrf.mxu0
        %v1944 = vadd.f32 0.0, %v1943
        %v1945 = vpop.f32.mrf.mxu0
        %1946 = vdwg.mxu0
        %v1948 = vsel %vm1586, %v1767, 0
        %1950 = vmatprep.subr.bf16.mxu0 0
        %1951 = vmatpush1.bf16.msra.mxu0 0
        %1952 = vmatprep.subr.bf16.mxu0 0
        %1953 = vmatpush1.bf16.msra.mxu0 0
        %1954 = vmatprep.subr.bf16.mxu0 0
        %1955 = vmatpush1.bf16.msra.mxu0 0
        %1956 = vmatprep.subr.bf16.mxu0 0
        %1957 = vmatpush1.bf16.msra.mxu0 0
        %1958 = vmatprep.subr.bf16.mxu0 0
        %1959 = vmatpush1.bf16.msra.mxu0 0
        %1960 = vmatprep.subr.bf16.mxu0 0
        %1961 = vmatpush1.bf16.msra.mxu0 0
        %1962 = vmatprep.subr.bf16.mxu0 0
        %1963 = vmatpush1.bf16.msra.mxu0 0
        %1964 = vmatprep.subr.bf16.mxu0 0
        %1965 = vmatpush1.bf16.msra.mxu0 %v1196
        %1966 = vmatprep.subr.bf16.mxu0 0
        %1967 = vmatpush2.bf16.msra.mxu0 0
        %1968 = vmatprep.subr.bf16.mxu0 0
        %1969 = vmatpush2.bf16.msra.mxu0 0
        %1970 = vmatprep.subr.bf16.mxu0 0
        %1971 = vmatpush2.bf16.msra.mxu0 0
        %1972 = vmatprep.subr.bf16.mxu0 0
        %1973 = vmatpush2.bf16.msra.mxu0 0
        %1974 = vmatprep.subr.bf16.mxu0 0
        %1975 = vmatpush2.bf16.msra.mxu0 0
        %1976 = vmatprep.subr.bf16.mxu0 0
        %1977 = vmatpush2.bf16.msra.mxu0 0
        %1978 = vmatprep.subr.bf16.mxu0 0
        %1979 = vmatpush2.bf16.msra.mxu0 0
        %1980 = vmatprep.subr.bf16.mxu0 0
        %1981 = vmatpush2.bf16.msra.mxu0 0
        %1982 = vmatprep.mubr.bf16.mxu0 0
        %1983 = vmatmul.mubr.bf16.gmra.mxu0 %v1948
        %v1984 = vpop.f32.mrf.mxu0
        %v1985 = vadd.f32 0.0, %v1984
        %v1986 = vpop.f32.mrf.mxu0
        %v1987 = vpop.f32.mrf.mxu0
        %v1988 = vadd.f32 0.0, %v1987
        %v1989 = vpop.f32.mrf.mxu0
        %1990 = vdwg.mxu0
        %v1992 = vsel %vm1586, %v1768, 0
        %1994 = vmatprep.subr.bf16.mxu0 0
        %1995 = vmatpush1.bf16.msra.mxu0 0
        %1996 = vmatprep.subr.bf16.mxu0 0
        %1997 = vmatpush1.bf16.msra.mxu0 0
        %1998 = vmatprep.subr.bf16.mxu0 0
        %1999 = vmatpush1.bf16.msra.mxu0 0
        %2000 = vmatprep.subr.bf16.mxu0 0
        %2001 = vmatpush1.bf16.msra.mxu0 0
        %2002 = vmatprep.subr.bf16.mxu0 0
        %2003 = vmatpush1.bf16.msra.mxu0 0
        %2004 = vmatprep.subr.bf16.mxu0 0
        %2005 = vmatpush1.bf16.msra.mxu0 0
        %2006 = vmatprep.subr.bf16.mxu0 0
        %2007 = vmatpush1.bf16.msra.mxu0 0
        %2008 = vmatprep.subr.bf16.mxu0 0
        %2009 = vmatpush1.bf16.msra.mxu0 %v1198
        %2010 = vmatprep.subr.bf16.mxu0 0
        %2011 = vmatpush2.bf16.msra.mxu0 0
        %2012 = vmatprep.subr.bf16.mxu0 0
        %2013 = vmatpush2.bf16.msra.mxu0 0
        %2014 = vmatprep.subr.bf16.mxu0 0
        %2015 = vmatpush2.bf16.msra.mxu0 0
        %2016 = vmatprep.subr.bf16.mxu0 0
        %2017 = vmatpush2.bf16.msra.mxu0 0
        %2018 = vmatprep.subr.bf16.mxu0 0
        %2019 = vmatpush2.bf16.msra.mxu0 0
        %2020 = vmatprep.subr.bf16.mxu0 0
        %2021 = vmatpush2.bf16.msra.mxu0 0
        %2022 = vmatprep.subr.bf16.mxu0 0
        %2023 = vmatpush2.bf16.msra.mxu0 0
        %2024 = vmatprep.subr.bf16.mxu0 0
        %2025 = vmatpush2.bf16.msra.mxu0 0
        %2026 = vmatprep.mubr.bf16.mxu0 0
        %2027 = vmatmul.mubr.bf16.gmra.mxu0 %v1992
        %v2028 = vpop.f32.mrf.mxu0
        %v2029 = vadd.f32 0.0, %v2028
        %v2030 = vpop.f32.mrf.mxu0
        %v2031 = vpop.f32.mrf.mxu0
        %v2032 = vadd.f32 0.0, %v2031
        %v2033 = vpop.f32.mrf.mxu0
        %2034 = vdwg.mxu0
        %v2036 = vsel %vm1586, %v1769, 0
        %2038 = vmatprep.subr.bf16.mxu0 0
        %2039 = vmatpush1.bf16.msra.mxu0 0
        %2040 = vmatprep.subr.bf16.mxu0 0
        %2041 = vmatpush1.bf16.msra.mxu0 0
        %2042 = vmatprep.subr.bf16.mxu0 0
        %2043 = vmatpush1.bf16.msra.mxu0 0
        %2044 = vmatprep.subr.bf16.mxu0 0
        %2045 = vmatpush1.bf16.msra.mxu0 0
        %2046 = vmatprep.subr.bf16.mxu0 0
        %2047 = vmatpush1.bf16.msra.mxu0 0
        %2048 = vmatprep.subr.bf16.mxu0 0
        %2049 = vmatpush1.bf16.msra.mxu0 0
        %2050 = vmatprep.subr.bf16.mxu0 0
        %2051 = vmatpush1.bf16.msra.mxu0 0
        %2052 = vmatprep.subr.bf16.mxu0 0
        %2053 = vmatpush1.bf16.msra.mxu0 %v1202
        %2054 = vmatprep.subr.bf16.mxu0 0
        %2055 = vmatpush2.bf16.msra.mxu0 0
        %2056 = vmatprep.subr.bf16.mxu0 0
        %2057 = vmatpush2.bf16.msra.mxu0 0
        %2058 = vmatprep.subr.bf16.mxu0 0
        %2059 = vmatpush2.bf16.msra.mxu0 0
        %2060 = vmatprep.subr.bf16.mxu0 0
        %2061 = vmatpush2.bf16.msra.mxu0 0
        %2062 = vmatprep.subr.bf16.mxu0 0
        %2063 = vmatpush2.bf16.msra.mxu0 0
        %2064 = vmatprep.subr.bf16.mxu0 0
        %2065 = vmatpush2.bf16.msra.mxu0 0
        %2066 = vmatprep.subr.bf16.mxu0 0
        %2067 = vmatpush2.bf16.msra.mxu0 0
        %2068 = vmatprep.subr.bf16.mxu0 0
        %2069 = vmatpush2.bf16.msra.mxu0 0
        %2070 = vmatprep.mubr.bf16.mxu0 0
        %2071 = vmatmul.mubr.bf16.gmra.mxu0 %v2036
        %v2072 = vpop.f32.mrf.mxu0
        %v2073 = vadd.f32 0.0, %v2072
        %v2074 = vpop.f32.mrf.mxu0
        %v2075 = vpop.f32.mrf.mxu0
        %v2076 = vadd.f32 0.0, %v2075
        %v2077 = vpop.f32.mrf.mxu0
        %2078 = vdwg.mxu0
        %v2080 = vsel %vm1586, %v1770, 0
        %2082 = vmatprep.subr.bf16.mxu0 0
        %2083 = vmatpush1.bf16.msra.mxu0 0
        %2084 = vmatprep.subr.bf16.mxu0 0
        %2085 = vmatpush1.bf16.msra.mxu0 0
        %2086 = vmatprep.subr.bf16.mxu0 0
        %2087 = vmatpush1.bf16.msra.mxu0 0
        %2088 = vmatprep.subr.bf16.mxu0 0
        %2089 = vmatpush1.bf16.msra.mxu0 0
        %2090 = vmatprep.subr.bf16.mxu0 0
        %2091 = vmatpush1.bf16.msra.mxu0 0
        %2092 = vmatprep.subr.bf16.mxu0 0
        %2093 = vmatpush1.bf16.msra.mxu0 0
        %2094 = vmatprep.subr.bf16.mxu0 0
        %2095 = vmatpush1.bf16.msra.mxu0 0
        %2096 = vmatprep.subr.bf16.mxu0 0
        %2097 = vmatpush1.bf16.msra.mxu0 %v1204
        %2098 = vmatprep.subr.bf16.mxu0 0
        %2099 = vmatpush2.bf16.msra.mxu0 0
        %2100 = vmatprep.subr.bf16.mxu0 0
        %2101 = vmatpush2.bf16.msra.mxu0 0
        %2102 = vmatprep.subr.bf16.mxu0 0
        %2103 = vmatpush2.bf16.msra.mxu0 0
        %2104 = vmatprep.subr.bf16.mxu0 0
        %2105 = vmatpush2.bf16.msra.mxu0 0
        %2106 = vmatprep.subr.bf16.mxu0 0
        %2107 = vmatpush2.bf16.msra.mxu0 0
        %2108 = vmatprep.subr.bf16.mxu0 0
        %2109 = vmatpush2.bf16.msra.mxu0 0
        %2110 = vmatprep.subr.bf16.mxu0 0
        %2111 = vmatpush2.bf16.msra.mxu0 0
        %2112 = vmatprep.subr.bf16.mxu0 0
        %2113 = vmatpush2.bf16.msra.mxu0 0
        %2114 = vmatprep.mubr.bf16.mxu0 0
        %2115 = vmatmul.mubr.bf16.gmra.mxu0 %v2080
        %v2116 = vpop.f32.mrf.mxu0
        %v2117 = vadd.f32 0.0, %v2116
        %v2118 = vpop.f32.mrf.mxu0
        %v2119 = vpop.f32.mrf.mxu0
        %v2120 = vadd.f32 0.0, %v2119
        %v2121 = vpop.f32.mrf.mxu0
        %2122 = vdwg.mxu0
        %v2123 = vpack.c.bf16 %v1812, %v1809
        %v2124 = vpack.c.bf16 %v1856, %v1853
        %v2125 = vld [vmem:[%s650] sm:$0xf]
        %v2126 = vld [vmem:[%s650 + $0x4] sm:$0xf]
        %v2127 = vld [vmem:[%s650 + $0x8] sm:$0xf]
        %v2128 = vld [vmem:[%s650 + $0xc] sm:$0xf]
        %v2129 = vpack.c.bf16 %v1900, %v1897
        %v2130 = vpack.c.bf16 %v1944, %v1941
        %v2131 = vld [vmem:[%s650 + $0x10] sm:$0xf]
        %v2132 = vld [vmem:[%s650 + $0x14] sm:$0xf]
        %v2133 = vld [vmem:[%s650 + $0x18] sm:$0xf]
        %v2134 = vld [vmem:[%s650 + $0x1c] sm:$0xf]
        %v2139 = vunpack.c.l.b16 %v2131
        %v2140 = vunpack.c.l.b16 %v2132
        %v2141 = vunpack.c.l.b16 %v2133
        %v2142 = vunpack.c.l.b16 %v2134
        %v2143 = vpack.c.b16 %v2140, %v2139
        %v2144 = vpack.c.b16 %v2142, %v2141
        %v2148 = vsel %vm1209, %v2129, 0
        %v2151 = vsel %vm1209, %v2130, 0
        %2153 = vmatprep.subr.bf16.mxu0 0
        %2154 = vmatpush1.bf16.msra.mxu0 0
        %2155 = vmatprep.subr.bf16.mxu0 0
        %2156 = vmatpush1.bf16.msra.mxu0 0
        %2157 = vmatprep.subr.bf16.mxu0 0
        %2158 = vmatpush1.bf16.msra.mxu0 0
        %2159 = vmatprep.subr.bf16.mxu0 0
        %2160 = vmatpush1.bf16.msra.mxu0 0
        %2161 = vmatprep.subr.bf16.mxu0 0
        %2162 = vmatpush1.bf16.msra.mxu0 0
        %2163 = vmatprep.subr.bf16.mxu0 0
        %2164 = vmatpush1.bf16.msra.mxu0 0
        %2165 = vmatprep.subr.bf16.mxu0 0
        %2166 = vmatpush1.bf16.msra.mxu0 %v2144
        %2167 = vmatprep.subr.bf16.mxu0 0
        %2168 = vmatpush1.bf16.msra.mxu0 %v2143
        %2169 = vmatprep.subr.bf16.mxu0 0
        %2170 = vmatpush2.bf16.msra.mxu0 0
        %2171 = vmatprep.subr.bf16.mxu0 0
        %2172 = vmatpush2.bf16.msra.mxu0 0
        %2173 = vmatprep.subr.bf16.mxu0 0
        %2174 = vmatpush2.bf16.msra.mxu0 0
        %2175 = vmatprep.subr.bf16.mxu0 0
        %2176 = vmatpush2.bf16.msra.mxu0 0
        %2177 = vmatprep.subr.bf16.mxu0 0
        %2178 = vmatpush2.bf16.msra.mxu0 0
        %2179 = vmatprep.subr.bf16.mxu0 0
        %2180 = vmatpush2.bf16.msra.mxu0 0
        %2181 = vmatprep.subr.bf16.mxu0 0
        %2182 = vmatpush2.bf16.msra.mxu0 0
        %2183 = vmatprep.subr.bf16.mxu0 0
        %2184 = vmatpush2.bf16.msra.mxu0 0
        %2185 = vmatprep.mubr.bf16.mxu0 0
        %2186 = vmatmul.mubr.bf16.gmra.mxu0 %v2148
        %v2187 = vpop.f32.mrf.mxu0
        %v2188 = vadd.f32 0.0, %v2187
        %v2189 = vpop.f32.mrf.mxu0
        %v2190 = vpop.f32.mrf.mxu0
        %v2191 = vadd.f32 0.0, %v2190
        %v2192 = vpop.f32.mrf.mxu0
        %2193 = vmatprep.mubr.bf16.mxu0 0
        %2194 = vmatmul.mubr.bf16.gmra.mxu0 %v2151
        %v2195 = vpop.f32.mrf.mxu0
        %v2196 = vadd.f32 0.0, %v2195
        %v2197 = vpop.f32.mrf.mxu0
        %v2198 = vpop.f32.mrf.mxu0
        %v2199 = vadd.f32 0.0, %v2198
        %v2200 = vpop.f32.mrf.mxu0
        %2201 = vdwg.mxu0
        %v2206 = vunpack.c.l.b16 %v2125
        %v2207 = vunpack.c.l.b16 %v2126
        %v2208 = vunpack.c.l.b16 %v2127
        %v2209 = vunpack.c.l.b16 %v2128
        %v2210 = vpack.c.b16 %v2207, %v2206
        %v2211 = vpack.c.b16 %v2209, %v2208
        %v2215 = vsel %vm1209, %v2123, 0
        %v2218 = vsel %vm1209, %v2124, 0
        %2220 = vmatprep.subr.bf16.mxu0 0
        %2221 = vmatpush1.bf16.msra.mxu0 0
        %2222 = vmatprep.subr.bf16.mxu0 0
        %2223 = vmatpush1.bf16.msra.mxu0 0
        %2224 = vmatprep.subr.bf16.mxu0 0
        %2225 = vmatpush1.bf16.msra.mxu0 0
        %2226 = vmatprep.subr.bf16.mxu0 0
        %2227 = vmatpush1.bf16.msra.mxu0 0
        %2228 = vmatprep.subr.bf16.mxu0 0
        %2229 = vmatpush1.bf16.msra.mxu0 0
        %2230 = vmatprep.subr.bf16.mxu0 0
        %2231 = vmatpush1.bf16.msra.mxu0 0
        %2232 = vmatprep.subr.bf16.mxu0 0
        %2233 = vmatpush1.bf16.msra.mxu0 %v2211
        %2234 = vmatprep.subr.bf16.mxu0 0
        %2235 = vmatpush1.bf16.msra.mxu0 %v2210
        %2236 = vmatprep.subr.bf16.mxu0 0
        %2237 = vmatpush2.bf16.msra.mxu0 0
        %2238 = vmatprep.subr.bf16.mxu0 0
        %2239 = vmatpush2.bf16.msra.mxu0 0
        %2240 = vmatprep.subr.bf16.mxu0 0
        %2241 = vmatpush2.bf16.msra.mxu0 0
        %2242 = vmatprep.subr.bf16.mxu0 0
        %2243 = vmatpush2.bf16.msra.mxu0 0
        %2244 = vmatprep.subr.bf16.mxu0 0
        %2245 = vmatpush2.bf16.msra.mxu0 0
        %2246 = vmatprep.subr.bf16.mxu0 0
        %2247 = vmatpush2.bf16.msra.mxu0 0
        %2248 = vmatprep.subr.bf16.mxu0 0
        %2249 = vmatpush2.bf16.msra.mxu0 0
        %2250 = vmatprep.subr.bf16.mxu0 0
        %2251 = vmatpush2.bf16.msra.mxu0 0
        %2252 = vmatprep.mubr.bf16.mxu0 0
        %2253 = vmatmul.mubr.bf16.gmra.mxu0 %v2215
        %v2254 = vpop.f32.mrf.mxu0
        %v2255 = vadd.f32 %v2188, %v2254
        %v2256 = vpop.f32.mrf.mxu0
        %v2257 = vpop.f32.mrf.mxu0
        %v2258 = vadd.f32 %v2191, %v2257
        %v2259 = vpop.f32.mrf.mxu0
        %2260 = vmatprep.mubr.bf16.mxu0 0
        %2261 = vmatmul.mubr.bf16.gmra.mxu0 %v2218
        %v2262 = vpop.f32.mrf.mxu0
        %v2263 = vadd.f32 %v2196, %v2262
        %v2264 = vpop.f32.mrf.mxu0
        %v2265 = vpop.f32.mrf.mxu0
        %v2266 = vadd.f32 %v2199, %v2265
        %v2267 = vpop.f32.mrf.mxu0
        %2268 = vdwg.mxu0
        %v2269 = vpack.c.bf16 %v1988, %v1985
        %v2270 = vpack.c.bf16 %v2032, %v2029
        %v2271 = vld [vmem:[%s650 + $0x20] sm:$0xf]
        %v2272 = vld [vmem:[%s650 + $0x24] sm:$0xf]
        %v2273 = vld [vmem:[%s650 + $0x28] sm:$0xf]
        %v2274 = vld [vmem:[%s650 + $0x2c] sm:$0xf]
        %v2279 = vunpack.c.l.b16 %v2271
        %v2280 = vunpack.c.l.b16 %v2272
        %v2281 = vunpack.c.l.b16 %v2273
        %v2282 = vunpack.c.l.b16 %v2274
        %v2283 = vpack.c.b16 %v2280, %v2279
        %v2284 = vpack.c.b16 %v2282, %v2281
        %v2288 = vsel %vm1209, %v2269, 0
        %v2291 = vsel %vm1209, %v2270, 0
        %2293 = vmatprep.subr.bf16.mxu0 0
        %2294 = vmatpush1.bf16.msra.mxu0 0
        %2295 = vmatprep.subr.bf16.mxu0 0
        %2296 = vmatpush1.bf16.msra.mxu0 0
        %2297 = vmatprep.subr.bf16.mxu0 0
        %2298 = vmatpush1.bf16.msra.mxu0 0
        %2299 = vmatprep.subr.bf16.mxu0 0
        %2300 = vmatpush1.bf16.msra.mxu0 0
        %2301 = vmatprep.subr.bf16.mxu0 0
        %2302 = vmatpush1.bf16.msra.mxu0 0
        %2303 = vmatprep.subr.bf16.mxu0 0
        %2304 = vmatpush1.bf16.msra.mxu0 0
        %2305 = vmatprep.subr.bf16.mxu0 0
        %2306 = vmatpush1.bf16.msra.mxu0 %v2284
        %2307 = vmatprep.subr.bf16.mxu0 0
        %2308 = vmatpush1.bf16.msra.mxu0 %v2283
        %2309 = vmatprep.subr.bf16.mxu0 0
        %2310 = vmatpush2.bf16.msra.mxu0 0
        %2311 = vmatprep.subr.bf16.mxu0 0
        %2312 = vmatpush2.bf16.msra.mxu0 0
        %2313 = vmatprep.subr.bf16.mxu0 0
        %2314 = vmatpush2.bf16.msra.mxu0 0
        %2315 = vmatprep.subr.bf16.mxu0 0
        %2316 = vmatpush2.bf16.msra.mxu0 0
        %2317 = vmatprep.subr.bf16.mxu0 0
        %2318 = vmatpush2.bf16.msra.mxu0 0
        %2319 = vmatprep.subr.bf16.mxu0 0
        %2320 = vmatpush2.bf16.msra.mxu0 0
        %2321 = vmatprep.subr.bf16.mxu0 0
        %2322 = vmatpush2.bf16.msra.mxu0 0
        %2323 = vmatprep.subr.bf16.mxu0 0
        %2324 = vmatpush2.bf16.msra.mxu0 0
        %2325 = vmatprep.mubr.bf16.mxu0 0
        %2326 = vmatmul.mubr.bf16.gmra.mxu0 %v2288
        %v2327 = vpop.f32.mrf.mxu0
        %v2328 = vadd.f32 0.0, %v2327
        %v2329 = vpop.f32.mrf.mxu0
        %v2330 = vpop.f32.mrf.mxu0
        %v2331 = vadd.f32 0.0, %v2330
        %v2332 = vpop.f32.mrf.mxu0
        %2333 = vmatprep.mubr.bf16.mxu0 0
        %2334 = vmatmul.mubr.bf16.gmra.mxu0 %v2291
        %v2335 = vpop.f32.mrf.mxu0
        %v2336 = vadd.f32 0.0, %v2335
        %v2337 = vpop.f32.mrf.mxu0
        %v2338 = vpop.f32.mrf.mxu0
        %v2339 = vadd.f32 0.0, %v2338
        %v2340 = vpop.f32.mrf.mxu0
        %2341 = vdwg.mxu0
        %v2342 = vadd.f32 %v2255, %v2328
        %v2343 = vadd.f32 %v2258, %v2331
        %v2344 = vadd.f32 %v2263, %v2336
        %v2345 = vadd.f32 %v2266, %v2339
        %v2346 = vpack.c.bf16 %v2076, %v2073
        %v2347 = vpack.c.bf16 %v2120, %v2117
        %v2348 = vld [vmem:[%s650 + $0x30] sm:$0xf]
        %v2349 = vld [vmem:[%s650 + $0x34] sm:$0xf]
        %v2350 = vld [vmem:[%s650 + $0x38] sm:$0xf]
        %v2351 = vld [vmem:[%s650 + $0x3c] sm:$0xf]
        %v2356 = vunpack.c.l.b16 %v2348
        %v2357 = vunpack.c.l.b16 %v2349
        %v2358 = vunpack.c.l.b16 %v2350
        %v2359 = vunpack.c.l.b16 %v2351
        %v2360 = vpack.c.b16 %v2357, %v2356
        %v2361 = vpack.c.b16 %v2359, %v2358
        %v2365 = vsel %vm1209, %v2346, 0
        %v2368 = vsel %vm1209, %v2347, 0
        %2370 = vmatprep.subr.bf16.mxu0 0
        %2371 = vmatpush1.bf16.msra.mxu0 0
        %2372 = vmatprep.subr.bf16.mxu0 0
        %2373 = vmatpush1.bf16.msra.mxu0 0
        %2374 = vmatprep.subr.bf16.mxu0 0
        %2375 = vmatpush1.bf16.msra.mxu0 0
        %2376 = vmatprep.subr.bf16.mxu0 0
        %2377 = vmatpush1.bf16.msra.mxu0 0
        %2378 = vmatprep.subr.bf16.mxu0 0
        %2379 = vmatpush1.bf16.msra.mxu0 0
        %2380 = vmatprep.subr.bf16.mxu0 0
        %2381 = vmatpush1.bf16.msra.mxu0 0
        %2382 = vmatprep.subr.bf16.mxu0 0
        %2383 = vmatpush1.bf16.msra.mxu0 %v2361
        %2384 = vmatprep.subr.bf16.mxu0 0
        %2385 = vmatpush1.bf16.msra.mxu0 %v2360
        %2386 = vmatprep.subr.bf16.mxu0 0
        %2387 = vmatpush2.bf16.msra.mxu0 0
        %2388 = vmatprep.subr.bf16.mxu0 0
        %2389 = vmatpush2.bf16.msra.mxu0 0
        %2390 = vmatprep.subr.bf16.mxu0 0
        %2391 = vmatpush2.bf16.msra.mxu0 0
        %2392 = vmatprep.subr.bf16.mxu0 0
        %2393 = vmatpush2.bf16.msra.mxu0 0
        %2394 = vmatprep.subr.bf16.mxu0 0
        %2395 = vmatpush2.bf16.msra.mxu0 0
        %2396 = vmatprep.subr.bf16.mxu0 0
        %2397 = vmatpush2.bf16.msra.mxu0 0
        %2398 = vmatprep.subr.bf16.mxu0 0
        %2399 = vmatpush2.bf16.msra.mxu0 0
        %2400 = vmatprep.subr.bf16.mxu0 0
        %2401 = vmatpush2.bf16.msra.mxu0 0
        %2402 = vmatprep.mubr.bf16.mxu0 0
        %2403 = vmatmul.mubr.bf16.gmra.mxu0 %v2365
        %v2404 = vpop.f32.mrf.mxu0
        %v2405 = vadd.f32 0.0, %v2404
        %v2406 = vpop.f32.mrf.mxu0
        %v2407 = vpop.f32.mrf.mxu0
        %v2408 = vadd.f32 0.0, %v2407
        %v2409 = vpop.f32.mrf.mxu0
        %2410 = vmatprep.mubr.bf16.mxu0 0
        %2411 = vmatmul.mubr.bf16.gmra.mxu0 %v2368
        %v2412 = vpop.f32.mrf.mxu0
        %v2413 = vadd.f32 0.0, %v2412
        %v2414 = vpop.f32.mrf.mxu0
        %v2415 = vpop.f32.mrf.mxu0
        %v2416 = vadd.f32 0.0, %v2415
        %v2417 = vpop.f32.mrf.mxu0
        %2418 = vdwg.mxu0
        %v2419 = vadd.f32 %v2342, %v2405
        %v2420 = vadd.f32 %v2343, %v2408
        %v2421 = vadd.f32 %v2344, %v2413
        %v2422 = vadd.f32 %v2345, %v2416
        %v2423 = vadd.f32 %v811, %v2419
        %v2424 = vadd.f32 %v812, %v2420
        %v2425 = vadd.f32 %v813, %v2421
        %v2426 = vadd.f32 %v814, %v2422
        %v2427 = vld [vmem:[%s762] sm:$0x1]
        %v2429 = vlaneseq
        %v2430 = vshrl.u32 %v2429, 7
        %v2431 = vsub.s32 0, %v2430
        %v2432 = vrot.slane %v2427, %v2431
        %v2434 = vadd.f32 %v2423, %v2432
        %v2435 = vadd.f32 %v2424, %v2432
        %v2436 = vadd.f32 %v2425, %v2432
        %v2437 = vadd.f32 %v2426, %v2432
        %v2438 = vld [vmem:[%s765] sm:$0x1]
        %v2439 = vld [vmem:[%s768] sm:$0x1]
        %2440 = vadd.xlane.f32.xlu0 %v2434
        %v2441 = vpop.xlane.xlu0 %2440
        %2442 = vadd.xlane.f32.xlu0 %v2435
        %v2443 = vpop.xlane.xlu0 %2442
        %2444 = vadd.xlane.f32.xlu0 %v2436
        %v2445 = vpop.xlane.xlu0 %2444
        %2446 = vadd.xlane.f32.xlu0 %v2437
        %v2447 = vpop.xlane.xlu0 %2446
        %v2448 = vmul.f32 %v2434, %v2434
        %v2449 = vmul.f32 %v2435, %v2435
        %v2450 = vmul.f32 %v2436, %v2436
        %v2451 = vmul.f32 %v2437, %v2437
        %2452 = vadd.xlane.f32.xlu0 %v2448
        %v2453 = vpop.xlane.xlu0 %2452
        %2454 = vadd.xlane.f32.xlu0 %v2449
        %v2455 = vpop.xlane.xlu0 %2454
        %2456 = vadd.xlane.f32.xlu0 %v2450
        %v2457 = vpop.xlane.xlu0 %2456
        %2458 = vadd.xlane.f32.xlu0 %v2451
        %v2459 = vpop.xlane.xlu0 %2458
        %v2460 = vmul.f32 %v2441, 0.0078125
        %v2461 = vmul.f32 %v2443, 0.0078125
        %v2462 = vmul.f32 %v2445, 0.0078125
        %v2463 = vmul.f32 %v2447, 0.0078125
        %v2464 = vmul.f32 %v2453, 0.0078125
        %v2465 = vmul.f32 %v2455, 0.0078125
        %v2466 = vmul.f32 %v2457, 0.0078125
        %v2467 = vmul.f32 %v2459, 0.0078125
        %v2468 = vmul.f32 %v2460, %v2460
        %v2469 = vmul.f32 %v2461, %v2461
        %v2470 = vmul.f32 %v2462, %v2462
        %v2471 = vmul.f32 %v2463, %v2463
        %v2472 = vsub.f32 %v2464, %v2468
        %v2473 = vsub.f32 %v2465, %v2469
        %v2474 = vsub.f32 %v2466, %v2470
        %v2475 = vsub.f32 %v2467, %v2471
        %v2476 = vsub.f32 %v2434, %v2460
        %v2477 = vsub.f32 %v2435, %v2461
        %v2478 = vsub.f32 %v2436, %v2462
        %v2479 = vsub.f32 %v2437, %v2463
        %v2480 = vadd.f32 %v2472, 1e-05
        %v2481 = vadd.f32 %v2473, 1e-05
        %v2482 = vadd.f32 %v2474, 1e-05
        %v2483 = vadd.f32 %v2475, 1e-05
        %v2484 = vrsqrt.pop %v2480
        %v2485 = vrsqrt.pop %v2481
        %v2486 = vrsqrt.pop %v2482
        %v2487 = vrsqrt.pop %v2483
        %v2488 = vmul.f32 %v2476, %v2484
        %v2489 = vmul.f32 %v2477, %v2485
        %v2490 = vmul.f32 %v2478, %v2486
        %v2491 = vmul.f32 %v2479, %v2487
        %v2493 = vlaneseq
        %v2494 = vshrl.u32 %v2493, 7
        %v2495 = vsub.s32 0, %v2494
        %v2496 = vrot.slane %v2438, %v2495
        %v2498 = vmul.f32 %v2488, %v2496
        %v2499 = vmul.f32 %v2489, %v2496
        %v2500 = vmul.f32 %v2490, %v2496
        %v2501 = vmul.f32 %v2491, %v2496
        %v2503 = vlaneseq
        %v2504 = vshrl.u32 %v2503, 7
        %v2505 = vsub.s32 0, %v2504
        %v2506 = vrot.slane %v2439, %v2505
        %v2508 = vadd.f32 %v2498, %v2506
        %v2509 = vadd.f32 %v2499, %v2506
        %v2510 = vadd.f32 %v2500, %v2506
        %v2511 = vadd.f32 %v2501, %v2506
        %v2512 = vpack.c.bf16 %v2509, %v2508
        %v2513 = vpack.c.bf16 %v2511, %v2510
        %v2514 = vld [vmem:[%s659] sm:$0xff]
        %v2515 = vld [vmem:[%s659 + $0x8] sm:$0xff]
        %v2516 = vld [vmem:[%s659 + $0x10] sm:$0xff]
        %v2517 = vld [vmem:[%s659 + $0x18] sm:$0xff]
        %v2518 = vld [vmem:[%s659 + $0x20] sm:$0xff]
        %v2519 = vld [vmem:[%s659 + $0x28] sm:$0xff]
        %v2520 = vld [vmem:[%s659 + $0x30] sm:$0xff]
        %v2521 = vld [vmem:[%s659 + $0x38] sm:$0xff]
        %v2522 = vld [vmem:[%s659 + $0x40] sm:$0xff]
        %v2523 = vld [vmem:[%s659 + $0x48] sm:$0xff]
        %v2524 = vld [vmem:[%s659 + $0x50] sm:$0xff]
        %v2525 = vld [vmem:[%s659 + $0x58] sm:$0xff]
        %v2526 = vld [vmem:[%s659 + $0x60] sm:$0xff]
        %v2527 = vld [vmem:[%s659 + $0x68] sm:$0xff]
        %v2528 = vld [vmem:[%s659 + $0x70] sm:$0xff]
        %v2529 = vld [vmem:[%s659 + $0x78] sm:$0xff]
        %v2530 = vld [vmem:[%s659 + $0x80] sm:$0xff]
        %v2531 = vld [vmem:[%s659 + $0x88] sm:$0xff]
        %v2532 = vld [vmem:[%s659 + $0x90] sm:$0xff]
        %v2533 = vld [vmem:[%s659 + $0x98] sm:$0xff]
        %v2534 = vld [vmem:[%s659 + $0xa0] sm:$0xff]
        %v2535 = vld [vmem:[%s659 + $0xa8] sm:$0xff]
        %v2536 = vld [vmem:[%s659 + $0xb0] sm:$0xff]
        %v2537 = vld [vmem:[%s659 + $0xb8] sm:$0xff]
        %v2538 = vld [vmem:[%s659 + $0xc0] sm:$0xff]
        %v2539 = vld [vmem:[%s659 + $0xc8] sm:$0xff]
        %v2540 = vld [vmem:[%s659 + $0xd0] sm:$0xff]
        %v2541 = vld [vmem:[%s659 + $0xd8] sm:$0xff]
        %v2542 = vld [vmem:[%s659 + $0xe0] sm:$0xff]
        %v2543 = vld [vmem:[%s659 + $0xe8] sm:$0xff]
        %v2544 = vld [vmem:[%s659 + $0xf0] sm:$0xff]
        %v2545 = vld [vmem:[%s659 + $0xf8] sm:$0xff]
        %v2546 = vld [vmem:[%s772] sm:$0xf]
        %v2548 = vlaneseq
        %v2549 = vshrl.u32 %v2548, 7
        %v2550 = vsub.s32 0, %v2549
        %v2551 = vrot.slane %v2546, %v2550
        %v2552 = vlaneseq
        %v2553 = vshrl.u32 %v2552, 7
        %v2554 = vsub.s32 1, %v2553
        %v2555 = vrot.slane %v2546, %v2554
        %v2556 = vlaneseq
        %v2557 = vshrl.u32 %v2556, 7
        %v2558 = vsub.s32 2, %v2557
        %v2559 = vrot.slane %v2546, %v2558
        %v2560 = vlaneseq
        %v2561 = vshrl.u32 %v2560, 7
        %v2562 = vsub.s32 3, %v2561
        %v2563 = vrot.slane %v2546, %v2562
        %v2600 = vunpack.c.l.b16 %v2514
        %v2601 = vunpack.c.h.b16 %v2514
        %v2602 = vunpack.c.l.b16 %v2515
        %v2603 = vunpack.c.h.b16 %v2515
        %v2604 = vunpack.c.l.b16 %v2516
        %v2605 = vunpack.c.h.b16 %v2516
        %v2606 = vunpack.c.l.b16 %v2517
        %v2607 = vunpack.c.h.b16 %v2517
        %v2608 = vunpack.c.l.b16 %v2518
        %v2609 = vunpack.c.h.b16 %v2518
        %v2610 = vunpack.c.l.b16 %v2519
        %v2611 = vunpack.c.h.b16 %v2519
        %v2612 = vunpack.c.l.b16 %v2520
        %v2613 = vunpack.c.h.b16 %v2520
        %v2614 = vunpack.c.l.b16 %v2521
        %v2615 = vunpack.c.h.b16 %v2521
        %v2616 = vunpack.c.l.b16 %v2522
        %v2617 = vunpack.c.h.b16 %v2522
        %v2618 = vunpack.c.l.b16 %v2523
        %v2619 = vunpack.c.h.b16 %v2523
        %v2620 = vunpack.c.l.b16 %v2524
        %v2621 = vunpack.c.h.b16 %v2524
        %v2622 = vunpack.c.l.b16 %v2525
        %v2623 = vunpack.c.h.b16 %v2525
        %v2624 = vunpack.c.l.b16 %v2526
        %v2625 = vunpack.c.h.b16 %v2526
        %v2626 = vunpack.c.l.b16 %v2527
        %v2627 = vunpack.c.h.b16 %v2527
        %v2628 = vunpack.c.l.b16 %v2528
        %v2629 = vunpack.c.h.b16 %v2528
        %v2630 = vunpack.c.l.b16 %v2529
        %v2631 = vunpack.c.h.b16 %v2529
        %v2632 = vunpack.c.l.b16 %v2530
        %v2633 = vunpack.c.h.b16 %v2530
        %v2634 = vunpack.c.l.b16 %v2531
        %v2635 = vunpack.c.h.b16 %v2531
        %v2636 = vunpack.c.l.b16 %v2532
        %v2637 = vunpack.c.h.b16 %v2532
        %v2638 = vunpack.c.l.b16 %v2533
        %v2639 = vunpack.c.h.b16 %v2533
        %v2640 = vunpack.c.l.b16 %v2534
        %v2641 = vunpack.c.h.b16 %v2534
        %v2642 = vunpack.c.l.b16 %v2535
        %v2643 = vunpack.c.h.b16 %v2535
        %v2644 = vunpack.c.l.b16 %v2536
        %v2645 = vunpack.c.h.b16 %v2536
        %v2646 = vunpack.c.l.b16 %v2537
        %v2647 = vunpack.c.h.b16 %v2537
        %v2648 = vunpack.c.l.b16 %v2538
        %v2649 = vunpack.c.h.b16 %v2538
        %v2650 = vunpack.c.l.b16 %v2539
        %v2651 = vunpack.c.h.b16 %v2539
        %v2652 = vunpack.c.l.b16 %v2540
        %v2653 = vunpack.c.h.b16 %v2540
        %v2654 = vunpack.c.l.b16 %v2541
        %v2655 = vunpack.c.h.b16 %v2541
        %v2656 = vunpack.c.l.b16 %v2542
        %v2657 = vunpack.c.h.b16 %v2542
        %v2658 = vunpack.c.l.b16 %v2543
        %v2659 = vunpack.c.h.b16 %v2543
        %v2660 = vunpack.c.l.b16 %v2544
        %v2661 = vunpack.c.h.b16 %v2544
        %v2662 = vunpack.c.l.b16 %v2545
        %v2663 = vunpack.c.h.b16 %v2545
        %v2664 = vpack.c.b16 %v2604, %v2600
        %v2665 = vpack.c.b16 %v2605, %v2601
        %v2666 = vpack.c.b16 %v2606, %v2602
        %v2667 = vpack.c.b16 %v2607, %v2603
        %v2668 = vpack.c.b16 %v2612, %v2608
        %v2669 = vpack.c.b16 %v2613, %v2609
        %v2670 = vpack.c.b16 %v2614, %v2610
        %v2671 = vpack.c.b16 %v2615, %v2611
        %v2672 = vpack.c.b16 %v2620, %v2616
        %v2673 = vpack.c.b16 %v2621, %v2617
        %v2674 = vpack.c.b16 %v2622, %v2618
        %v2675 = vpack.c.b16 %v2623, %v2619
        %v2676 = vpack.c.b16 %v2628, %v2624
        %v2677 = vpack.c.b16 %v2629, %v2625
        %v2678 = vpack.c.b16 %v2630, %v2626
        %v2679 = vpack.c.b16 %v2631, %v2627
        %v2680 = vpack.c.b16 %v2636, %v2632
        %v2681 = vpack.c.b16 %v2637, %v2633
        %v2682 = vpack.c.b16 %v2638, %v2634
        %v2683 = vpack.c.b16 %v2639, %v2635
        %v2684 = vpack.c.b16 %v2644, %v2640
        %v2685 = vpack.c.b16 %v2645, %v2641
        %v2686 = vpack.c.b16 %v2646, %v2642
        %v2687 = vpack.c.b16 %v2647, %v2643
        %v2688 = vpack.c.b16 %v2652, %v2648
        %v2689 = vpack.c.b16 %v2653, %v2649
        %v2690 = vpack.c.b16 %v2654, %v2650
        %v2691 = vpack.c.b16 %v2655, %v2651
        %v2692 = vpack.c.b16 %v2660, %v2656
        %v2693 = vpack.c.b16 %v2661, %v2657
        %v2694 = vpack.c.b16 %v2662, %v2658
        %v2695 = vpack.c.b16 %v2663, %v2659
        %2728 = vmatprep.subr.bf16.mxu0 %v2693
        %2729 = vmatpush1.bf16.msra.mxu0 %v2692
        %2730 = vmatprep.subr.bf16.mxu0 %v2689
        %2731 = vmatpush1.bf16.msra.mxu0 %v2688
        %2732 = vmatprep.subr.bf16.mxu0 %v2685
        %2733 = vmatpush1.bf16.msra.mxu0 %v2684
        %2734 = vmatprep.subr.bf16.mxu0 %v2681
        %2735 = vmatpush1.bf16.msra.mxu0 %v2680
        %2736 = vmatprep.subr.bf16.mxu0 %v2677
        %2737 = vmatpush1.bf16.msra.mxu0 %v2676
        %2738 = vmatprep.subr.bf16.mxu0 %v2673
        %2739 = vmatpush1.bf16.msra.mxu0 %v2672
        %2740 = vmatprep.subr.bf16.mxu0 %v2669
        %2741 = vmatpush1.bf16.msra.mxu0 %v2668
        %2742 = vmatprep.subr.bf16.mxu0 %v2665
        %2743 = vmatpush1.bf16.msra.mxu0 %v2664
        %2744 = vmatprep.subr.bf16.mxu0 0
        %2745 = vmatpush2.bf16.msra.mxu0 0
        %2746 = vmatprep.subr.bf16.mxu0 0
        %2747 = vmatpush2.bf16.msra.mxu0 0
        %2748 = vmatprep.subr.bf16.mxu0 0
        %2749 = vmatpush2.bf16.msra.mxu0 0
        %2750 = vmatprep.subr.bf16.mxu0 0
        %2751 = vmatpush2.bf16.msra.mxu0 0
        %2752 = vmatprep.subr.bf16.mxu0 0
        %2753 = vmatpush2.bf16.msra.mxu0 0
        %2754 = vmatprep.subr.bf16.mxu0 0
        %2755 = vmatpush2.bf16.msra.mxu0 0
        %2756 = vmatprep.subr.bf16.mxu0 0
        %2757 = vmatpush2.bf16.msra.mxu0 0
        %2758 = vmatprep.subr.bf16.mxu0 0
        %2759 = vmatpush2.bf16.msra.mxu0 0
        %2760 = vmatprep.mubr.bf16.mxu0 0
        %2761 = vmatmul.mubr.bf16.gmra.mxu0 %v2512
        %v2762 = vpop.f32.mrf.mxu0
        %v2763 = vadd.f32 %v2551, %v2762
        %v2764 = vpop.f32.mrf.mxu0
        %v2765 = vadd.f32 %v2555, %v2764
        %v2766 = vpop.f32.mrf.mxu0
        %v2767 = vadd.f32 %v2551, %v2766
        %v2768 = vpop.f32.mrf.mxu0
        %v2769 = vadd.f32 %v2555, %v2768
        %2770 = vmatprep.mubr.bf16.mxu0 0
        %2771 = vmatmul.mubr.bf16.gmra.mxu0 %v2513
        %v2772 = vpop.f32.mrf.mxu0
        %v2773 = vadd.f32 %v2551, %v2772
        %v2774 = vpop.f32.mrf.mxu0
        %v2775 = vadd.f32 %v2555, %v2774
        %v2776 = vpop.f32.mrf.mxu0
        %v2777 = vadd.f32 %v2551, %v2776
        %v2778 = vpop.f32.mrf.mxu0
        %v2779 = vadd.f32 %v2555, %v2778
        %2780 = vdwg.mxu0
        %2781 = vmatprep.subr.bf16.mxu0 %v2695
        %2782 = vmatpush1.bf16.msra.mxu0 %v2694
        %2783 = vmatprep.subr.bf16.mxu0 %v2691
        %2784 = vmatpush1.bf16.msra.mxu0 %v2690
        %2785 = vmatprep.subr.bf16.mxu0 %v2687
        %2786 = vmatpush1.bf16.msra.mxu0 %v2686
        %2787 = vmatprep.subr.bf16.mxu0 %v2683
        %2788 = vmatpush1.bf16.msra.mxu0 %v2682
        %2789 = vmatprep.subr.bf16.mxu0 %v2679
        %2790 = vmatpush1.bf16.msra.mxu0 %v2678
        %2791 = vmatprep.subr.bf16.mxu0 %v2675
        %2792 = vmatpush1.bf16.msra.mxu0 %v2674
        %2793 = vmatprep.subr.bf16.mxu0 %v2671
        %2794 = vmatpush1.bf16.msra.mxu0 %v2670
        %2795 = vmatprep.subr.bf16.mxu0 %v2667
        %2796 = vmatpush1.bf16.msra.mxu0 %v2666
        %2797 = vmatprep.subr.bf16.mxu0 0
        %2798 = vmatpush2.bf16.msra.mxu0 0
        %2799 = vmatprep.subr.bf16.mxu0 0
        %2800 = vmatpush2.bf16.msra.mxu0 0
        %2801 = vmatprep.subr.bf16.mxu0 0
        %2802 = vmatpush2.bf16.msra.mxu0 0
        %2803 = vmatprep.subr.bf16.mxu0 0
        %2804 = vmatpush2.bf16.msra.mxu0 0
        %2805 = vmatprep.subr.bf16.mxu0 0
        %2806 = vmatpush2.bf16.msra.mxu0 0
        %2807 = vmatprep.subr.bf16.mxu0 0
        %2808 = vmatpush2.bf16.msra.mxu0 0
        %2809 = vmatprep.subr.bf16.mxu0 0
        %2810 = vmatpush2.bf16.msra.mxu0 0
        %2811 = vmatprep.subr.bf16.mxu0 0
        %2812 = vmatpush2.bf16.msra.mxu0 0
        %2813 = vmatprep.mubr.bf16.mxu0 0
        %2814 = vmatmul.mubr.bf16.gmra.mxu0 %v2512
        %v2815 = vpop.f32.mrf.mxu0
        %v2816 = vadd.f32 %v2559, %v2815
        %v2817 = vpop.f32.mrf.mxu0
        %v2818 = vadd.f32 %v2563, %v2817
        %v2819 = vpop.f32.mrf.mxu0
        %v2820 = vadd.f32 %v2559, %v2819
        %v2821 = vpop.f32.mrf.mxu0
        %v2822 = vadd.f32 %v2563, %v2821
        %2823 = vmatprep.mubr.bf16.mxu0 0
        %2824 = vmatmul.mubr.bf16.gmra.mxu0 %v2513
        %v2825 = vpop.f32.mrf.mxu0
        %v2826 = vadd.f32 %v2559, %v2825
        %v2827 = vpop.f32.mrf.mxu0
        %v2828 = vadd.f32 %v2563, %v2827
        %v2829 = vpop.f32.mrf.mxu0
        %v2830 = vadd.f32 %v2559, %v2829
        %v2831 = vpop.f32.mrf.mxu0
        %v2832 = vadd.f32 %v2563, %v2831
        %2833 = vdwg.mxu0
        %v2834 = vmax.f32 %v2763, 0.0
        %v2835 = vmax.f32 %v2765, 0.0
        %v2836 = vmax.f32 %v2816, 0.0
        %v2837 = vmax.f32 %v2818, 0.0
        %v2838 = vmax.f32 %v2767, 0.0
        %v2839 = vmax.f32 %v2769, 0.0
        %v2840 = vmax.f32 %v2820, 0.0
        %v2841 = vmax.f32 %v2822, 0.0
        %v2842 = vmax.f32 %v2773, 0.0
        %v2843 = vmax.f32 %v2775, 0.0
        %v2844 = vmax.f32 %v2826, 0.0
        %v2845 = vmax.f32 %v2828, 0.0
        %v2846 = vmax.f32 %v2777, 0.0
        %v2847 = vmax.f32 %v2779, 0.0
        %v2848 = vmax.f32 %v2830, 0.0
        %v2849 = vmax.f32 %v2832, 0.0
        %v2850 = vpack.c.bf16 %v2838, %v2834
        %v2851 = vpack.c.bf16 %v2839, %v2835
        %v2852 = vpack.c.bf16 %v2840, %v2836
        %v2853 = vpack.c.bf16 %v2841, %v2837
        %v2854 = vpack.c.bf16 %v2846, %v2842
        %v2855 = vpack.c.bf16 %v2847, %v2843
        %v2856 = vpack.c.bf16 %v2848, %v2844
        %v2857 = vpack.c.bf16 %v2849, %v2845
        %v2858 = vld [vmem:[%s668] sm:$0xf]
        %v2859 = vld [vmem:[%s668 + $0x4] sm:$0xf]
        %v2860 = vld [vmem:[%s668 + $0x8] sm:$0xf]
        %v2861 = vld [vmem:[%s668 + $0xc] sm:$0xf]
        %v2862 = vld [vmem:[%s668 + $0x10] sm:$0xf]
        %v2863 = vld [vmem:[%s668 + $0x14] sm:$0xf]
        %v2864 = vld [vmem:[%s668 + $0x18] sm:$0xf]
        %v2865 = vld [vmem:[%s668 + $0x1c] sm:$0xf]
        %v2866 = vld [vmem:[%s668 + $0x20] sm:$0xf]
        %v2867 = vld [vmem:[%s668 + $0x24] sm:$0xf]
        %v2868 = vld [vmem:[%s668 + $0x28] sm:$0xf]
        %v2869 = vld [vmem:[%s668 + $0x2c] sm:$0xf]
        %v2870 = vld [vmem:[%s668 + $0x30] sm:$0xf]
        %v2871 = vld [vmem:[%s668 + $0x34] sm:$0xf]
        %v2872 = vld [vmem:[%s668 + $0x38] sm:$0xf]
        %v2873 = vld [vmem:[%s668 + $0x3c] sm:$0xf]
        %v2874 = vld [vmem:[%s668 + $0x40] sm:$0xf]
        %v2875 = vld [vmem:[%s668 + $0x44] sm:$0xf]
        %v2876 = vld [vmem:[%s668 + $0x48] sm:$0xf]
        %v2877 = vld [vmem:[%s668 + $0x4c] sm:$0xf]
        %v2878 = vld [vmem:[%s668 + $0x50] sm:$0xf]
        %v2879 = vld [vmem:[%s668 + $0x54] sm:$0xf]
        %v2880 = vld [vmem:[%s668 + $0x58] sm:$0xf]
        %v2881 = vld [vmem:[%s668 + $0x5c] sm:$0xf]
        %v2882 = vld [vmem:[%s668 + $0x60] sm:$0xf]
        %v2883 = vld [vmem:[%s668 + $0x64] sm:$0xf]
        %v2884 = vld [vmem:[%s668 + $0x68] sm:$0xf]
        %v2885 = vld [vmem:[%s668 + $0x6c] sm:$0xf]
        %v2886 = vld [vmem:[%s668 + $0x70] sm:$0xf]
        %v2887 = vld [vmem:[%s668 + $0x74] sm:$0xf]
        %v2888 = vld [vmem:[%s668 + $0x78] sm:$0xf]
        %v2889 = vld [vmem:[%s668 + $0x7c] sm:$0xf]
        %v2890 = vld [vmem:[%s668 + $0x80] sm:$0xf]
        %v2891 = vld [vmem:[%s668 + $0x84] sm:$0xf]
        %v2892 = vld [vmem:[%s668 + $0x88] sm:$0xf]
        %v2893 = vld [vmem:[%s668 + $0x8c] sm:$0xf]
        %v2894 = vld [vmem:[%s668 + $0x90] sm:$0xf]
        %v2895 = vld [vmem:[%s668 + $0x94] sm:$0xf]
        %v2896 = vld [vmem:[%s668 + $0x98] sm:$0xf]
        %v2897 = vld [vmem:[%s668 + $0x9c] sm:$0xf]
        %v2898 = vld [vmem:[%s668 + $0xa0] sm:$0xf]
        %v2899 = vld [vmem:[%s668 + $0xa4] sm:$0xf]
        %v2900 = vld [vmem:[%s668 + $0xa8] sm:$0xf]
        %v2901 = vld [vmem:[%s668 + $0xac] sm:$0xf]
        %v2902 = vld [vmem:[%s668 + $0xb0] sm:$0xf]
        %v2903 = vld [vmem:[%s668 + $0xb4] sm:$0xf]
        %v2904 = vld [vmem:[%s668 + $0xb8] sm:$0xf]
        %v2905 = vld [vmem:[%s668 + $0xbc] sm:$0xf]
        %v2906 = vld [vmem:[%s668 + $0xc0] sm:$0xf]
        %v2907 = vld [vmem:[%s668 + $0xc4] sm:$0xf]
        %v2908 = vld [vmem:[%s668 + $0xc8] sm:$0xf]
        %v2909 = vld [vmem:[%s668 + $0xcc] sm:$0xf]
        %v2910 = vld [vmem:[%s668 + $0xd0] sm:$0xf]
        %v2911 = vld [vmem:[%s668 + $0xd4] sm:$0xf]
        %v2912 = vld [vmem:[%s668 + $0xd8] sm:$0xf]
        %v2913 = vld [vmem:[%s668 + $0xdc] sm:$0xf]
        %v2914 = vld [vmem:[%s668 + $0xe0] sm:$0xf]
        %v2915 = vld [vmem:[%s668 + $0xe4] sm:$0xf]
        %v2916 = vld [vmem:[%s668 + $0xe8] sm:$0xf]
        %v2917 = vld [vmem:[%s668 + $0xec] sm:$0xf]
        %v2918 = vld [vmem:[%s668 + $0xf0] sm:$0xf]
        %v2919 = vld [vmem:[%s668 + $0xf4] sm:$0xf]
        %v2920 = vld [vmem:[%s668 + $0xf8] sm:$0xf]
        %v2921 = vld [vmem:[%s668 + $0xfc] sm:$0xf]
        %v2922 = vld [vmem:[%s775] sm:$0x1]
        %v2924 = vlaneseq
        %v2925 = vshrl.u32 %v2924, 7
        %v2926 = vsub.s32 0, %v2925
        %v2927 = vrot.slane %v2922, %v2926
        %v2993 = vunpack.c.l.b16 %v2858
        %v2994 = vunpack.c.l.b16 %v2859
        %v2995 = vunpack.c.l.b16 %v2860
        %v2996 = vunpack.c.l.b16 %v2861
        %v2997 = vunpack.c.l.b16 %v2862
        %v2998 = vunpack.c.l.b16 %v2863
        %v2999 = vunpack.c.l.b16 %v2864
        %v3000 = vunpack.c.l.b16 %v2865
        %v3001 = vunpack.c.l.b16 %v2866
        %v3002 = vunpack.c.l.b16 %v2867
        %v3003 = vunpack.c.l.b16 %v2868
        %v3004 = vunpack.c.l.b16 %v2869
        %v3005 = vunpack.c.l.b16 %v2870
        %v3006 = vunpack.c.l.b16 %v2871
        %v3007 = vunpack.c.l.b16 %v2872
        %v3008 = vunpack.c.l.b16 %v2873
        %v3009 = vunpack.c.l.b16 %v2874
        %v3010 = vunpack.c.l.b16 %v2875
        %v3011 = vunpack.c.l.b16 %v2876
        %v3012 = vunpack.c.l.b16 %v2877
        %v3013 = vunpack.c.l.b16 %v2878
        %v3014 = vunpack.c.l.b16 %v2879
        %v3015 = vunpack.c.l.b16 %v2880
        %v3016 = vunpack.c.l.b16 %v2881
        %v3017 = vunpack.c.l.b16 %v2882
        %v3018 = vunpack.c.l.b16 %v2883
        %v3019 = vunpack.c.l.b16 %v2884
        %v3020 = vunpack.c.l.b16 %v2885
        %v3021 = vunpack.c.l.b16 %v2886
        %v3022 = vunpack.c.l.b16 %v2887
        %v3023 = vunpack.c.l.b16 %v2888
        %v3024 = vunpack.c.l.b16 %v2889
        %v3025 = vunpack.c.l.b16 %v2890
        %v3026 = vunpack.c.l.b16 %v2891
        %v3027 = vunpack.c.l.b16 %v2892
        %v3028 = vunpack.c.l.b16 %v2893
        %v3029 = vunpack.c.l.b16 %v2894
        %v3030 = vunpack.c.l.b16 %v2895
        %v3031 = vunpack.c.l.b16 %v2896
        %v3032 = vunpack.c.l.b16 %v2897
        %v3033 = vunpack.c.l.b16 %v2898
        %v3034 = vunpack.c.l.b16 %v2899
        %v3035 = vunpack.c.l.b16 %v2900
        %v3036 = vunpack.c.l.b16 %v2901
        %v3037 = vunpack.c.l.b16 %v2902
        %v3038 = vunpack.c.l.b16 %v2903
        %v3039 = vunpack.c.l.b16 %v2904
        %v3040 = vunpack.c.l.b16 %v2905
        %v3041 = vunpack.c.l.b16 %v2906
        %v3042 = vunpack.c.l.b16 %v2907
        %v3043 = vunpack.c.l.b16 %v2908
        %v3044 = vunpack.c.l.b16 %v2909
        %v3045 = vunpack.c.l.b16 %v2910
        %v3046 = vunpack.c.l.b16 %v2911
        %v3047 = vunpack.c.l.b16 %v2912
        %v3048 = vunpack.c.l.b16 %v2913
        %v3049 = vunpack.c.l.b16 %v2914
        %v3050 = vunpack.c.l.b16 %v2915
        %v3051 = vunpack.c.l.b16 %v2916
        %v3052 = vunpack.c.l.b16 %v2917
        %v3053 = vunpack.c.l.b16 %v2918
        %v3054 = vunpack.c.l.b16 %v2919
        %v3055 = vunpack.c.l.b16 %v2920
        %v3056 = vunpack.c.l.b16 %v2921
        %v3057 = vpack.c.b16 %v2994, %v2993
        %v3058 = vpack.c.b16 %v2996, %v2995
        %v3059 = vpack.c.b16 %v2998, %v2997
        %v3060 = vpack.c.b16 %v3000, %v2999
        %v3061 = vpack.c.b16 %v3002, %v3001
        %v3062 = vpack.c.b16 %v3004, %v3003
        %v3063 = vpack.c.b16 %v3006, %v3005
        %v3064 = vpack.c.b16 %v3008, %v3007
        %v3065 = vpack.c.b16 %v3010, %v3009
        %v3066 = vpack.c.b16 %v3012, %v3011
        %v3067 = vpack.c.b16 %v3014, %v3013
        %v3068 = vpack.c.b16 %v3016, %v3015
        %v3069 = vpack.c.b16 %v3018, %v3017
        %v3070 = vpack.c.b16 %v3020, %v3019
        %v3071 = vpack.c.b16 %v3022, %v3021
        %v3072 = vpack.c.b16 %v3024, %v3023
        %v3073 = vpack.c.b16 %v3026, %v3025
        %v3074 = vpack.c.b16 %v3028, %v3027
        %v3075 = vpack.c.b16 %v3030, %v3029
        %v3076 = vpack.c.b16 %v3032, %v3031
        %v3077 = vpack.c.b16 %v3034, %v3033
        %v3078 = vpack.c.b16 %v3036, %v3035
        %v3079 = vpack.c.b16 %v3038, %v3037
        %v3080 = vpack.c.b16 %v3040, %v3039
        %v3081 = vpack.c.b16 %v3042, %v3041
        %v3082 = vpack.c.b16 %v3044, %v3043
        %v3083 = vpack.c.b16 %v3046, %v3045
        %v3084 = vpack.c.b16 %v3048, %v3047
        %v3085 = vpack.c.b16 %v3050, %v3049
        %v3086 = vpack.c.b16 %v3052, %v3051
        %v3087 = vpack.c.b16 %v3054, %v3053
        %v3088 = vpack.c.b16 %v3056, %v3055
        %3121 = vmatprep.subr.bf16.mxu0 0
        %3122 = vmatpush1.bf16.msra.mxu0 %v3064
        %3123 = vmatprep.subr.bf16.mxu0 0
        %3124 = vmatpush1.bf16.msra.mxu0 %v3063
        %3125 = vmatprep.subr.bf16.mxu0 0
        %3126 = vmatpush1.bf16.msra.mxu0 %v3062
        %3127 = vmatprep.subr.bf16.mxu0 0
        %3128 = vmatpush1.bf16.msra.mxu0 %v3061
        %3129 = vmatprep.subr.bf16.mxu0 0
        %3130 = vmatpush1.bf16.msra.mxu0 %v3060
        %3131 = vmatprep.subr.bf16.mxu0 0
        %3132 = vmatpush1.bf16.msra.mxu0 %v3059
        %3133 = vmatprep.subr.bf16.mxu0 0
        %3134 = vmatpush1.bf16.msra.mxu0 %v3058
        %3135 = vmatprep.subr.bf16.mxu0 0
        %3136 = vmatpush1.bf16.msra.mxu0 %v3057
        %3137 = vmatprep.subr.bf16.mxu0 0
        %3138 = vmatpush2.bf16.msra.mxu0 %v3072
        %3139 = vmatprep.subr.bf16.mxu0 0
        %3140 = vmatpush2.bf16.msra.mxu0 %v3071
        %3141 = vmatprep.subr.bf16.mxu0 0
        %3142 = vmatpush2.bf16.msra.mxu0 %v3070
        %3143 = vmatprep.subr.bf16.mxu0 0
        %3144 = vmatpush2.bf16.msra.mxu0 %v3069
        %3145 = vmatprep.subr.bf16.mxu0 0
        %3146 = vmatpush2.bf16.msra.mxu0 %v3068
        %3147 = vmatprep.subr.bf16.mxu0 0
        %3148 = vmatpush2.bf16.msra.mxu0 %v3067
        %3149 = vmatprep.subr.bf16.mxu0 0
        %3150 = vmatpush2.bf16.msra.mxu0 %v3066
        %3151 = vmatprep.subr.bf16.mxu0 0
        %3152 = vmatpush2.bf16.msra.mxu0 %v3065
        %3153 = vmatprep.mubr.bf16.mxu0 %v2851
        %3154 = vmatmul.mubr.bf16.gmra.mxu0 %v2850
        %v3155 = vpop.f32.mrf.mxu0
        %v3156 = vadd.f32 %v2927, %v3155
        %v3157 = vpop.f32.mrf.mxu0
        %v3158 = vpop.f32.mrf.mxu0
        %v3159 = vadd.f32 %v2927, %v3158
        %v3160 = vpop.f32.mrf.mxu0
        %3161 = vmatprep.mubr.bf16.mxu0 %v2855
        %3162 = vmatmul.mubr.bf16.gmra.mxu0 %v2854
        %v3163 = vpop.f32.mrf.mxu0
        %v3164 = vadd.f32 %v2927, %v3163
        %v3165 = vpop.f32.mrf.mxu0
        %v3166 = vpop.f32.mrf.mxu0
        %v3167 = vadd.f32 %v2927, %v3166
        %v3168 = vpop.f32.mrf.mxu0
        %3169 = vdwg.mxu0
        %3170 = vmatprep.subr.bf16.mxu0 0
        %3171 = vmatpush1.bf16.msra.mxu0 %v3080
        %3172 = vmatprep.subr.bf16.mxu0 0
        %3173 = vmatpush1.bf16.msra.mxu0 %v3079
        %3174 = vmatprep.subr.bf16.mxu0 0
        %3175 = vmatpush1.bf16.msra.mxu0 %v3078
        %3176 = vmatprep.subr.bf16.mxu0 0
        %3177 = vmatpush1.bf16.msra.mxu0 %v3077
        %3178 = vmatprep.subr.bf16.mxu0 0
        %3179 = vmatpush1.bf16.msra.mxu0 %v3076
        %3180 = vmatprep.subr.bf16.mxu0 0
        %3181 = vmatpush1.bf16.msra.mxu0 %v3075
        %3182 = vmatprep.subr.bf16.mxu0 0
        %3183 = vmatpush1.bf16.msra.mxu0 %v3074
        %3184 = vmatprep.subr.bf16.mxu0 0
        %3185 = vmatpush1.bf16.msra.mxu0 %v3073
        %3186 = vmatprep.subr.bf16.mxu0 0
        %3187 = vmatpush2.bf16.msra.mxu0 %v3088
        %3188 = vmatprep.subr.bf16.mxu0 0
        %3189 = vmatpush2.bf16.msra.mxu0 %v3087
        %3190 = vmatprep.subr.bf16.mxu0 0
        %3191 = vmatpush2.bf16.msra.mxu0 %v3086
        %3192 = vmatprep.subr.bf16.mxu0 0
        %3193 = vmatpush2.bf16.msra.mxu0 %v3085
        %3194 = vmatprep.subr.bf16.mxu0 0
        %3195 = vmatpush2.bf16.msra.mxu0 %v3084
        %3196 = vmatprep.subr.bf16.mxu0 0
        %3197 = vmatpush2.bf16.msra.mxu0 %v3083
        %3198 = vmatprep.subr.bf16.mxu0 0
        %3199 = vmatpush2.bf16.msra.mxu0 %v3082
        %3200 = vmatprep.subr.bf16.mxu0 0
        %3201 = vmatpush2.bf16.msra.mxu0 %v3081
        %3202 = vmatprep.mubr.bf16.mxu0 %v2853
        %3203 = vmatmul.mubr.bf16.gmra.mxu0 %v2852
        %v3204 = vpop.f32.mrf.mxu0
        %v3205 = vadd.f32 %v3156, %v3204
        %v3206 = vpop.f32.mrf.mxu0
        %v3207 = vpop.f32.mrf.mxu0
        %v3208 = vadd.f32 %v3159, %v3207
        %v3209 = vpop.f32.mrf.mxu0
        %3210 = vmatprep.mubr.bf16.mxu0 %v2857
        %3211 = vmatmul.mubr.bf16.gmra.mxu0 %v2856
        %v3212 = vpop.f32.mrf.mxu0
        %v3213 = vadd.f32 %v3164, %v3212
        %v3214 = vpop.f32.mrf.mxu0
        %v3215 = vpop.f32.mrf.mxu0
        %v3216 = vadd.f32 %v3167, %v3215
        %v3217 = vpop.f32.mrf.mxu0
        %3218 = vdwg.mxu0
        %v3219 = vadd.f32 %v2434, %v3205
        %v3220 = vadd.f32 %v2435, %v3208
        %v3221 = vadd.f32 %v2436, %v3213
        %v3222 = vadd.f32 %v2437, %v3216
        %3223 = vst [vmem:[#allocation2] sm:$0xff] %v3219
        %3224 = vst [vmem:[#allocation2 + $0x8] sm:$0xff] %v3220
        %3225 = vst [vmem:[#allocation2 + $0x10] sm:$0xff] %v3221
        %3226 = vst [vmem:[#allocation2 + $0x18] sm:$0xff] %v3222
        %p3227 = scmp.eq.s32.totalorder %s45, 1
        // Predicated region
        $region114: #{tpu_custom_call.1} parent=79 // pred_check
          %p3228 = pneg %p3227
        $region115: #{tpu_custom_call.1} parent=79 // pred_check_branch
          %3230 = sbr.rel (%p3228) target = $region117
        $region116: #{tpu_custom_call.1} parent=79 // pred_region
          %v3231 = vld [vmem:[%s12] sm:$0x1]
          %v3232 = vld [vmem:[%s13] sm:$0x1]
          %3233 = vadd.xlane.f32.xlu0 %v3219
          %v3234 = vpop.xlane.xlu0 %3233
          %3235 = vadd.xlane.f32.xlu0 %v3220
          %v3236 = vpop.xlane.xlu0 %3235
          %3237 = vadd.xlane.f32.xlu0 %v3221
          %v3238 = vpop.xlane.xlu0 %3237
          %3239 = vadd.xlane.f32.xlu0 %v3222
          %v3240 = vpop.xlane.xlu0 %3239
          %v3241 = vmul.f32 %v3219, %v3219
          %v3242 = vmul.f32 %v3220, %v3220
          %v3243 = vmul.f32 %v3221, %v3221
          %v3244 = vmul.f32 %v3222, %v3222
          %3245 = vadd.xlane.f32.xlu0 %v3241
          %v3246 = vpop.xlane.xlu0 %3245
          %3247 = vadd.xlane.f32.xlu0 %v3242
          %v3248 = vpop.xlane.xlu0 %3247
          %3249 = vadd.xlane.f32.xlu0 %v3243
          %v3250 = vpop.xlane.xlu0 %3249
          %3251 = vadd.xlane.f32.xlu0 %v3244
          %v3252 = vpop.xlane.xlu0 %3251
          %v3253 = vmul.f32 %v3234, 0.0078125
          %v3254 = vmul.f32 %v3236, 0.0078125
          %v3255 = vmul.f32 %v3238, 0.0078125
          %v3256 = vmul.f32 %v3240, 0.0078125
          %v3257 = vmul.f32 %v3246, 0.0078125
          %v3258 = vmul.f32 %v3248, 0.0078125
          %v3259 = vmul.f32 %v3250, 0.0078125
          %v3260 = vmul.f32 %v3252, 0.0078125
          %v3261 = vmul.f32 %v3253, %v3253
          %v3262 = vmul.f32 %v3254, %v3254
          %v3263 = vmul.f32 %v3255, %v3255
          %v3264 = vmul.f32 %v3256, %v3256
          %v3265 = vsub.f32 %v3257, %v3261
          %v3266 = vsub.f32 %v3258, %v3262
          %v3267 = vsub.f32 %v3259, %v3263
          %v3268 = vsub.f32 %v3260, %v3264
          %v3269 = vsub.f32 %v3219, %v3253
          %v3270 = vsub.f32 %v3220, %v3254
          %v3271 = vsub.f32 %v3221, %v3255
          %v3272 = vsub.f32 %v3222, %v3256
          %v3273 = vadd.f32 %v3265, 1e-05
          %v3274 = vadd.f32 %v3266, 1e-05
          %v3275 = vadd.f32 %v3267, 1e-05
          %v3276 = vadd.f32 %v3268, 1e-05
          %v3277 = vrsqrt.pop %v3273
          %v3278 = vrsqrt.pop %v3274
          %v3279 = vrsqrt.pop %v3275
          %v3280 = vrsqrt.pop %v3276
          %v3281 = vmul.f32 %v3269, %v3277
          %v3282 = vmul.f32 %v3270, %v3278
          %v3283 = vmul.f32 %v3271, %v3279
          %v3284 = vmul.f32 %v3272, %v3280
          %v3286 = vlaneseq
          %v3287 = vshrl.u32 %v3286, 7
          %v3288 = vsub.s32 0, %v3287
          %v3289 = vrot.slane %v3231, %v3288
          %v3291 = vmul.f32 %v3281, %v3289
          %v3292 = vmul.f32 %v3282, %v3289
          %v3293 = vmul.f32 %v3283, %v3289
          %v3294 = vmul.f32 %v3284, %v3289
          %v3296 = vlaneseq
          %v3297 = vshrl.u32 %v3296, 7
          %v3298 = vsub.s32 0, %v3297
          %v3299 = vrot.slane %v3232, %v3298
          %v3301 = vadd.f32 %v3291, %v3299
          %v3302 = vadd.f32 %v3292, %v3299
          %v3303 = vadd.f32 %v3293, %v3299
          %v3304 = vadd.f32 %v3294, %v3299
          %v3305 = vpack.c.bf16 %v3302, %v3301
          %v3306 = vpack.c.bf16 %v3304, %v3303
          %v3307 = vld [vmem:[#allocation13] sm:$0xf]
          %v3308 = vld [vmem:[#allocation13 + $0x4] sm:$0xf]
          %v3309 = vld [vmem:[#allocation13 + $0x8] sm:$0xf]
          %v3310 = vld [vmem:[#allocation13 + $0xc] sm:$0xf]
          %v3311 = vld [vmem:[#allocation13 + $0x10] sm:$0xf]
          %v3312 = vld [vmem:[#allocation13 + $0x14] sm:$0xf]
          %v3313 = vld [vmem:[#allocation13 + $0x18] sm:$0xf]
          %v3314 = vld [vmem:[#allocation13 + $0x1c] sm:$0xf]
          %v3315 = vld [vmem:[#allocation13 + $0x20] sm:$0xf]
          %v3316 = vld [vmem:[#allocation13 + $0x24] sm:$0xf]
          %v3317 = vld [vmem:[#allocation13 + $0x28] sm:$0xf]
          %v3318 = vld [vmem:[#allocation13 + $0x2c] sm:$0xf]
          %v3319 = vld [vmem:[#allocation13 + $0x30] sm:$0xf]
          %v3320 = vld [vmem:[#allocation13 + $0x34] sm:$0xf]
          %v3321 = vld [vmem:[#allocation13 + $0x38] sm:$0xf]
          %v3322 = vld [vmem:[#allocation13 + $0x3c] sm:$0xf]
          %v3323 = vld [vmem:[%s15] sm:$0x1]
          %v3325 = vlaneseq
          %v3326 = vshrl.u32 %v3325, 7
          %v3327 = vsub.s32 0, %v3326
          %v3328 = vrot.slane %v3323, %v3327
          %v3346 = vunpack.c.l.b16 %v3307
          %v3347 = vunpack.c.l.b16 %v3308
          %v3348 = vunpack.c.l.b16 %v3309
          %v3349 = vunpack.c.l.b16 %v3310
          %v3350 = vunpack.c.l.b16 %v3311
          %v3351 = vunpack.c.l.b16 %v3312
          %v3352 = vunpack.c.l.b16 %v3313
          %v3353 = vunpack.c.l.b16 %v3314
          %v3354 = vunpack.c.l.b16 %v3315
          %v3355 = vunpack.c.l.b16 %v3316
          %v3356 = vunpack.c.l.b16 %v3317
          %v3357 = vunpack.c.l.b16 %v3318
          %v3358 = vunpack.c.l.b16 %v3319
          %v3359 = vunpack.c.l.b16 %v3320
          %v3360 = vunpack.c.l.b16 %v3321
          %v3361 = vunpack.c.l.b16 %v3322
          %v3362 = vpack.c.b16 %v3347, %v3346
          %v3363 = vpack.c.b16 %v3349, %v3348
          %v3364 = vpack.c.b16 %v3351, %v3350
          %v3365 = vpack.c.b16 %v3353, %v3352
          %v3366 = vpack.c.b16 %v3355, %v3354
          %v3367 = vpack.c.b16 %v3357, %v3356
          %v3368 = vpack.c.b16 %v3359, %v3358
          %v3369 = vpack.c.b16 %v3361, %v3360
          %3378 = vmatprep.subr.bf16.mxu0 0
          %3379 = vmatpush1.bf16.msra.mxu0 %v3369
          %3380 = vmatprep.subr.bf16.mxu0 0
          %3381 = vmatpush1.bf16.msra.mxu0 %v3368
          %3382 = vmatprep.subr.bf16.mxu0 0
          %3383 = vmatpush1.bf16.msra.mxu0 %v3367
          %3384 = vmatprep.subr.bf16.mxu0 0
          %3385 = vmatpush1.bf16.msra.mxu0 %v3366
          %3386 = vmatprep.subr.bf16.mxu0 0
          %3387 = vmatpush1.bf16.msra.mxu0 %v3365
          %3388 = vmatprep.subr.bf16.mxu0 0
          %3389 = vmatpush1.bf16.msra.mxu0 %v3364
          %3390 = vmatprep.subr.bf16.mxu0 0
          %3391 = vmatpush1.bf16.msra.mxu0 %v3363
          %3392 = vmatprep.subr.bf16.mxu0 0
          %3393 = vmatpush1.bf16.msra.mxu0 %v3362
          %3394 = vmatprep.subr.bf16.mxu0 0
          %3395 = vmatpush2.bf16.msra.mxu0 0
          %3396 = vmatprep.subr.bf16.mxu0 0
          %3397 = vmatpush2.bf16.msra.mxu0 0
          %3398 = vmatprep.subr.bf16.mxu0 0
          %3399 = vmatpush2.bf16.msra.mxu0 0
          %3400 = vmatprep.subr.bf16.mxu0 0
          %3401 = vmatpush2.bf16.msra.mxu0 0
          %3402 = vmatprep.subr.bf16.mxu0 0
          %3403 = vmatpush2.bf16.msra.mxu0 0
          %3404 = vmatprep.subr.bf16.mxu0 0
          %3405 = vmatpush2.bf16.msra.mxu0 0
          %3406 = vmatprep.subr.bf16.mxu0 0
          %3407 = vmatpush2.bf16.msra.mxu0 0
          %3408 = vmatprep.subr.bf16.mxu0 0
          %3409 = vmatpush2.bf16.msra.mxu0 0
          %3410 = vmatprep.mubr.bf16.mxu0 0
          %3411 = vmatmul.mubr.bf16.gmra.mxu0 %v3305
          %v3412 = vpop.f32.mrf.mxu0
          %v3413 = vadd.f32 %v3328, %v3412
          %v3414 = vpop.f32.mrf.mxu0
          %v3415 = vpop.f32.mrf.mxu0
          %v3416 = vadd.f32 %v3328, %v3415
          %v3417 = vpop.f32.mrf.mxu0
          %3418 = vmatprep.mubr.bf16.mxu0 0
          %3419 = vmatmul.mubr.bf16.gmra.mxu0 %v3306
          %v3420 = vpop.f32.mrf.mxu0
          %v3421 = vadd.f32 %v3328, %v3420
          %v3422 = vpop.f32.mrf.mxu0
          %v3423 = vpop.f32.mrf.mxu0
          %v3424 = vadd.f32 %v3328, %v3423
          %v3425 = vpop.f32.mrf.mxu0
          %3426 = vdwg.mxu0
          %3427 = vst [vmem:[%s756] sm:$0xff] %v3413
          %3428 = vst [vmem:[%s756 + $0x8] sm:$0xff] %v3416
          %3429 = vst [vmem:[%s756 + $0x10] sm:$0xff] %v3421
          %3430 = vst [vmem:[%s756 + $0x18] sm:$0xff] %v3424
        $region117: #{tpu_custom_call.1} parent=79 // pred_fallthru
          _
        %s3431 = sand.u32 %s430, 1
        %s3432 = scalar_lea.sflag [#allocation6], %s3431
        %s3433 = sand.u32 %s430, 1
        %s3434 = smul.addr %s3433, 32
        %s3435 = scalar_lea.vmem [#allocation15], %s3434
        // Predicated region
        $region118: #{tpu_custom_call.1} parent=79 // pred_check
          %p3436 = pneg %p440
        $region119: #{tpu_custom_call.1} parent=79 // pred_check_branch
          %3438 = sbr.rel (%p3436) target = $region121
        $region120: #{tpu_custom_call.1} parent=79 // pred_region
          %s3439 = smul.u32 4, %s44
          %s3441 = ssub.s32 512, 512
          %3442 = vsyncadd %s3432, %s3441
          %s3443 = smul.addr %s3439, 128
          %s3444 = scalar_lea.hbm %s16, %s3443
          %s3445 = sshll.u32 %s3435, 4
          %s3446 = int_to_ptr.vmem [resolvable:$true] %s3445
          %3451 = dma.vmem_to_hbm [thread:$0]  %s3446, 512, %s3444, %s3432, 128, 128, 8
        $region121: #{tpu_custom_call.1} parent=79 // pred_fallthru
          _
      $region80: #{tpu_custom_call.1} parent=5 // pred_fallthru
        _
      %p3452 = scmp.le.s32.totalorder 2, %s35
      // Predicated region
      $region122: #{tpu_custom_call.1} parent=5 // pred_check
        %p3453 = pneg %p3452
      $region123: #{tpu_custom_call.1} parent=5 // pred_check_branch
        %3455 = sbr.rel (%p3453) target = $region125
      $region124: #{tpu_custom_call.1} parent=5 // pred_region
        %s3456 = ssub.s32 %s35, 2
        // Predicated region
        $region126: #{tpu_custom_call.1} parent=124 // pred_check
          %p3457 = pneg %p446
        $region127: #{tpu_custom_call.1} parent=124 // pred_check_branch
          %3459 = sbr.rel (%p3457) target = $region129
        $region128: #{tpu_custom_call.1} parent=124 // pred_region
          %s3460 = sand.u32 %s431, 1
          %s3461 = scalar_lea.sflag [#allocation6], %s3460
          %s3462 = sand.u32 %s431, 1
          %s3463 = smul.addr %s3462, 32
          %s3464 = scalar_lea.vmem [#allocation15], %s3463
          %3465 = dma.done %s3461, 512
        $region129: #{tpu_custom_call.1} parent=124 // pred_fallthru
          _
      $region125: #{tpu_custom_call.1} parent=5 // pred_fallthru
        _
    $region6: #{tpu_custom_call.1} parent=1 // loop_footer
      %s39 = sadd.s32 1, %s35
    $region7: #{tpu_custom_call.1} parent=1 // loop_footer_branch
      %34 = sbr.rel target = $region3
    $region8: #{tpu_custom_call.1} parent=1 // loop_exit
      _
    %3466 = vsyncpa [#allocation5], 1
    %s3467 = scalar_lea.sflag [#allocation5], 1
    %3468 = vsyncpa %s3467, 1
    %3469 = vsyncpa [#allocation8], 1
    %s3470 = scalar_lea.sflag [#allocation8], 1
    %3471 = vsyncpa %s3470, 1
    %3472 = vsyncpa [#allocation11], 1
    %s3473 = scalar_lea.sflag [#allocation11], 1
    %3474 = vsyncpa %s3473, 1
    %3475 = vsyncpa [#allocation14], 1
    %3476 = vsyncpa [#allocation6], 1
    %s3477 = scalar_lea.sflag [#allocation6], 1
    %3478 = vsyncpa %s3477, 1

</llo_original>
